<compile_context>
chip_gen: v6e
topology: v6e:2x2x1
jax: 0.10.0
libtpu: 0.0.40
codegen_flags: <defaults>
</compile_context>

<pallas_src>
import jax
import jax.numpy as jnp
from jax import lax
from jax.experimental import pallas as pl
from jax.experimental.pallas import tpu as pltpu

EPS = 1e-5  # PyTorch LayerNorm default


def _layer_norm(z, g, b):
    mu = jnp.mean(z, axis=-1, keepdims=True)
    var = jnp.mean((z - mu) ** 2, axis=-1, keepdims=True)
    return (z - mu) * lax.rsqrt(var + EPS) * g + b


def _attn_block_kernel(
    xq_ref,                      # (1, Sq, C)  f32   q-tile of x (residual / Q / FFN)
    xkv_ref,                     # (1, Skv, C) f32   kv-tile of x (K / V)
    ln1g_ref, ln1b_ref,          # (1, C)      f32
    wq_ref, bq_ref,              # (1, C, dh) bf16, (1, 1, dh) f32   (pre-scaled by 1/sqrt(dh))
    wk_ref, bk_ref,              # (1, C, dh) bf16, (1, 1, dh) f32
    wv_ref, bv_ref,              # (1, C, dh) bf16, (1, 1, dh) f32
    wo_ref, bo_ref,              # (1, dh, C) bf16, (1, C) f32
    ln2g_ref, ln2b_ref,          # (1, C)      f32
    w1_ref, b1_ref,              # (C, C) bf16, (1, C) f32
    w2_ref, b2_ref,              # (C, C) bf16, (1, C) f32
    o_ref,                       # (1, Sq, C)  f32
    q_scr,                       # (Sq, dh)    bf16   per-head query tile
    m_scr, l_scr,                # (Sq, 1)     f32    online-softmax stats
    acc_scr,                     # (Sq, dh)    f32    per-head PV accumulator
    attn_scr,                    # (Sq, C)     f32    out-proj accumulated over heads
):
    head = pl.program_id(2)
    ki = pl.program_id(3)
    nh = pl.num_programs(2)
    nk = pl.num_programs(3)

    # --- reset the head-summed out-projection accumulator once per (b, q-tile)
    @pl.when(jnp.logical_and(head == 0, ki == 0))
    def _():
        attn_scr[...] = jnp.zeros_like(attn_scr)

    # --- per head: project Q once, reset online-softmax state ----------------
    @pl.when(ki == 0)
    def _():
        xq_ln = _layer_norm(xq_ref[0], ln1g_ref[...], ln1b_ref[...])     # (Sq, C) f32
        q = jnp.dot(xq_ln.astype(jnp.bfloat16), wq_ref[0],
                    preferred_element_type=jnp.float32) + bq_ref[0]      # (Sq, dh)
        q_scr[...] = q.astype(jnp.bfloat16)
        m_scr[...] = jnp.full_like(m_scr, -jnp.inf)
        l_scr[...] = jnp.zeros_like(l_scr)
        acc_scr[...] = jnp.zeros_like(acc_scr)

    # --- K / V projection for this kv tile (bf16 MXU, f32 accumulation) ------
    xkv_ln = _layer_norm(xkv_ref[0], ln1g_ref[...], ln1b_ref[...]).astype(jnp.bfloat16)
    k = (jnp.dot(xkv_ln, wk_ref[0], preferred_element_type=jnp.float32)
         + bk_ref[0]).astype(jnp.bfloat16)                               # (Skv, dh)
    v = (jnp.dot(xkv_ln, wv_ref[0], preferred_element_type=jnp.float32)
         + bv_ref[0]).astype(jnp.bfloat16)                               # (Skv, dh)

    # --- online softmax update (scores tile only, never (H,S,S)) -------------
    s = lax.dot_general(q_scr[...], k, (((1,), (1,)), ((), ())),
                        preferred_element_type=jnp.float32)              # (Sq, Skv)
    m_prev = m_scr[...]
    m_new = jnp.maximum(m_prev, jnp.max(s, axis=-1, keepdims=True))
    alpha = jnp.exp(m_prev - m_new)
    p = jnp.exp(s - m_new)
    l_scr[...] = alpha * l_scr[...] + jnp.sum(p, axis=-1, keepdims=True)
    acc_scr[...] = alpha * acc_scr[...] + jnp.dot(
        p.astype(jnp.bfloat16), v, preferred_element_type=jnp.float32)
    m_scr[...] = m_new

    # --- finish this head: normalize AFTER the PV matmul, fold in Wo_h -------
    @pl.when(ki == nk - 1)
    def _():
        ctx = acc_scr[...] * pl.reciprocal(l_scr[...], approx=True)      # (Sq, dh)
        attn_scr[...] += jnp.dot(ctx.astype(jnp.bfloat16), wo_ref[0],
                                 preferred_element_type=jnp.float32)     # (Sq, C)

    # --- last head & last kv tile: residual + ff_self, write output tile -----
    @pl.when(jnp.logical_and(head == nh - 1, ki == nk - 1))
    def _():
        y = attn_scr[...] + bo_ref[...] + xq_ref[0]                      # attention_value
        y_ln = _layer_norm(y, ln2g_ref[...], ln2b_ref[...])
        h1 = jnp.dot(y_ln.astype(jnp.bfloat16), w1_ref[...],
                     preferred_element_type=jnp.float32) + b1_ref[...]
        h1 = h1 * jax.nn.sigmoid(h1)                                     # SiLU (f32)
        out = jnp.dot(h1.astype(jnp.bfloat16), w2_ref[...],
                      preferred_element_type=jnp.float32) + b2_ref[...] + y
        o_ref[0] = out.astype(o_ref.dtype)


def _pack_params(params, num_heads):
    """One-time head-major weight repacking in the wrapper (outside the kernel)."""
    C = params["ln1_g"].shape[-1]
    dh = C // num_heads
    scale = 1.0 / (dh ** 0.5)

    def head_major_w(w_t):                       # (C_in, C_out) -> (H, C_in, dh)
        return jnp.transpose(w_t.reshape(C, num_heads, dh), (1, 0, 2))

    def head_major_b(b):                         # (1, C) -> (H, 1, dh)
        return b.reshape(num_heads, 1, dh)

    bf16 = lambda a: a.astype(jnp.bfloat16)

    wq_h = head_major_w(params["wq_t"] * scale)  # fold 1/sqrt(dh) into Q
    bq_h = head_major_b(params["bq"] * scale)
    wk_h = head_major_w(params["wk_t"])
    bk_h = head_major_b(params["bk"])
    wv_h = head_major_w(params["wv_t"])
    bv_h = head_major_b(params["bv"])
    wo_h = params["wo_t"].reshape(num_heads, dh, C)   # rows grouped by head

    return (
        params["ln1_g"], params["ln1_b"],
        bf16(wq_h), bq_h, bf16(wk_h), bk_h, bf16(wv_h), bv_h,
        bf16(wo_h), params["bo"],
        params["ln2_g"], params["ln2_b"],
        bf16(params["w1_t"]), params["b1"],
        bf16(params["w2_t"]), params["b2"],
    )


def _choose_tile(S, max_tile):
    """Largest multiple-of-8 divisor of S that is <= max_tile (or full S)."""
    if S <= max_tile:
        return S
    for t in range(max_tile, 7, -1):
        if S % t == 0 and t % 8 == 0:
            return t
    return S  # no nice divisor: fall back to a single full-length tile


def _vmem_limit_bytes(Sq, Skv, C, dh):
    f32, bf16 = 4, 2
    db = 2  # double-buffered pipeline blocks
    tiles = db * (2 * Sq * C + Skv * C) * f32                 # x_q, out, x_kv blocks
    weights = db * ((3 * C * dh + dh * C + 2 * C * C) * bf16
                    + (3 * dh + 6 * C) * f32)
    scores = Sq * Skv * (f32 + bf16)                          # s (f32) + p (bf16)
    scratch = Sq * (dh * (bf16 + f32) + 2 * f32 + C * f32)
    work = 4 * (Sq + Skv) * C * f32                           # LN / matmul temporaries
    est = tiles + weights + scores + scratch + work
    return int(min(64 * 1024 * 1024, max(32 * 1024 * 1024, 2 * est)))


def self_attention_block(x_nchw, params, num_heads=4, max_seq_tile=512):
    """x_nchw: (B, C, H, W) float32. Returns (B, C, H, W)."""
    B, C, H, W = x_nchw.shape
    S = H * W
    if S > 64 * 64:
        # matches the module's max_size_threshold skip (identity)
        return x_nchw
    assert C % num_heads == 0, "channels must be divisible by num_heads"
    dh = C // num_heads

    Sq = _choose_tile(S, max_seq_tile)
    Skv = _choose_tile(S, max_seq_tile)
    nq, nk = S // Sq, S // Skv

    # Single wrapper-side (XLA) transpose instead of per-step in-kernel slab
    # transposes.
    x_sc = jnp.transpose(x_nchw.reshape(B, C, S), (0, 2, 1))   # (B, S, C)

    weight_args = _pack_params(params, num_heads)

    def const2(a):   # full 2-D weight, constant block index
        return pl.BlockSpec(a.shape, lambda b, qi, h, ki: (0, 0))

    def per_head(a):  # (H, ...) weight, head selected by the grid
        return pl.BlockSpec((1,) + a.shape[1:], lambda b, qi, h, ki: (h, 0, 0))

    (ln1g, ln1b, wq_h, bq_h, wk_h, bk_h, wv_h, bv_h,
     wo_h, bo, ln2g, ln2b, w1, b1, w2, b2) = weight_args

    in_specs = [
        pl.BlockSpec((1, Sq, C), lambda b, qi, h, ki: (b, qi, 0)),   # x q-tile
        pl.BlockSpec((1, Skv, C), lambda b, qi, h, ki: (b, ki, 0)),  # x kv-tile
        const2(ln1g), const2(ln1b),
        per_head(wq_h), per_head(bq_h),
        per_head(wk_h), per_head(bk_h),
        per_head(wv_h), per_head(bv_h),
        per_head(wo_h), const2(bo),
        const2(ln2g), const2(ln2b),
        const2(w1), const2(b1), const2(w2), const2(b2),
    ]
    out_spec = pl.BlockSpec((1, Sq, C), lambda b, qi, h, ki: (b, qi, 0))

    # NOTE: constant weight blocks could be single-buffered (pl.Buffered(1)) to
    # save VMEM on v7x; left at the default here for portability.
    scratch = [
        pltpu.VMEM((Sq, dh), jnp.bfloat16),   # q (per head)
        pltpu.VMEM((Sq, 1), jnp.float32),     # m
        pltpu.VMEM((Sq, 1), jnp.float32),     # l
        pltpu.VMEM((Sq, dh), jnp.float32),    # PV accumulator
        pltpu.VMEM((Sq, C), jnp.float32),     # out-proj summed over heads
    ]

    out_sc = pl.pallas_call(
        _attn_block_kernel,
        out_shape=jax.ShapeDtypeStruct((B, S, C), jnp.float32),
        grid_spec=pltpu.PrefetchScalarGridSpec(
            num_scalar_prefetch=0,
            grid=(B, nq, num_heads, nk),
            in_specs=in_specs,
            out_specs=out_spec,
            scratch_shapes=scratch),
        compiler_params=pltpu.CompilerParams(
            dimension_semantics=("parallel", "parallel", "arbitrary", "arbitrary"),
            vmem_limit_bytes=_vmem_limit_bytes(Sq, Skv, C, dh)),
    )(x_sc, x_sc, *weight_args)

    return jnp.transpose(out_sc, (0, 2, 1)).reshape(B, C, H, W)


def make_params(key, C):
    """Deterministic synthetic parameters matching nn.MultiheadAttention /
    LayerNorm / Linear shapes.  Linear-style weights stored pre-transposed
    (in, out) so the math is x @ W + b (PyTorch-logical, f32)."""
    ks = jax.random.split(key, 8)
    scale = 0.1

    def lin(k, shape):
        return scale * jax.random.normal(k, shape, jnp.float32)

    in_proj_w = lin(ks[0], (3 * C, C))          # PyTorch in_proj_weight layout
    in_proj_b = lin(ks[1], (3 * C,))
    wq, wk, wv = in_proj_w[:C], in_proj_w[C:2 * C], in_proj_w[2 * C:]
    bq, bk, bv = in_proj_b[:C], in_proj_b[C:2 * C], in_proj_b[2 * C:]
    wo = lin(ks[2], (C, C))
    bo = lin(ks[3], (C,))
    w1 = lin(ks[4], (C, C))
    b1 = lin(ks[5], (C,))
    w2 = lin(ks[6], (C, C))
    b2 = lin(ks[7], (C,))

    return dict(
        ln1_g=jnp.ones((1, C), jnp.float32), ln1_b=jnp.zeros((1, C), jnp.float32),
        wq_t=wq.T, wk_t=wk.T, wv_t=wv.T,
        bq=bq.reshape(1, C), bk=bk.reshape(1, C), bv=bv.reshape(1, C),
        wo_t=wo.T, bo=bo.reshape(1, C),
        ln2_g=jnp.ones((1, C), jnp.float32), ln2_b=jnp.zeros((1, C), jnp.float32),
        w1_t=w1.T, b1=b1.reshape(1, C),
        w2_t=w2.T, b2=b2.reshape(1, C),
    )


def reference(x_nchw, p, num_heads=4):
    """Pure-JAX f32 reference mirroring the PyTorch forward (for validation)."""
    B, C, H, W = x_nchw.shape
    S = H * W
    dh = C // num_heads
    x = jnp.transpose(x_nchw.reshape(B, C, S), (0, 2, 1))

    def ln(z, g, b):
        mu = jnp.mean(z, -1, keepdims=True)
        var = jnp.mean((z - mu) ** 2, -1, keepdims=True)
        return (z - mu) / jnp.sqrt(var + EPS) * g + b

    x_ln = ln(x, p["ln1_g"], p["ln1_b"])
    q = x_ln @ p["wq_t"] + p["bq"]
    k = x_ln @ p["wk_t"] + p["bk"]
    v = x_ln @ p["wv_t"] + p["bv"]
    qh = q.reshape(B, S, num_heads, dh).transpose(0, 2, 1, 3)
    kh = k.reshape(B, S, num_heads, dh).transpose(0, 2, 1, 3)
    vh = v.reshape(B, S, num_heads, dh).transpose(0, 2, 1, 3)
    s = jnp.einsum("bhqd,bhkd->bhqk", qh, kh) / jnp.sqrt(dh)
    pmat = jax.nn.softmax(s, axis=-1)
    o = jnp.einsum("bhqk,bhkd->bhqd", pmat, vh).transpose(0, 2, 1, 3).reshape(B, S, C)
    attn = o @ p["wo_t"] + p["bo"]
    y = attn + x
    y_ln = ln(y, p["ln2_g"], p["ln2_b"])
    h1 = y_ln @ p["w1_t"] + p["b1"]
    h1 = h1 * jax.nn.sigmoid(h1)
    out = h1 @ p["w2_t"] + p["b2"] + y
    return jnp.transpose(out, (0, 2, 1)).reshape(B, C, H, W)


# TODO(synk): the module's try/except RuntimeError -> identity fallback and the
# one-shot warning prints are host-side control flow with no kernel equivalent;
# only the S > 64*64 identity skip is reproduced in the wrapper.

if __name__ == "__main__":
    key = jax.random.PRNGKey(0)
    kx, kp, kx2 = jax.random.split(key, 3)

    # Test 1: batch=2, channels=32 (4 heads, dh=8), spatial 8x8 -> S=64
    # (single q/kv tile; well under the 64*64 threshold).
    B, C, H, W = 2, 32, 8, 8
    x = jax.random.normal(kx, (B, C, H, W), jnp.float32)
    params = make_params(kp, C)

    out = jax.block_until_ready(self_attention_block(x, params, num_heads=4))
    ref = jax.block_until_ready(reference(x, params, num_heads=4))
    assert out.shape == (B, C, H, W)
    assert jnp.allclose(out, ref, rtol=2e-2, atol=2e-2), "mismatch vs reference (test 1)"

    # Test 2: spatial 16x16 -> S=256 with max_seq_tile=128, exercising the
    # multi-tile online-softmax / head-accumulation path (grid 1x2x4x2).
    x2 = jax.random.normal(kx2, (1, C, 16, 16), jnp.float32)
    out2 = jax.block_until_ready(
        self_attention_block(x2, params, num_heads=4, max_seq_tile=128))
    ref2 = jax.block_until_ready(reference(x2, params, num_heads=4))
    assert jnp.allclose(out2, ref2, rtol=2e-2, atol=2e-2), "mismatch vs reference (test 2)"

    print("KERNEL_OK")
</pallas_src>

<mosaic_0001>
module attributes {stable_mosaic.version = 11 : i64} {
  func.func @_attn_block_kernel(%arg0: i32, %arg1: i32, %arg2: i32, %arg3: i32, %arg4: memref<1x64x32xf32, #tpu.memory_space<vmem>>, %arg5: memref<1x64x32xf32, #tpu.memory_space<vmem>>, %arg6: memref<1x32xf32, #tpu.memory_space<vmem>>, %arg7: memref<1x32xf32, #tpu.memory_space<vmem>>, %arg8: memref<1x32x8xbf16, #tpu.memory_space<vmem>>, %arg9: memref<1x1x8xf32, #tpu.memory_space<vmem>>, %arg10: memref<1x32x8xbf16, #tpu.memory_space<vmem>>, %arg11: memref<1x1x8xf32, #tpu.memory_space<vmem>>, %arg12: memref<1x32x8xbf16, #tpu.memory_space<vmem>>, %arg13: memref<1x1x8xf32, #tpu.memory_space<vmem>>, %arg14: memref<1x8x32xbf16, #tpu.memory_space<vmem>>, %arg15: memref<1x32xf32, #tpu.memory_space<vmem>>, %arg16: memref<1x32xf32, #tpu.memory_space<vmem>>, %arg17: memref<1x32xf32, #tpu.memory_space<vmem>>, %arg18: memref<32x32xbf16, #tpu.memory_space<vmem>>, %arg19: memref<1x32xf32, #tpu.memory_space<vmem>>, %arg20: memref<32x32xbf16, #tpu.memory_space<vmem>>, %arg21: memref<1x32xf32, #tpu.memory_space<vmem>>, %arg22: memref<1x64x32xf32, #tpu.memory_space<vmem>>, %arg23: memref<64x8xbf16, #tpu.memory_space<vmem>>, %arg24: memref<64x1xf32, #tpu.memory_space<vmem>>, %arg25: memref<64x1xf32, #tpu.memory_space<vmem>>, %arg26: memref<64x8xf32, #tpu.memory_space<vmem>>, %arg27: memref<64x32xf32, #tpu.memory_space<vmem>>) attributes {dimension_semantics = [#tpu.dimension_semantics<parallel>, #tpu.dimension_semantics<parallel>, #tpu.dimension_semantics<arbitrary>, #tpu.dimension_semantics<arbitrary>], iteration_bounds = array<i64: 2, 1, 4, 1>, scalar_prefetch = 0 : i64, scratch_operands = 5 : i64, tpu.core_type = #tpu.core_type<tc>, window_params = [{transform_indices = @transform_0, window_bounds = array<i64: 1, 64, 32>}, {transform_indices = @transform_1, window_bounds = array<i64: 1, 64, 32>}, {pipeline_mode = #tpu.pipeline_mode<synchronous>, transform_indices = @transform_2, window_bounds = array<i64: 1, 32>}, {pipeline_mode = #tpu.pipeline_mode<synchronous>, transform_indices = @transform_3, window_bounds = array<i64: 1, 32>}, {transform_indices = @transform_4, window_bounds = array<i64: 1, 32, 8>}, {transform_indices = @transform_5, window_bounds = array<i64: 1, 1, 8>}, {transform_indices = @transform_6, window_bounds = array<i64: 1, 32, 8>}, {transform_indices = @transform_7, window_bounds = array<i64: 1, 1, 8>}, {transform_indices = @transform_8, window_bounds = array<i64: 1, 32, 8>}, {transform_indices = @transform_9, window_bounds = array<i64: 1, 1, 8>}, {transform_indices = @transform_10, window_bounds = array<i64: 1, 8, 32>}, {pipeline_mode = #tpu.pipeline_mode<synchronous>, transform_indices = @transform_11, window_bounds = array<i64: 1, 32>}, {pipeline_mode = #tpu.pipeline_mode<synchronous>, transform_indices = @transform_12, window_bounds = array<i64: 1, 32>}, {pipeline_mode = #tpu.pipeline_mode<synchronous>, transform_indices = @transform_13, window_bounds = array<i64: 1, 32>}, {pipeline_mode = #tpu.pipeline_mode<synchronous>, transform_indices = @transform_14, window_bounds = array<i64: 32, 32>}, {pipeline_mode = #tpu.pipeline_mode<synchronous>, transform_indices = @transform_15, window_bounds = array<i64: 1, 32>}, {pipeline_mode = #tpu.pipeline_mode<synchronous>, transform_indices = @transform_16, window_bounds = array<i64: 32, 32>}, {pipeline_mode = #tpu.pipeline_mode<synchronous>, transform_indices = @transform_17, window_bounds = array<i64: 1, 32>}, {transform_indices = @transform_18, window_bounds = array<i64: 1, 64, 32>}]} {
    %c0_i32 = arith.constant 0 : i32
    %0 = arith.cmpi eq, %arg2, %c0_i32 : i32
    %c0_i32_0 = arith.constant 0 : i32
    %1 = arith.cmpi eq, %arg3, %c0_i32_0 : i32
    %2 = arith.andi %0, %1 : i1
    %3 = arith.extui %2 : i1 to i32
    %c0_i32_1 = arith.constant 0 : i32
    %4 = arith.cmpi ne, %3, %c0_i32_1 : i32
    scf.if %4 {
      %cst_50 = arith.constant 0.000000e+00 : f32
      %84 = vector.broadcast %cst_50 : f32 to vector<64x32xf32>
      %c0_51 = arith.constant 0 : index
      %c0_52 = arith.constant 0 : index
      %85 = vector.load %arg27[%c0_51, %c0_52] : memref<64x32xf32, #tpu.memory_space<vmem>>, vector<64x32xf32>
      tpu.vector_store %arg27[%c0_51, %c0_52], %84 {strides = array<i32>} : memref<64x32xf32, #tpu.memory_space<vmem>>, vector<64x32xf32>,
    } else {
    }
    %c0_i32_2 = arith.constant 0 : i32
    %5 = arith.cmpi eq, %arg3, %c0_i32_2 : i32
    %6 = arith.extui %5 : i1 to i32
    %c0_i32_3 = arith.constant 0 : i32
    %7 = arith.cmpi ne, %6, %c0_i32_3 : i32
    scf.if %7 {
      %c0_50 = arith.constant 0 : index
      %c0_51 = arith.constant 0 : index
      %c0_52 = arith.constant 0 : index
      %84 = vector.load %arg4[%c0_50, %c0_51, %c0_52] : memref<1x64x32xf32, #tpu.memory_space<vmem>>, vector<1x64x32xf32>
      %85 = vector.shape_cast %84 : vector<1x64x32xf32> to vector<64x32xf32>
      %c0_53 = arith.constant 0 : index
      %c0_54 = arith.constant 0 : index
      %86 = vector.load %arg6[%c0_53, %c0_54] : memref<1x32xf32, #tpu.memory_space<vmem>>, vector<1x32xf32>
      %c0_55 = arith.constant 0 : index
      %c0_56 = arith.constant 0 : index
      %87 = vector.load %arg7[%c0_55, %c0_56] : memref<1x32xf32, #tpu.memory_space<vmem>>, vector<1x32xf32>
      %cst_57 = arith.constant dense<0.000000e+00> : vector<64xf32>
      %88 = vector.multi_reduction <add>, %85, %cst_57 [1] : vector<64x32xf32> to vector<64xf32>
      %89 = vector.shape_cast %88 : vector<64xf32> to vector<64x1xf32>
      %cst_58 = arith.constant 3.200000e+01 : f32
      %90 = vector.broadcast %cst_58 : f32 to vector<64x1xf32>
      %91 = arith.divf %89, %90 : vector<64x1xf32>
      %92 = vector.broadcast %91 : vector<64x1xf32> to vector<64x32xf32>
      %93 = arith.subf %85, %92 : vector<64x32xf32>
      %94 = arith.mulf %93, %93 : vector<64x32xf32>
      %cst_59 = arith.constant dense<0.000000e+00> : vector<64xf32>
      %95 = vector.multi_reduction <add>, %94, %cst_59 [1] : vector<64x32xf32> to vector<64xf32>
      %96 = vector.shape_cast %95 : vector<64xf32> to vector<64x1xf32>
      %cst_60 = arith.constant 3.200000e+01 : f32
      %97 = vector.broadcast %cst_60 : f32 to vector<64x1xf32>
      %98 = arith.divf %96, %97 : vector<64x1xf32>
      %99 = vector.broadcast %91 : vector<64x1xf32> to vector<64x32xf32>
      %100 = arith.subf %85, %99 : vector<64x32xf32>
      %cst_61 = arith.constant 9.99999974E-6 : f32
      %101 = vector.broadcast %cst_61 : f32 to vector<64x1xf32>
      %102 = arith.addf %98, %101 : vector<64x1xf32>
      %103 = math.rsqrt %102 : vector<64x1xf32>
      %104 = vector.broadcast %103 : vector<64x1xf32> to vector<64x32xf32>
      %105 = arith.mulf %100, %104 : vector<64x32xf32>
      %106 = vector.broadcast %86 : vector<1x32xf32> to vector<64x32xf32>
      %107 = arith.mulf %105, %106 : vector<64x32xf32>
      %108 = vector.broadcast %87 : vector<1x32xf32> to vector<64x32xf32>
      %109 = arith.addf %107, %108 : vector<64x32xf32>
      %110 = arith.truncf %109 : vector<64x32xf32> to vector<64x32xbf16>
      %c0_62 = arith.constant 0 : index
      %c0_63 = arith.constant 0 : index
      %c0_64 = arith.constant 0 : index
      %111 = vector.load %arg8[%c0_62, %c0_63, %c0_64] : memref<1x32x8xbf16, #tpu.memory_space<vmem>>, vector<1x32x8xbf16>
      %112 = vector.shape_cast %111 : vector<1x32x8xbf16> to vector<32x8xbf16>
      %cst_65 = arith.constant dense<0.000000e+00> : vector<64x8xf32>
      %113 = tpu.matmul %110, %112, %cst_65 {dimension_numbers = #tpu.dot_dimension_numbers<[1], [0], [0], [1], [0, 0, 1, 1], [], []>} : vector<64x32xbf16>, vector<32x8xbf16>, vector<64x8xf32> -> vector<64x8xf32>
      %c0_66 = arith.constant 0 : index
      %c0_67 = arith.constant 0 : index
      %c0_68 = arith.constant 0 : index
      %114 = vector.load %arg9[%c0_66, %c0_67, %c0_68] : memref<1x1x8xf32, #tpu.memory_space<vmem>>, vector<1x1x8xf32>
      %115 = vector.shape_cast %114 : vector<1x1x8xf32> to vector<1x8xf32>
      %116 = vector.broadcast %115 : vector<1x8xf32> to vector<64x8xf32>
      %117 = arith.addf %113, %116 : vector<64x8xf32>
      %118 = arith.truncf %117 : vector<64x8xf32> to vector<64x8xbf16>
      %c0_69 = arith.constant 0 : index
      %c0_70 = arith.constant 0 : index
      %119 = vector.load %arg23[%c0_69, %c0_70] : memref<64x8xbf16, #tpu.memory_space<vmem>>, vector<64x8xbf16>
      tpu.vector_store %arg23[%c0_69, %c0_70], %118 {strides = array<i32>} : memref<64x8xbf16, #tpu.memory_space<vmem>>, vector<64x8xbf16>,
      %cst_71 = arith.constant 0xFF800000 : f32
      %120 = vector.broadcast %cst_71 : f32 to vector<64x1xf32>
      %c0_72 = arith.constant 0 : index
      %c0_73 = arith.constant 0 : index
      %121 = vector.load %arg24[%c0_72, %c0_73] : memref<64x1xf32, #tpu.memory_space<vmem>>, vector<64x1xf32>
      tpu.vector_store %arg24[%c0_72, %c0_73], %120 {strides = array<i32>} : memref<64x1xf32, #tpu.memory_space<vmem>>, vector<64x1xf32>,
      %cst_74 = arith.constant 0.000000e+00 : f32
      %122 = vector.broadcast %cst_74 : f32 to vector<64x1xf32>
      %c0_75 = arith.constant 0 : index
      %c0_76 = arith.constant 0 : index
      %123 = vector.load %arg25[%c0_75, %c0_76] : memref<64x1xf32, #tpu.memory_space<vmem>>, vector<64x1xf32>
      tpu.vector_store %arg25[%c0_75, %c0_76], %122 {strides = array<i32>} : memref<64x1xf32, #tpu.memory_space<vmem>>, vector<64x1xf32>,
      %cst_77 = arith.constant 0.000000e+00 : f32
      %124 = vector.broadcast %cst_77 : f32 to vector<64x8xf32>
      %c0_78 = arith.constant 0 : index
      %c0_79 = arith.constant 0 : index
      %125 = vector.load %arg26[%c0_78, %c0_79] : memref<64x8xf32, #tpu.memory_space<vmem>>, vector<64x8xf32>
      tpu.vector_store %arg26[%c0_78, %c0_79], %124 {strides = array<i32>} : memref<64x8xf32, #tpu.memory_space<vmem>>, vector<64x8xf32>,
    } else {
    }
    %c0 = arith.constant 0 : index
    %c0_4 = arith.constant 0 : index
    %c0_5 = arith.constant 0 : index
    %8 = vector.load %arg5[%c0, %c0_4, %c0_5] : memref<1x64x32xf32, #tpu.memory_space<vmem>>, vector<1x64x32xf32>
    %9 = vector.shape_cast %8 : vector<1x64x32xf32> to vector<64x32xf32>
    %c0_6 = arith.constant 0 : index
    %c0_7 = arith.constant 0 : index
    %10 = vector.load %arg6[%c0_6, %c0_7] : memref<1x32xf32, #tpu.memory_space<vmem>>, vector<1x32xf32>
    %c0_8 = arith.constant 0 : index
    %c0_9 = arith.constant 0 : index
    %11 = vector.load %arg7[%c0_8, %c0_9] : memref<1x32xf32, #tpu.memory_space<vmem>>, vector<1x32xf32>
    %cst = arith.constant dense<0.000000e+00> : vector<64xf32>
    %12 = vector.multi_reduction <add>, %9, %cst [1] : vector<64x32xf32> to vector<64xf32>
    %13 = vector.shape_cast %12 : vector<64xf32> to vector<64x1xf32>
    %cst_10 = arith.constant 3.200000e+01 : f32
    %14 = vector.broadcast %cst_10 : f32 to vector<64x1xf32>
    %15 = arith.divf %13, %14 : vector<64x1xf32>
    %16 = vector.broadcast %15 : vector<64x1xf32> to vector<64x32xf32>
    %17 = arith.subf %9, %16 : vector<64x32xf32>
    %18 = arith.mulf %17, %17 : vector<64x32xf32>
    %cst_11 = arith.constant dense<0.000000e+00> : vector<64xf32>
    %19 = vector.multi_reduction <add>, %18, %cst_11 [1] : vector<64x32xf32> to vector<64xf32>
    %20 = vector.shape_cast %19 : vector<64xf32> to vector<64x1xf32>
    %cst_12 = arith.constant 3.200000e+01 : f32
    %21 = vector.broadcast %cst_12 : f32 to vector<64x1xf32>
    %22 = arith.divf %20, %21 : vector<64x1xf32>
    %23 = vector.broadcast %15 : vector<64x1xf32> to vector<64x32xf32>
    %24 = arith.subf %9, %23 : vector<64x32xf32>
    %cst_13 = arith.constant 9.99999974E-6 : f32
    %25 = vector.broadcast %cst_13 : f32 to vector<64x1xf32>
    %26 = arith.addf %22, %25 : vector<64x1xf32>
    %27 = math.rsqrt %26 : vector<64x1xf32>
    %28 = vector.broadcast %27 : vector<64x1xf32> to vector<64x32xf32>
    %29 = arith.mulf %24, %28 : vector<64x32xf32>
    %30 = vector.broadcast %10 : vector<1x32xf32> to vector<64x32xf32>
    %31 = arith.mulf %29, %30 : vector<64x32xf32>
    %32 = vector.broadcast %11 : vector<1x32xf32> to vector<64x32xf32>
    %33 = arith.addf %31, %32 : vector<64x32xf32>
    %34 = arith.truncf %33 : vector<64x32xf32> to vector<64x32xbf16>
    %c0_14 = arith.constant 0 : index
    %c0_15 = arith.constant 0 : index
    %c0_16 = arith.constant 0 : index
    %35 = vector.load %arg10[%c0_14, %c0_15, %c0_16] : memref<1x32x8xbf16, #tpu.memory_space<vmem>>, vector<1x32x8xbf16>
    %36 = vector.shape_cast %35 : vector<1x32x8xbf16> to vector<32x8xbf16>
    %cst_17 = arith.constant dense<0.000000e+00> : vector<64x8xf32>
    %37 = tpu.matmul %34, %36, %cst_17 {dimension_numbers = #tpu.dot_dimension_numbers<[1], [0], [0], [1], [0, 0, 1, 1], [], []>} : vector<64x32xbf16>, vector<32x8xbf16>, vector<64x8xf32> -> vector<64x8xf32>
    %c0_18 = arith.constant 0 : index
    %c0_19 = arith.constant 0 : index
    %c0_20 = arith.constant 0 : index
    %38 = vector.load %arg11[%c0_18, %c0_19, %c0_20] : memref<1x1x8xf32, #tpu.memory_space<vmem>>, vector<1x1x8xf32>
    %39 = vector.shape_cast %38 : vector<1x1x8xf32> to vector<1x8xf32>
    %40 = vector.broadcast %39 : vector<1x8xf32> to vector<64x8xf32>
    %41 = arith.addf %37, %40 : vector<64x8xf32>
    %42 = arith.truncf %41 : vector<64x8xf32> to vector<64x8xbf16>
    %c0_21 = arith.constant 0 : index
    %c0_22 = arith.constant 0 : index
    %c0_23 = arith.constant 0 : index
    %43 = vector.load %arg12[%c0_21, %c0_22, %c0_23] : memref<1x32x8xbf16, #tpu.memory_space<vmem>>, vector<1x32x8xbf16>
    %44 = vector.shape_cast %43 : vector<1x32x8xbf16> to vector<32x8xbf16>
    %cst_24 = arith.constant dense<0.000000e+00> : vector<64x8xf32>
    %45 = tpu.matmul %34, %44, %cst_24 {dimension_numbers = #tpu.dot_dimension_numbers<[1], [0], [0], [1], [0, 0, 1, 1], [], []>} : vector<64x32xbf16>, vector<32x8xbf16>, vector<64x8xf32> -> vector<64x8xf32>
    %c0_25 = arith.constant 0 : index
    %c0_26 = arith.constant 0 : index
    %c0_27 = arith.constant 0 : index
    %46 = vector.load %arg13[%c0_25, %c0_26, %c0_27] : memref<1x1x8xf32, #tpu.memory_space<vmem>>, vector<1x1x8xf32>
    %47 = vector.shape_cast %46 : vector<1x1x8xf32> to vector<1x8xf32>
    %48 = vector.broadcast %47 : vector<1x8xf32> to vector<64x8xf32>
    %49 = arith.addf %45, %48 : vector<64x8xf32>
    %50 = arith.truncf %49 : vector<64x8xf32> to vector<64x8xbf16>
    %c0_28 = arith.constant 0 : index
    %c0_29 = arith.constant 0 : index
    %51 = vector.load %arg23[%c0_28, %c0_29] : memref<64x8xbf16, #tpu.memory_space<vmem>>, vector<64x8xbf16>
    %cst_30 = arith.constant dense<0.000000e+00> : vector<64x64xf32>
    %52 = tpu.matmul %51, %42, %cst_30 {dimension_numbers = #tpu.dot_dimension_numbers<[1], [1], [0], [0], [0, 0, 1, 0], [], []>} : vector<64x8xbf16>, vector<64x8xbf16>, vector<64x64xf32> -> vector<64x64xf32>
    %c0_31 = arith.constant 0 : index
    %c0_32 = arith.constant 0 : index
    %53 = vector.load %arg24[%c0_31, %c0_32] : memref<64x1xf32, #tpu.memory_space<vmem>>, vector<64x1xf32>
    %cst_33 = arith.constant dense<0xFF800000> : vector<64xf32>
    %54 = vector.multi_reduction <maximumf>, %52, %cst_33 [1] : vector<64x64xf32> to vector<64xf32>
    %55 = vector.shape_cast %54 : vector<64xf32> to vector<64x1xf32>
    %56 = arith.maximumf %53, %55 : vector<64x1xf32>
    %57 = arith.subf %53, %56 : vector<64x1xf32>
    %58 = math.exp %57 : vector<64x1xf32>
    %59 = vector.broadcast %56 : vector<64x1xf32> to vector<64x64xf32>
    %60 = arith.subf %52, %59 : vector<64x64xf32>
    %61 = math.exp %60 : vector<64x64xf32>
    %c0_34 = arith.constant 0 : index
    %c0_35 = arith.constant 0 : index
    %62 = vector.load %arg25[%c0_34, %c0_35] : memref<64x1xf32, #tpu.memory_space<vmem>>, vector<64x1xf32>
    %63 = arith.mulf %58, %62 : vector<64x1xf32>
    %cst_36 = arith.constant dense<0.000000e+00> : vector<64xf32>
    %64 = vector.multi_reduction <add>, %61, %cst_36 [1] : vector<64x64xf32> to vector<64xf32>
    %65 = vector.shape_cast %64 : vector<64xf32> to vector<64x1xf32>
    %66 = arith.addf %63, %65 : vector<64x1xf32>
    %c0_37 = arith.constant 0 : index
    %c0_38 = arith.constant 0 : index
    %67 = vector.load %arg25[%c0_37, %c0_38] : memref<64x1xf32, #tpu.memory_space<vmem>>, vector<64x1xf32>
    tpu.vector_store %arg25[%c0_37, %c0_38], %66 {strides = array<i32>} : memref<64x1xf32, #tpu.memory_space<vmem>>, vector<64x1xf32>,
    %c0_39 = arith.constant 0 : index
    %c0_40 = arith.constant 0 : index
    %68 = vector.load %arg26[%c0_39, %c0_40] : memref<64x8xf32, #tpu.memory_space<vmem>>, vector<64x8xf32>
    %69 = vector.broadcast %58 : vector<64x1xf32> to vector<64x8xf32>
    %70 = arith.mulf %69, %68 : vector<64x8xf32>
    %71 = arith.truncf %61 : vector<64x64xf32> to vector<64x64xbf16>
    %cst_41 = arith.constant dense<0.000000e+00> : vector<64x8xf32>
    %72 = tpu.matmul %71, %50, %cst_41 {dimension_numbers = #tpu.dot_dimension_numbers<[1], [0], [0], [1], [0, 0, 1, 1], [], []>} : vector<64x64xbf16>, vector<64x8xbf16>, vector<64x8xf32> -> vector<64x8xf32>
    %73 = arith.addf %70, %72 : vector<64x8xf32>
    %c0_42 = arith.constant 0 : index
    %c0_43 = arith.constant 0 : index
    %74 = vector.load %arg26[%c0_42, %c0_43] : memref<64x8xf32, #tpu.memory_space<vmem>>, vector<64x8xf32>
    tpu.vector_store %arg26[%c0_42, %c0_43], %73 {strides = array<i32>} : memref<64x8xf32, #tpu.memory_space<vmem>>, vector<64x8xf32>,
    %c0_44 = arith.constant 0 : index
    %c0_45 = arith.constant 0 : index
    %75 = vector.load %arg24[%c0_44, %c0_45] : memref<64x1xf32, #tpu.memory_space<vmem>>, vector<64x1xf32>
    tpu.vector_store %arg24[%c0_44, %c0_45], %56 {strides = array<i32>} : memref<64x1xf32, #tpu.memory_space<vmem>>, vector<64x1xf32>,
    %c0_i32_46 = arith.constant 0 : i32
    %76 = arith.cmpi eq, %arg3, %c0_i32_46 : i32
    %77 = arith.extui %76 : i1 to i32
    %c0_i32_47 = arith.constant 0 : i32
    %78 = arith.cmpi ne, %77, %c0_i32_47 : i32
    scf.if %78 {
      %c0_50 = arith.constant 0 : index
      %c0_51 = arith.constant 0 : index
      %84 = vector.load %arg26[%c0_50, %c0_51] : memref<64x8xf32, #tpu.memory_space<vmem>>, vector<64x8xf32>
      %c0_52 = arith.constant 0 : index
      %c0_53 = arith.constant 0 : index
      %85 = vector.load %arg25[%c0_52, %c0_53] : memref<64x1xf32, #tpu.memory_space<vmem>>, vector<64x1xf32>
      %86 = tpu.reciprocal %85 {approx = true} : vector<64x1xf32> -> vector<64x1xf32>
      %87 = vector.broadcast %86 : vector<64x1xf32> to vector<64x8xf32>
      %88 = arith.mulf %84, %87 : vector<64x8xf32>
      %c0_54 = arith.constant 0 : index
      %c0_55 = arith.constant 0 : index
      %89 = vector.load %arg27[%c0_54, %c0_55] : memref<64x32xf32, #tpu.memory_space<vmem>>, vector<64x32xf32>
      %90 = arith.truncf %88 : vector<64x8xf32> to vector<64x8xbf16>
      %c0_56 = arith.constant 0 : index
      %c0_57 = arith.constant 0 : index
      %c0_58 = arith.constant 0 : index
      %91 = vector.load %arg14[%c0_56, %c0_57, %c0_58] : memref<1x8x32xbf16, #tpu.memory_space<vmem>>, vector<1x8x32xbf16>
      %92 = vector.shape_cast %91 : vector<1x8x32xbf16> to vector<8x32xbf16>
      %cst_59 = arith.constant dense<0.000000e+00> : vector<64x32xf32>
      %93 = tpu.matmul %90, %92, %cst_59 {dimension_numbers = #tpu.dot_dimension_numbers<[1], [0], [0], [1], [0, 0, 1, 1], [], []>} : vector<64x8xbf16>, vector<8x32xbf16>, vector<64x32xf32> -> vector<64x32xf32>
      %94 = arith.addf %89, %93 : vector<64x32xf32>
      %c0_60 = arith.constant 0 : index
      %c0_61 = arith.constant 0 : index
      %95 = vector.load %arg27[%c0_60, %c0_61] : memref<64x32xf32, #tpu.memory_space<vmem>>, vector<64x32xf32>
      tpu.vector_store %arg27[%c0_60, %c0_61], %94 {strides = array<i32>} : memref<64x32xf32, #tpu.memory_space<vmem>>, vector<64x32xf32>,
    } else {
    }
    %c3_i32 = arith.constant 3 : i32
    %79 = arith.cmpi eq, %arg2, %c3_i32 : i32
    %c0_i32_48 = arith.constant 0 : i32
    %80 = arith.cmpi eq, %arg3, %c0_i32_48 : i32
    %81 = arith.andi %79, %80 : i1
    %82 = arith.extui %81 : i1 to i32
    %c0_i32_49 = arith.constant 0 : i32
    %83 = arith.cmpi ne, %82, %c0_i32_49 : i32
    scf.if %83 {
      %c0_50 = arith.constant 0 : index
      %c0_51 = arith.constant 0 : index
      %84 = vector.load %arg27[%c0_50, %c0_51] : memref<64x32xf32, #tpu.memory_space<vmem>>, vector<64x32xf32>
      %c0_52 = arith.constant 0 : index
      %c0_53 = arith.constant 0 : index
      %85 = vector.load %arg15[%c0_52, %c0_53] : memref<1x32xf32, #tpu.memory_space<vmem>>, vector<1x32xf32>
      %86 = vector.broadcast %85 : vector<1x32xf32> to vector<64x32xf32>
      %87 = arith.addf %84, %86 : vector<64x32xf32>
      %c0_54 = arith.constant 0 : index
      %c0_55 = arith.constant 0 : index
      %c0_56 = arith.constant 0 : index
      %88 = vector.load %arg4[%c0_54, %c0_55, %c0_56] : memref<1x64x32xf32, #tpu.memory_space<vmem>>, vector<1x64x32xf32>
      %89 = vector.shape_cast %88 : vector<1x64x32xf32> to vector<64x32xf32>
      %90 = arith.addf %87, %89 : vector<64x32xf32>
      %c0_57 = arith.constant 0 : index
      %c0_58 = arith.constant 0 : index
      %91 = vector.load %arg16[%c0_57, %c0_58] : memref<1x32xf32, #tpu.memory_space<vmem>>, vector<1x32xf32>
      %c0_59 = arith.constant 0 : index
      %c0_60 = arith.constant 0 : index
      %92 = vector.load %arg17[%c0_59, %c0_60] : memref<1x32xf32, #tpu.memory_space<vmem>>, vector<1x32xf32>
      %cst_61 = arith.constant dense<0.000000e+00> : vector<64xf32>
      %93 = vector.multi_reduction <add>, %90, %cst_61 [1] : vector<64x32xf32> to vector<64xf32>
      %94 = vector.shape_cast %93 : vector<64xf32> to vector<64x1xf32>
      %cst_62 = arith.constant 3.200000e+01 : f32
      %95 = vector.broadcast %cst_62 : f32 to vector<64x1xf32>
      %96 = arith.divf %94, %95 : vector<64x1xf32>
      %97 = vector.broadcast %96 : vector<64x1xf32> to vector<64x32xf32>
      %98 = arith.subf %90, %97 : vector<64x32xf32>
      %99 = arith.mulf %98, %98 : vector<64x32xf32>
      %cst_63 = arith.constant dense<0.000000e+00> : vector<64xf32>
      %100 = vector.multi_reduction <add>, %99, %cst_63 [1] : vector<64x32xf32> to vector<64xf32>
      %101 = vector.shape_cast %100 : vector<64xf32> to vector<64x1xf32>
      %cst_64 = arith.constant 3.200000e+01 : f32
      %102 = vector.broadcast %cst_64 : f32 to vector<64x1xf32>
      %103 = arith.divf %101, %102 : vector<64x1xf32>
      %104 = vector.broadcast %96 : vector<64x1xf32> to vector<64x32xf32>
      %105 = arith.subf %90, %104 : vector<64x32xf32>
      %cst_65 = arith.constant 9.99999974E-6 : f32
      %106 = vector.broadcast %cst_65 : f32 to vector<64x1xf32>
      %107 = arith.addf %103, %106 : vector<64x1xf32>
      %108 = math.rsqrt %107 : vector<64x1xf32>
      %109 = vector.broadcast %108 : vector<64x1xf32> to vector<64x32xf32>
      %110 = arith.mulf %105, %109 : vector<64x32xf32>
      %111 = vector.broadcast %91 : vector<1x32xf32> to vector<64x32xf32>
      %112 = arith.mulf %110, %111 : vector<64x32xf32>
      %113 = vector.broadcast %92 : vector<1x32xf32> to vector<64x32xf32>
      %114 = arith.addf %112, %113 : vector<64x32xf32>
      %115 = arith.truncf %114 : vector<64x32xf32> to vector<64x32xbf16>
      %c0_66 = arith.constant 0 : index
      %c0_67 = arith.constant 0 : index
      %116 = vector.load %arg18[%c0_66, %c0_67] : memref<32x32xbf16, #tpu.memory_space<vmem>>, vector<32x32xbf16>
      %cst_68 = arith.constant dense<0.000000e+00> : vector<64x32xf32>
      %117 = tpu.matmul %115, %116, %cst_68 {dimension_numbers = #tpu.dot_dimension_numbers<[1], [0], [0], [1], [0, 0, 1, 1], [], []>} : vector<64x32xbf16>, vector<32x32xbf16>, vector<64x32xf32> -> vector<64x32xf32>
      %c0_69 = arith.constant 0 : index
      %c0_70 = arith.constant 0 : index
      %118 = vector.load %arg19[%c0_69, %c0_70] : memref<1x32xf32, #tpu.memory_space<vmem>>, vector<1x32xf32>
      %119 = vector.broadcast %118 : vector<1x32xf32> to vector<64x32xf32>
      %120 = arith.addf %117, %119 : vector<64x32xf32>
      %121 = arith.negf %120 : vector<64x32xf32>
      %122 = math.exp %121 : vector<64x32xf32>
      %cst_71 = arith.constant 1.000000e+00 : f32
      %123 = vector.broadcast %cst_71 : f32 to vector<64x32xf32>
      %124 = arith.addf %123, %122 : vector<64x32xf32>
      %125 = arith.divf %123, %124 : vector<64x32xf32>
      %126 = arith.mulf %120, %125 : vector<64x32xf32>
      %127 = arith.truncf %126 : vector<64x32xf32> to vector<64x32xbf16>
      %c0_72 = arith.constant 0 : index
      %c0_73 = arith.constant 0 : index
      %128 = vector.load %arg20[%c0_72, %c0_73] : memref<32x32xbf16, #tpu.memory_space<vmem>>, vector<32x32xbf16>
      %cst_74 = arith.constant dense<0.000000e+00> : vector<64x32xf32>
      %129 = tpu.matmul %127, %128, %cst_74 {dimension_numbers = #tpu.dot_dimension_numbers<[1], [0], [0], [1], [0, 0, 1, 1], [], []>} : vector<64x32xbf16>, vector<32x32xbf16>, vector<64x32xf32> -> vector<64x32xf32>
      %c0_75 = arith.constant 0 : index
      %c0_76 = arith.constant 0 : index
      %130 = vector.load %arg21[%c0_75, %c0_76] : memref<1x32xf32, #tpu.memory_space<vmem>>, vector<1x32xf32>
      %131 = vector.broadcast %130 : vector<1x32xf32> to vector<64x32xf32>
      %132 = arith.addf %129, %131 : vector<64x32xf32>
      %133 = arith.addf %132, %90 : vector<64x32xf32>
      %c0_77 = arith.constant 0 : index
      %c0_78 = arith.constant 0 : index
      %c0_79 = arith.constant 0 : index
      %134 = vector.load %arg22[%c0_77, %c0_78, %c0_79] : memref<1x64x32xf32, #tpu.memory_space<vmem>>, vector<1x64x32xf32>
      %135 = vector.shape_cast %134 : vector<1x64x32xf32> to vector<64x32xf32>
      %136 = vector.shape_cast %133 : vector<64x32xf32> to vector<1x64x32xf32>
      tpu.vector_store %arg22[%c0_77, %c0_78, %c0_79], %136 {strides = array<i32>} : memref<1x64x32xf32, #tpu.memory_space<vmem>>, vector<1x64x32xf32>,
    } else {
    }
    return
  }
  func.func @transform_0(%arg0: i32, %arg1: i32, %arg2: i32, %arg3: i32) -> (i32, i32, i32) {
    %c0_i32 = arith.constant 0 : i32
    %c0_i32_0 = arith.constant 0 : i32
    return %arg0, %arg1, %c0_i32 : i32, i32, i32
  }
  func.func @transform_1(%arg0: i32, %arg1: i32, %arg2: i32, %arg3: i32) -> (i32, i32, i32) {
    %c0_i32 = arith.constant 0 : i32
    %c0_i32_0 = arith.constant 0 : i32
    return %arg0, %arg3, %c0_i32 : i32, i32, i32
  }
  func.func @transform_2(%arg0: i32, %arg1: i32, %arg2: i32, %arg3: i32) -> (i32, i32) {
    %c0_i32 = arith.constant 0 : i32
    %c0_i32_0 = arith.constant 0 : i32
    %c0_i32_1 = arith.constant 0 : i32
    return %c0_i32, %c0_i32_0 : i32, i32
  }
  func.func @transform_3(%arg0: i32, %arg1: i32, %arg2: i32, %arg3: i32) -> (i32, i32) {
    %c0_i32 = arith.constant 0 : i32
    %c0_i32_0 = arith.constant 0 : i32
    %c0_i32_1 = arith.constant 0 : i32
    return %c0_i32, %c0_i32_0 : i32, i32
  }
  func.func @transform_4(%arg0: i32, %arg1: i32, %arg2: i32, %arg3: i32) -> (i32, i32, i32) {
    %c0_i32 = arith.constant 0 : i32
    %c0_i32_0 = arith.constant 0 : i32
    %c0_i32_1 = arith.constant 0 : i32
    return %arg2, %c0_i32, %c0_i32_0 : i32, i32, i32
  }
  func.func @transform_5(%arg0: i32, %arg1: i32, %arg2: i32, %arg3: i32) -> (i32, i32, i32) {
    %c0_i32 = arith.constant 0 : i32
    %c0_i32_0 = arith.constant 0 : i32
    %c0_i32_1 = arith.constant 0 : i32
    return %arg2, %c0_i32, %c0_i32_0 : i32, i32, i32
  }
  func.func @transform_6(%arg0: i32, %arg1: i32, %arg2: i32, %arg3: i32) -> (i32, i32, i32) {
    %c0_i32 = arith.constant 0 : i32
    %c0_i32_0 = arith.constant 0 : i32
    %c0_i32_1 = arith.constant 0 : i32
    return %arg2, %c0_i32, %c0_i32_0 : i32, i32, i32
  }
  func.func @transform_7(%arg0: i32, %arg1: i32, %arg2: i32, %arg3: i32) -> (i32, i32, i32) {
    %c0_i32 = arith.constant 0 : i32
    %c0_i32_0 = arith.constant 0 : i32
    %c0_i32_1 = arith.constant 0 : i32
    return %arg2, %c0_i32, %c0_i32_0 : i32, i32, i32
  }
  func.func @transform_8(%arg0: i32, %arg1: i32, %arg2: i32, %arg3: i32) -> (i32, i32, i32) {
    %c0_i32 = arith.constant 0 : i32
    %c0_i32_0 = arith.constant 0 : i32
    %c0_i32_1 = arith.constant 0 : i32
    return %arg2, %c0_i32, %c0_i32_0 : i32, i32, i32
  }
  func.func @transform_9(%arg0: i32, %arg1: i32, %arg2: i32, %arg3: i32) -> (i32, i32, i32) {
    %c0_i32 = arith.constant 0 : i32
    %c0_i32_0 = arith.constant 0 : i32
    %c0_i32_1 = arith.constant 0 : i32
    return %arg2, %c0_i32, %c0_i32_0 : i32, i32, i32
  }
  func.func @transform_10(%arg0: i32, %arg1: i32, %arg2: i32, %arg3: i32) -> (i32, i32, i32) {
    %c0_i32 = arith.constant 0 : i32
    %c0_i32_0 = arith.constant 0 : i32
    %c0_i32_1 = arith.constant 0 : i32
    return %arg2, %c0_i32, %c0_i32_0 : i32, i32, i32
  }
  func.func @transform_11(%arg0: i32, %arg1: i32, %arg2: i32, %arg3: i32) -> (i32, i32) {
    %c0_i32 = arith.constant 0 : i32
    %c0_i32_0 = arith.constant 0 : i32
    %c0_i32_1 = arith.constant 0 : i32
    return %c0_i32, %c0_i32_0 : i32, i32
  }
  func.func @transform_12(%arg0: i32, %arg1: i32, %arg2: i32, %arg3: i32) -> (i32, i32) {
    %c0_i32 = arith.constant 0 : i32
    %c0_i32_0 = arith.constant 0 : i32
    %c0_i32_1 = arith.constant 0 : i32
    return %c0_i32, %c0_i32_0 : i32, i32
  }
  func.func @transform_13(%arg0: i32, %arg1: i32, %arg2: i32, %arg3: i32) -> (i32, i32) {
    %c0_i32 = arith.constant 0 : i32
    %c0_i32_0 = arith.constant 0 : i32
    %c0_i32_1 = arith.constant 0 : i32
    return %c0_i32, %c0_i32_0 : i32, i32
  }
  func.func @transform_14(%arg0: i32, %arg1: i32, %arg2: i32, %arg3: i32) -> (i32, i32) {
    %c0_i32 = arith.constant 0 : i32
    %c0_i32_0 = arith.constant 0 : i32
    %c0_i32_1 = arith.constant 0 : i32
    return %c0_i32, %c0_i32_0 : i32, i32
  }
  func.func @transform_15(%arg0: i32, %arg1: i32, %arg2: i32, %arg3: i32) -> (i32, i32) {
    %c0_i32 = arith.constant 0 : i32
    %c0_i32_0 = arith.constant 0 : i32
    %c0_i32_1 = arith.constant 0 : i32
    return %c0_i32, %c0_i32_0 : i32, i32
  }
  func.func @transform_16(%arg0: i32, %arg1: i32, %arg2: i32, %arg3: i32) -> (i32, i32) {
    %c0_i32 = arith.constant 0 : i32
    %c0_i32_0 = arith.constant 0 : i32
    %c0_i32_1 = arith.constant 0 : i32
    return %c0_i32, %c0_i32_0 : i32, i32
  }
  func.func @transform_17(%arg0: i32, %arg1: i32, %arg2: i32, %arg3: i32) -> (i32, i32) {
    %c0_i32 = arith.constant 0 : i32
    %c0_i32_0 = arith.constant 0 : i32
    %c0_i32_1 = arith.constant 0 : i32
    return %c0_i32, %c0_i32_0 : i32, i32
  }
  func.func @transform_18(%arg0: i32, %arg1: i32, %arg2: i32, %arg3: i32) -> (i32, i32, i32) {
    %c0_i32 = arith.constant 0 : i32
    %c0_i32_0 = arith.constant 0 : i32
    return %arg0, %arg1, %c0_i32 : i32, i32, i32
  }
}

</mosaic_0001>

<llo_original>
// kernel: tpu_custom_call.1
$region0: #{tpu_custom_call.1}
  #allocation0 [shape = 'u32[]', space=smem, size = 0x4, offset = 0x4, fixed_abs, tag = 'smem constant byte address 0x4 - core index']
  #allocation1 [shape = 'u32[144,128]{1,0:T(1,128)}', space=vmem, size = 0x12000, scoped, tag = 'internal scratch']
  #allocation2 [shape = 'bf16[64,8]{1,0:T(8,128)(2,1)}', space=vmem, size = 0x4000, scoped, tag = 'scratch operand']
  #allocation3 [shape = 'f32[64,1]{1,0:T(8,128)}', space=vmem, size = 0x8000, scoped, tag = 'scratch operand']
  #allocation4 [shape = 'f32[64,1]{1,0:T(8,128)}', space=vmem, size = 0x8000, scoped, tag = 'scratch operand']
  #allocation5 [shape = 'f32[64,8]{1,0:T(8,128)}', space=vmem, size = 0x8000, scoped, tag = 'scratch operand']
  #allocation6 [shape = 'f32[64,32]{1,0:T(8,128)}', space=vmem, size = 0x8000, scoped, tag = 'scratch operand']
  %s0 = inlined_call_operand.vmem [shape: f32[2,64,32], index: 0, kind: input, shape index: {}]
  %s1 = inlined_call_operand.vmem [shape: f32[2,64,32], index: 1, kind: input, shape index: {}]
  %s2 = inlined_call_operand.vmem [shape: f32[1,32], index: 2, kind: input, shape index: {}]
  %s3 = inlined_call_operand.vmem [shape: f32[1,32], index: 3, kind: input, shape index: {}]
  %s4 = inlined_call_operand.vmem [shape: bf16[4,32,8], index: 4, kind: input, shape index: {}]
  %s5 = inlined_call_operand.vmem [shape: f32[4,1,8], index: 5, kind: input, shape index: {}]
  %s6 = inlined_call_operand.vmem [shape: bf16[4,32,8], index: 6, kind: input, shape index: {}]
  %s7 = inlined_call_operand.vmem [shape: f32[4,1,8], index: 7, kind: input, shape index: {}]
  %s8 = inlined_call_operand.vmem [shape: bf16[4,32,8], index: 8, kind: input, shape index: {}]
  %s9 = inlined_call_operand.vmem [shape: f32[4,1,8], index: 9, kind: input, shape index: {}]
  %s10 = inlined_call_operand.vmem [shape: bf16[4,8,32], index: 10, kind: input, shape index: {}]
  %s11 = inlined_call_operand.vmem [shape: f32[1,32], index: 11, kind: input, shape index: {}]
  %s12 = inlined_call_operand.vmem [shape: f32[1,32], index: 12, kind: input, shape index: {}]
  %s13 = inlined_call_operand.vmem [shape: f32[1,32], index: 13, kind: input, shape index: {}]
  %s14 = inlined_call_operand.vmem [shape: bf16[32,32], index: 14, kind: input, shape index: {}]
  %s15 = inlined_call_operand.vmem [shape: f32[1,32], index: 15, kind: input, shape index: {}]
  %s16 = inlined_call_operand.vmem [shape: bf16[32,32], index: 16, kind: input, shape index: {}]
  %s17 = inlined_call_operand.vmem [shape: f32[1,32], index: 17, kind: input, shape index: {}]
  %s18 = inlined_call_operand.vmem [shape: f32[2,64,32], index: 18, kind: output, shape index: {}]
  %s19 = sld [smem:[#allocation0]]
  $region121: #{tpu_custom_call.1} parent=0
    _
  %s21 = ssub.s32 1, %s19
  %s22 = scalar_select 0, %s21, %s19
  loop: start=0, step=1, limit=10
  $region2: #{tpu_custom_call.1} parent=0 // loop_pre_header
    _
  $region3: #{tpu_custom_call.1} parent=0 // loop_header
    %s24 = sphi 0, %s28
    %p25 = scmp.ge.s32.totalorder %s24, 10
    %s31 = sphi 0, %s57
    %s32 = sphi 0, %s53
    %s33 = sphi 0, %s49
    %s34 = sphi 0, %s45
    %s35 = sphi 0, %s31
    %s36 = sphi 0, %s32
    %s37 = sphi 0, %s33
    %s38 = sphi 0, %s34
    %s39 = sphi 0, %s35
    %s40 = sphi 0, %s36
    %s41 = sphi 0, %s37
    %s42 = sphi 0, %s38
    %s62 = sphi 0, %s64
    %s65 = sphi 0, %s62
    %s66 = sphi 0, %s65
    %s82 = sphi 0, %s66
    %s90 = sphi 0, %s92
    %s93 = sphi 0, %s90
    %s94 = sphi 0, %s93
    %s110 = sphi 0, %s94
    %s114 = sphi 0, %s114
    %s116 = sphi 0, %s114
    %s117 = sphi 0, %s116
    %s131 = sphi 0, %s117
    %s135 = sphi 0, %s135
    %s137 = sphi 0, %s135
    %s138 = sphi 0, %s137
    %s152 = sphi 0, %s138
    %s158 = sphi 0, %s160
    %s161 = sphi 0, %s158
    %s162 = sphi 0, %s161
    %s178 = sphi 0, %s162
    %s184 = sphi 0, %s186
    %s187 = sphi 0, %s184
    %s188 = sphi 0, %s187
    %s204 = sphi 0, %s188
    %s210 = sphi 0, %s212
    %s213 = sphi 0, %s210
    %s214 = sphi 0, %s213
    %s230 = sphi 0, %s214
    %s236 = sphi 0, %s238
    %s239 = sphi 0, %s236
    %s240 = sphi 0, %s239
    %s256 = sphi 0, %s240
    %s262 = sphi 0, %s264
    %s265 = sphi 0, %s262
    %s266 = sphi 0, %s265
    %s282 = sphi 0, %s266
    %s288 = sphi 0, %s290
    %s291 = sphi 0, %s288
    %s292 = sphi 0, %s291
    %s308 = sphi 0, %s292
    %s314 = sphi 0, %s316
    %s317 = sphi 0, %s314
    %s318 = sphi 0, %s317
    %s334 = sphi 0, %s318
    %s338 = sphi 0, %s338
    %s340 = sphi 0, %s338
    %s341 = sphi 0, %s340
    %s355 = sphi 0, %s341
    %s359 = sphi 0, %s359
    %s361 = sphi 0, %s359
    %s362 = sphi 0, %s361
    %s376 = sphi 0, %s362
    %s380 = sphi 0, %s380
    %s382 = sphi 0, %s380
    %s383 = sphi 0, %s382
    %s397 = sphi 0, %s383
    %s401 = sphi 0, %s401
    %s403 = sphi 0, %s401
    %s404 = sphi 0, %s403
    %s418 = sphi 0, %s404
    %s422 = sphi 0, %s422
    %s424 = sphi 0, %s422
    %s425 = sphi 0, %s424
    %s439 = sphi 0, %s425
    %s443 = sphi 0, %s443
    %s445 = sphi 0, %s443
    %s446 = sphi 0, %s445
    %s460 = sphi 0, %s446
    %s464 = sphi 0, %s464
    %s466 = sphi 0, %s464
    %s467 = sphi 0, %s466
    %s481 = sphi 0, %s467
    %s489 = sphi 0, %s491
    %s492 = sphi 0, %s489
    %s493 = sphi 0, %s492
    %s509 = sphi 0, %s493
  $region4: #{tpu_custom_call.1} parent=0 // loop_header_branch
    %27 = sbr.rel (%p25) target = $region8
  $region5: #{tpu_custom_call.1} parent=0 // loop_body
    %s29 = ssub.s32 %s24, 1
    %s30 = ssub.s32 %s24, 2
    %s43 = sadd.s32 1, %s34
    %p44 = scmp.ge.s32.totalorder %s43, 1
    %s45 = scalar_select %p44, 0, %s43
    %s46 = sadd.s32 1, %s33
    %s47 = scalar_select %p44, %s46, %s33
    %p48 = scmp.ge.s32.totalorder %s47, 4
    %s49 = scalar_select %p48, 0, %s47
    %s50 = sadd.s32 1, %s32
    %s51 = scalar_select %p48, %s50, %s32
    %p52 = scmp.ge.s32.totalorder %s51, 1
    %s53 = scalar_select %p52, 0, %s51
    %s54 = sadd.s32 1, %s31
    %s55 = scalar_select %p52, %s54, %s31
    %p56 = scmp.ge.s32.totalorder %s55, 2
    %s57 = scalar_select %p56, 0, %s55
    %s58 = ssub.s32 %s31, %s57
    %s59 = ssub.s32 %s32, %s53
    %s60 = sor.u32 %s58, %s59
    %p61 = scmp.eq.s32.totalorder %s60, 0
    %s63 = sadd.s32 %s62, 1
    %s64 = scalar_select %p61, %s62, %s63
    %p67 = pneg %p61
    %p68 = scmp.eq.s32.totalorder %s24, 7
    %p69 = por %p67, %p68
    %p70 = scmp.ne.s32.totalorder %s62, %s65
    %p71 = scmp.eq.s32.totalorder %s24, 0
    %p72 = por %p70, %p71
    %p73 = scmp.ne.s32.totalorder %s62, %s65
    %p74 = scmp.eq.s32.totalorder %s29, 7
    %p75 = por %p73, %p74
    %p76 = scmp.ne.s32.totalorder %s65, %s66
    %p77 = scmp.eq.s32.totalorder %s29, 0
    %p78 = por %p76, %p77
    %p79 = scmp.ne.s32.totalorder %s65, %s66
    %p80 = scmp.eq.s32.totalorder %s30, 7
    %p81 = por %p79, %p80
    %p83 = scmp.ne.s32.totalorder %s66, %s82
    %p84 = scmp.eq.s32.totalorder %s30, 0
    %p85 = por %p83, %p84
    %s86 = ssub.s32 %s31, %s57
    %s87 = ssub.s32 %s34, %s45
    %s88 = sor.u32 %s86, %s87
    %p89 = scmp.eq.s32.totalorder %s88, 0
    %s91 = sadd.s32 %s90, 1
    %s92 = scalar_select %p89, %s90, %s91
    %p95 = pneg %p89
    %p96 = scmp.eq.s32.totalorder %s24, 7
    %p97 = por %p95, %p96
    %p98 = scmp.ne.s32.totalorder %s90, %s93
    %p99 = scmp.eq.s32.totalorder %s24, 0
    %p100 = por %p98, %p99
    %p101 = scmp.ne.s32.totalorder %s90, %s93
    %p102 = scmp.eq.s32.totalorder %s29, 7
    %p103 = por %p101, %p102
    %p104 = scmp.ne.s32.totalorder %s93, %s94
    %p105 = scmp.eq.s32.totalorder %s29, 0
    %p106 = por %p104, %p105
    %p107 = scmp.ne.s32.totalorder %s93, %s94
    %p108 = scmp.eq.s32.totalorder %s30, 7
    %p109 = por %p107, %p108
    %p111 = scmp.ne.s32.totalorder %s94, %s110
    %p112 = scmp.eq.s32.totalorder %s30, 0
    %p113 = por %p111, %p112
    %s115 = sadd.s32 %s114, 1
    %p118 = scmp.eq.s32.totalorder %s24, 7
    %p119 = scmp.ne.s32.totalorder %s114, %s116
    %p120 = scmp.eq.s32.totalorder %s24, 0
    %p121 = por %p119, %p120
    %p122 = scmp.ne.s32.totalorder %s114, %s116
    %p123 = scmp.eq.s32.totalorder %s29, 7
    %p124 = por %p122, %p123
    %p125 = scmp.ne.s32.totalorder %s116, %s117
    %p126 = scmp.eq.s32.totalorder %s29, 0
    %p127 = por %p125, %p126
    %p128 = scmp.ne.s32.totalorder %s116, %s117
    %p129 = scmp.eq.s32.totalorder %s30, 7
    %p130 = por %p128, %p129
    %p132 = scmp.ne.s32.totalorder %s117, %s131
    %p133 = scmp.eq.s32.totalorder %s30, 0
    %p134 = por %p132, %p133
    %s136 = sadd.s32 %s135, 1
    %p139 = scmp.eq.s32.totalorder %s24, 7
    %p140 = scmp.ne.s32.totalorder %s135, %s137
    %p141 = scmp.eq.s32.totalorder %s24, 0
    %p142 = por %p140, %p141
    %p143 = scmp.ne.s32.totalorder %s135, %s137
    %p144 = scmp.eq.s32.totalorder %s29, 7
    %p145 = por %p143, %p144
    %p146 = scmp.ne.s32.totalorder %s137, %s138
    %p147 = scmp.eq.s32.totalorder %s29, 0
    %p148 = por %p146, %p147
    %p149 = scmp.ne.s32.totalorder %s137, %s138
    %p150 = scmp.eq.s32.totalorder %s30, 7
    %p151 = por %p149, %p150
    %p153 = scmp.ne.s32.totalorder %s138, %s152
    %p154 = scmp.eq.s32.totalorder %s30, 0
    %p155 = por %p153, %p154
    %s156 = ssub.s32 %s33, %s49
    %p157 = scmp.eq.s32.totalorder %s156, 0
    %s159 = sadd.s32 %s158, 1
    %s160 = scalar_select %p157, %s158, %s159
    %p163 = pneg %p157
    %p164 = scmp.eq.s32.totalorder %s24, 7
    %p165 = por %p163, %p164
    %p166 = scmp.ne.s32.totalorder %s158, %s161
    %p167 = scmp.eq.s32.totalorder %s24, 0
    %p168 = por %p166, %p167
    %p169 = scmp.ne.s32.totalorder %s158, %s161
    %p170 = scmp.eq.s32.totalorder %s29, 7
    %p171 = por %p169, %p170
    %p172 = scmp.ne.s32.totalorder %s161, %s162
    %p173 = scmp.eq.s32.totalorder %s29, 0
    %p174 = por %p172, %p173
    %p175 = scmp.ne.s32.totalorder %s161, %s162
    %p176 = scmp.eq.s32.totalorder %s30, 7
    %p177 = por %p175, %p176
    %p179 = scmp.ne.s32.totalorder %s162, %s178
    %p180 = scmp.eq.s32.totalorder %s30, 0
    %p181 = por %p179, %p180
    %s182 = ssub.s32 %s33, %s49
    %p183 = scmp.eq.s32.totalorder %s182, 0
    %s185 = sadd.s32 %s184, 1
    %s186 = scalar_select %p183, %s184, %s185
    %p189 = pneg %p183
    %p190 = scmp.eq.s32.totalorder %s24, 7
    %p191 = por %p189, %p190
    %p192 = scmp.ne.s32.totalorder %s184, %s187
    %p193 = scmp.eq.s32.totalorder %s24, 0
    %p194 = por %p192, %p193
    %p195 = scmp.ne.s32.totalorder %s184, %s187
    %p196 = scmp.eq.s32.totalorder %s29, 7
    %p197 = por %p195, %p196
    %p198 = scmp.ne.s32.totalorder %s187, %s188
    %p199 = scmp.eq.s32.totalorder %s29, 0
    %p200 = por %p198, %p199
    %p201 = scmp.ne.s32.totalorder %s187, %s188
    %p202 = scmp.eq.s32.totalorder %s30, 7
    %p203 = por %p201, %p202
    %p205 = scmp.ne.s32.totalorder %s188, %s204
    %p206 = scmp.eq.s32.totalorder %s30, 0
    %p207 = por %p205, %p206
    %s208 = ssub.s32 %s33, %s49
    %p209 = scmp.eq.s32.totalorder %s208, 0
    %s211 = sadd.s32 %s210, 1
    %s212 = scalar_select %p209, %s210, %s211
    %p215 = pneg %p209
    %p216 = scmp.eq.s32.totalorder %s24, 7
    %p217 = por %p215, %p216
    %p218 = scmp.ne.s32.totalorder %s210, %s213
    %p219 = scmp.eq.s32.totalorder %s24, 0
    %p220 = por %p218, %p219
    %p221 = scmp.ne.s32.totalorder %s210, %s213
    %p222 = scmp.eq.s32.totalorder %s29, 7
    %p223 = por %p221, %p222
    %p224 = scmp.ne.s32.totalorder %s213, %s214
    %p225 = scmp.eq.s32.totalorder %s29, 0
    %p226 = por %p224, %p225
    %p227 = scmp.ne.s32.totalorder %s213, %s214
    %p228 = scmp.eq.s32.totalorder %s30, 7
    %p229 = por %p227, %p228
    %p231 = scmp.ne.s32.totalorder %s214, %s230
    %p232 = scmp.eq.s32.totalorder %s30, 0
    %p233 = por %p231, %p232
    %s234 = ssub.s32 %s33, %s49
    %p235 = scmp.eq.s32.totalorder %s234, 0
    %s237 = sadd.s32 %s236, 1
    %s238 = scalar_select %p235, %s236, %s237
    %p241 = pneg %p235
    %p242 = scmp.eq.s32.totalorder %s24, 7
    %p243 = por %p241, %p242
    %p244 = scmp.ne.s32.totalorder %s236, %s239
    %p245 = scmp.eq.s32.totalorder %s24, 0
    %p246 = por %p244, %p245
    %p247 = scmp.ne.s32.totalorder %s236, %s239
    %p248 = scmp.eq.s32.totalorder %s29, 7
    %p249 = por %p247, %p248
    %p250 = scmp.ne.s32.totalorder %s239, %s240
    %p251 = scmp.eq.s32.totalorder %s29, 0
    %p252 = por %p250, %p251
    %p253 = scmp.ne.s32.totalorder %s239, %s240
    %p254 = scmp.eq.s32.totalorder %s30, 7
    %p255 = por %p253, %p254
    %p257 = scmp.ne.s32.totalorder %s240, %s256
    %p258 = scmp.eq.s32.totalorder %s30, 0
    %p259 = por %p257, %p258
    %s260 = ssub.s32 %s33, %s49
    %p261 = scmp.eq.s32.totalorder %s260, 0
    %s263 = sadd.s32 %s262, 1
    %s264 = scalar_select %p261, %s262, %s263
    %p267 = pneg %p261
    %p268 = scmp.eq.s32.totalorder %s24, 7
    %p269 = por %p267, %p268
    %p270 = scmp.ne.s32.totalorder %s262, %s265
    %p271 = scmp.eq.s32.totalorder %s24, 0
    %p272 = por %p270, %p271
    %p273 = scmp.ne.s32.totalorder %s262, %s265
    %p274 = scmp.eq.s32.totalorder %s29, 7
    %p275 = por %p273, %p274
    %p276 = scmp.ne.s32.totalorder %s265, %s266
    %p277 = scmp.eq.s32.totalorder %s29, 0
    %p278 = por %p276, %p277
    %p279 = scmp.ne.s32.totalorder %s265, %s266
    %p280 = scmp.eq.s32.totalorder %s30, 7
    %p281 = por %p279, %p280
    %p283 = scmp.ne.s32.totalorder %s266, %s282
    %p284 = scmp.eq.s32.totalorder %s30, 0
    %p285 = por %p283, %p284
    %s286 = ssub.s32 %s33, %s49
    %p287 = scmp.eq.s32.totalorder %s286, 0
    %s289 = sadd.s32 %s288, 1
    %s290 = scalar_select %p287, %s288, %s289
    %p293 = pneg %p287
    %p294 = scmp.eq.s32.totalorder %s24, 7
    %p295 = por %p293, %p294
    %p296 = scmp.ne.s32.totalorder %s288, %s291
    %p297 = scmp.eq.s32.totalorder %s24, 0
    %p298 = por %p296, %p297
    %p299 = scmp.ne.s32.totalorder %s288, %s291
    %p300 = scmp.eq.s32.totalorder %s29, 7
    %p301 = por %p299, %p300
    %p302 = scmp.ne.s32.totalorder %s291, %s292
    %p303 = scmp.eq.s32.totalorder %s29, 0
    %p304 = por %p302, %p303
    %p305 = scmp.ne.s32.totalorder %s291, %s292
    %p306 = scmp.eq.s32.totalorder %s30, 7
    %p307 = por %p305, %p306
    %p309 = scmp.ne.s32.totalorder %s292, %s308
    %p310 = scmp.eq.s32.totalorder %s30, 0
    %p311 = por %p309, %p310
    %s312 = ssub.s32 %s33, %s49
    %p313 = scmp.eq.s32.totalorder %s312, 0
    %s315 = sadd.s32 %s314, 1
    %s316 = scalar_select %p313, %s314, %s315
    %p319 = pneg %p313
    %p320 = scmp.eq.s32.totalorder %s24, 7
    %p321 = por %p319, %p320
    %p322 = scmp.ne.s32.totalorder %s314, %s317
    %p323 = scmp.eq.s32.totalorder %s24, 0
    %p324 = por %p322, %p323
    %p325 = scmp.ne.s32.totalorder %s314, %s317
    %p326 = scmp.eq.s32.totalorder %s29, 7
    %p327 = por %p325, %p326
    %p328 = scmp.ne.s32.totalorder %s317, %s318
    %p329 = scmp.eq.s32.totalorder %s29, 0
    %p330 = por %p328, %p329
    %p331 = scmp.ne.s32.totalorder %s317, %s318
    %p332 = scmp.eq.s32.totalorder %s30, 7
    %p333 = por %p331, %p332
    %p335 = scmp.ne.s32.totalorder %s318, %s334
    %p336 = scmp.eq.s32.totalorder %s30, 0
    %p337 = por %p335, %p336
    %s339 = sadd.s32 %s338, 1
    %p342 = scmp.eq.s32.totalorder %s24, 7
    %p343 = scmp.ne.s32.totalorder %s338, %s340
    %p344 = scmp.eq.s32.totalorder %s24, 0
    %p345 = por %p343, %p344
    %p346 = scmp.ne.s32.totalorder %s338, %s340
    %p347 = scmp.eq.s32.totalorder %s29, 7
    %p348 = por %p346, %p347
    %p349 = scmp.ne.s32.totalorder %s340, %s341
    %p350 = scmp.eq.s32.totalorder %s29, 0
    %p351 = por %p349, %p350
    %p352 = scmp.ne.s32.totalorder %s340, %s341
    %p353 = scmp.eq.s32.totalorder %s30, 7
    %p354 = por %p352, %p353
    %p356 = scmp.ne.s32.totalorder %s341, %s355
    %p357 = scmp.eq.s32.totalorder %s30, 0
    %p358 = por %p356, %p357
    %s360 = sadd.s32 %s359, 1
    %p363 = scmp.eq.s32.totalorder %s24, 7
    %p364 = scmp.ne.s32.totalorder %s359, %s361
    %p365 = scmp.eq.s32.totalorder %s24, 0
    %p366 = por %p364, %p365
    %p367 = scmp.ne.s32.totalorder %s359, %s361
    %p368 = scmp.eq.s32.totalorder %s29, 7
    %p369 = por %p367, %p368
    %p370 = scmp.ne.s32.totalorder %s361, %s362
    %p371 = scmp.eq.s32.totalorder %s29, 0
    %p372 = por %p370, %p371
    %p373 = scmp.ne.s32.totalorder %s361, %s362
    %p374 = scmp.eq.s32.totalorder %s30, 7
    %p375 = por %p373, %p374
    %p377 = scmp.ne.s32.totalorder %s362, %s376
    %p378 = scmp.eq.s32.totalorder %s30, 0
    %p379 = por %p377, %p378
    %s381 = sadd.s32 %s380, 1
    %p384 = scmp.eq.s32.totalorder %s24, 7
    %p385 = scmp.ne.s32.totalorder %s380, %s382
    %p386 = scmp.eq.s32.totalorder %s24, 0
    %p387 = por %p385, %p386
    %p388 = scmp.ne.s32.totalorder %s380, %s382
    %p389 = scmp.eq.s32.totalorder %s29, 7
    %p390 = por %p388, %p389
    %p391 = scmp.ne.s32.totalorder %s382, %s383
    %p392 = scmp.eq.s32.totalorder %s29, 0
    %p393 = por %p391, %p392
    %p394 = scmp.ne.s32.totalorder %s382, %s383
    %p395 = scmp.eq.s32.totalorder %s30, 7
    %p396 = por %p394, %p395
    %p398 = scmp.ne.s32.totalorder %s383, %s397
    %p399 = scmp.eq.s32.totalorder %s30, 0
    %p400 = por %p398, %p399
    %s402 = sadd.s32 %s401, 1
    %p405 = scmp.eq.s32.totalorder %s24, 7
    %p406 = scmp.ne.s32.totalorder %s401, %s403
    %p407 = scmp.eq.s32.totalorder %s24, 0
    %p408 = por %p406, %p407
    %p409 = scmp.ne.s32.totalorder %s401, %s403
    %p410 = scmp.eq.s32.totalorder %s29, 7
    %p411 = por %p409, %p410
    %p412 = scmp.ne.s32.totalorder %s403, %s404
    %p413 = scmp.eq.s32.totalorder %s29, 0
    %p414 = por %p412, %p413
    %p415 = scmp.ne.s32.totalorder %s403, %s404
    %p416 = scmp.eq.s32.totalorder %s30, 7
    %p417 = por %p415, %p416
    %p419 = scmp.ne.s32.totalorder %s404, %s418
    %p420 = scmp.eq.s32.totalorder %s30, 0
    %p421 = por %p419, %p420
    %s423 = sadd.s32 %s422, 1
    %p426 = scmp.eq.s32.totalorder %s24, 7
    %p427 = scmp.ne.s32.totalorder %s422, %s424
    %p428 = scmp.eq.s32.totalorder %s24, 0
    %p429 = por %p427, %p428
    %p430 = scmp.ne.s32.totalorder %s422, %s424
    %p431 = scmp.eq.s32.totalorder %s29, 7
    %p432 = por %p430, %p431
    %p433 = scmp.ne.s32.totalorder %s424, %s425
    %p434 = scmp.eq.s32.totalorder %s29, 0
    %p435 = por %p433, %p434
    %p436 = scmp.ne.s32.totalorder %s424, %s425
    %p437 = scmp.eq.s32.totalorder %s30, 7
    %p438 = por %p436, %p437
    %p440 = scmp.ne.s32.totalorder %s425, %s439
    %p441 = scmp.eq.s32.totalorder %s30, 0
    %p442 = por %p440, %p441
    %s444 = sadd.s32 %s443, 1
    %p447 = scmp.eq.s32.totalorder %s24, 7
    %p448 = scmp.ne.s32.totalorder %s443, %s445
    %p449 = scmp.eq.s32.totalorder %s24, 0
    %p450 = por %p448, %p449
    %p451 = scmp.ne.s32.totalorder %s443, %s445
    %p452 = scmp.eq.s32.totalorder %s29, 7
    %p453 = por %p451, %p452
    %p454 = scmp.ne.s32.totalorder %s445, %s446
    %p455 = scmp.eq.s32.totalorder %s29, 0
    %p456 = por %p454, %p455
    %p457 = scmp.ne.s32.totalorder %s445, %s446
    %p458 = scmp.eq.s32.totalorder %s30, 7
    %p459 = por %p457, %p458
    %p461 = scmp.ne.s32.totalorder %s446, %s460
    %p462 = scmp.eq.s32.totalorder %s30, 0
    %p463 = por %p461, %p462
    %s465 = sadd.s32 %s464, 1
    %p468 = scmp.eq.s32.totalorder %s24, 7
    %p469 = scmp.ne.s32.totalorder %s464, %s466
    %p470 = scmp.eq.s32.totalorder %s24, 0
    %p471 = por %p469, %p470
    %p472 = scmp.ne.s32.totalorder %s464, %s466
    %p473 = scmp.eq.s32.totalorder %s29, 7
    %p474 = por %p472, %p473
    %p475 = scmp.ne.s32.totalorder %s466, %s467
    %p476 = scmp.eq.s32.totalorder %s29, 0
    %p477 = por %p475, %p476
    %p478 = scmp.ne.s32.totalorder %s466, %s467
    %p479 = scmp.eq.s32.totalorder %s30, 7
    %p480 = por %p478, %p479
    %p482 = scmp.ne.s32.totalorder %s467, %s481
    %p483 = scmp.eq.s32.totalorder %s30, 0
    %p484 = por %p482, %p483
    %s485 = ssub.s32 %s31, %s57
    %s486 = ssub.s32 %s32, %s53
    %s487 = sor.u32 %s485, %s486
    %p488 = scmp.eq.s32.totalorder %s487, 0
    %s490 = sadd.s32 %s489, 1
    %s491 = scalar_select %p488, %s489, %s490
    %p494 = pneg %p488
    %p495 = scmp.eq.s32.totalorder %s24, 7
    %p496 = por %p494, %p495
    %p497 = scmp.ne.s32.totalorder %s489, %s492
    %p498 = scmp.eq.s32.totalorder %s24, 0
    %p499 = por %p497, %p498
    %p500 = scmp.ne.s32.totalorder %s489, %s492
    %p501 = scmp.eq.s32.totalorder %s29, 7
    %p502 = por %p500, %p501
    %p503 = scmp.ne.s32.totalorder %s492, %s493
    %p504 = scmp.eq.s32.totalorder %s29, 0
    %p505 = por %p503, %p504
    %p506 = scmp.ne.s32.totalorder %s492, %s493
    %p507 = scmp.eq.s32.totalorder %s30, 7
    %p508 = por %p506, %p507
    %p510 = scmp.ne.s32.totalorder %s493, %s509
    %p511 = scmp.eq.s32.totalorder %s30, 0
    %p512 = por %p510, %p511
    %p513 = scmp.le.s32.totalorder 1, %s24
    %p514 = scmp.lt.s32.totalorder %s24, 9
    %p515 = pnand %p513, %p514
    %p516 = pneg %p515
    // Predicated region
    $region9: #{tpu_custom_call.1} parent=5 // pred_check
      _
    $region10: #{tpu_custom_call.1} parent=5 // pred_check_branch
      %518 = sbr.rel (%p515) target = $region12
    $region11: #{tpu_custom_call.1} parent=5 // pred_region
      %s519 = ssub.s32 %s24, 1
      // Predicated region
      $region13: #{tpu_custom_call.1} parent=11 // pred_check
        %p520 = pneg %p127
      $region14: #{tpu_custom_call.1} parent=11 // pred_check_branch
        %522 = sbr.rel (%p520) target = $region16
      $region15: #{tpu_custom_call.1} parent=11 // pred_region
        _
      $region16: #{tpu_custom_call.1} parent=11 // pred_fallthru
        _
      // Predicated region
      $region17: #{tpu_custom_call.1} parent=11 // pred_check
        %p523 = pneg %p148
      $region18: #{tpu_custom_call.1} parent=11 // pred_check_branch
        %525 = sbr.rel (%p523) target = $region20
      $region19: #{tpu_custom_call.1} parent=11 // pred_region
        _
      $region20: #{tpu_custom_call.1} parent=11 // pred_fallthru
        _
      // Predicated region
      $region21: #{tpu_custom_call.1} parent=11 // pred_check
        %p526 = pneg %p351
      $region22: #{tpu_custom_call.1} parent=11 // pred_check_branch
        %528 = sbr.rel (%p526) target = $region24
      $region23: #{tpu_custom_call.1} parent=11 // pred_region
        _
      $region24: #{tpu_custom_call.1} parent=11 // pred_fallthru
        _
      // Predicated region
      $region25: #{tpu_custom_call.1} parent=11 // pred_check
        %p529 = pneg %p372
      $region26: #{tpu_custom_call.1} parent=11 // pred_check_branch
        %531 = sbr.rel (%p529) target = $region28
      $region27: #{tpu_custom_call.1} parent=11 // pred_region
        _
      $region28: #{tpu_custom_call.1} parent=11 // pred_fallthru
        _
      // Predicated region
      $region29: #{tpu_custom_call.1} parent=11 // pred_check
        %p532 = pneg %p393
      $region30: #{tpu_custom_call.1} parent=11 // pred_check_branch
        %534 = sbr.rel (%p532) target = $region32
      $region31: #{tpu_custom_call.1} parent=11 // pred_region
        _
      $region32: #{tpu_custom_call.1} parent=11 // pred_fallthru
        _
      // Predicated region
      $region33: #{tpu_custom_call.1} parent=11 // pred_check
        %p535 = pneg %p414
      $region34: #{tpu_custom_call.1} parent=11 // pred_check_branch
        %537 = sbr.rel (%p535) target = $region36
      $region35: #{tpu_custom_call.1} parent=11 // pred_region
        _
      $region36: #{tpu_custom_call.1} parent=11 // pred_fallthru
        _
      // Predicated region
      $region37: #{tpu_custom_call.1} parent=11 // pred_check
        %p538 = pneg %p435
      $region38: #{tpu_custom_call.1} parent=11 // pred_check_branch
        %540 = sbr.rel (%p538) target = $region40
      $region39: #{tpu_custom_call.1} parent=11 // pred_region
        _
      $region40: #{tpu_custom_call.1} parent=11 // pred_fallthru
        _
      // Predicated region
      $region41: #{tpu_custom_call.1} parent=11 // pred_check
        %p541 = pneg %p456
      $region42: #{tpu_custom_call.1} parent=11 // pred_check_branch
        %543 = sbr.rel (%p541) target = $region44
      $region43: #{tpu_custom_call.1} parent=11 // pred_region
        _
      $region44: #{tpu_custom_call.1} parent=11 // pred_fallthru
        _
      // Predicated region
      $region45: #{tpu_custom_call.1} parent=11 // pred_check
        %p544 = pneg %p477
      $region46: #{tpu_custom_call.1} parent=11 // pred_check_branch
        %546 = sbr.rel (%p544) target = $region48
      $region47: #{tpu_custom_call.1} parent=11 // pred_region
        _
      $region48: #{tpu_custom_call.1} parent=11 // pred_fallthru
        _
    $region12: #{tpu_custom_call.1} parent=5 // pred_fallthru
      _
    %p547 = scmp.lt.s32.totalorder %s24, 8
    // Predicated region
    $region49: #{tpu_custom_call.1} parent=5 // pred_check
      %p548 = pneg %p547
    $region50: #{tpu_custom_call.1} parent=5 // pred_check_branch
      %550 = sbr.rel (%p548) target = $region52
    $region51: #{tpu_custom_call.1} parent=5 // pred_region
      // Predicated region
      $region53: #{tpu_custom_call.1} parent=51 // pred_check
        %p551 = pneg %p72
      $region54: #{tpu_custom_call.1} parent=51 // pred_check_branch
        %553 = sbr.rel (%p551) target = $region56
      $region55: #{tpu_custom_call.1} parent=51 // pred_region
        %s554 = smul.u32 8, %s32
        %p555 = scmp.lt.s32.totalorder %s31, 1
        %s556 = scalar_select %p555, %s31, 1
        %p557 = scmp.lt.s32.totalorder %s554, 7
        %s558 = scalar_select %p557, %s554, 7
        %s559 = smul.addr %s556, 8
        %s560 = sadd.s32 %s558, %s559
        %s561 = smul.addr %s560, 8
        %s562 = scalar_lea.vmem %s0, %s561
        %s563 = smul.u32 8, %s32
      $region56: #{tpu_custom_call.1} parent=51 // pred_fallthru
        _
      // Predicated region
      $region57: #{tpu_custom_call.1} parent=51 // pred_check
        %p564 = pneg %p100
      $region58: #{tpu_custom_call.1} parent=51 // pred_check_branch
        %566 = sbr.rel (%p564) target = $region60
      $region59: #{tpu_custom_call.1} parent=51 // pred_region
        %s567 = smul.u32 8, %s34
        %p568 = scmp.lt.s32.totalorder %s31, 1
        %s569 = scalar_select %p568, %s31, 1
        %p570 = scmp.lt.s32.totalorder %s567, 7
        %s571 = scalar_select %p570, %s567, 7
        %s572 = smul.addr %s569, 8
        %s573 = sadd.s32 %s571, %s572
        %s574 = smul.addr %s573, 8
        %s575 = scalar_lea.vmem %s1, %s574
        %s576 = smul.u32 8, %s34
      $region60: #{tpu_custom_call.1} parent=51 // pred_fallthru
        _
      // Predicated region
      $region61: #{tpu_custom_call.1} parent=51 // pred_check
        %p577 = pneg %p168
      $region62: #{tpu_custom_call.1} parent=51 // pred_check_branch
        %579 = sbr.rel (%p577) target = $region64
      $region63: #{tpu_custom_call.1} parent=51 // pred_region
        %p580 = scmp.lt.s32.totalorder %s33, 3
        %s581 = scalar_select %p580, %s33, 3
        %s582 = smul.addr %s581, 4
        %s583 = smul.addr %s582, 4
        %s584 = scalar_lea.vmem %s4, %s583
      $region64: #{tpu_custom_call.1} parent=51 // pred_fallthru
        _
      // Predicated region
      $region65: #{tpu_custom_call.1} parent=51 // pred_check
        %p585 = pneg %p194
      $region66: #{tpu_custom_call.1} parent=51 // pred_check_branch
        %587 = sbr.rel (%p585) target = $region68
      $region67: #{tpu_custom_call.1} parent=51 // pred_region
        %p588 = scmp.lt.s32.totalorder %s33, 3
        %s589 = scalar_select %p588, %s33, 3
        %s590 = scalar_lea.vmem %s5, %s589
      $region68: #{tpu_custom_call.1} parent=51 // pred_fallthru
        _
      // Predicated region
      $region69: #{tpu_custom_call.1} parent=51 // pred_check
        %p591 = pneg %p220
      $region70: #{tpu_custom_call.1} parent=51 // pred_check_branch
        %593 = sbr.rel (%p591) target = $region72
      $region71: #{tpu_custom_call.1} parent=51 // pred_region
        %p594 = scmp.lt.s32.totalorder %s33, 3
        %s595 = scalar_select %p594, %s33, 3
        %s596 = smul.addr %s595, 4
        %s597 = smul.addr %s596, 4
        %s598 = scalar_lea.vmem %s6, %s597
      $region72: #{tpu_custom_call.1} parent=51 // pred_fallthru
        _
      // Predicated region
      $region73: #{tpu_custom_call.1} parent=51 // pred_check
        %p599 = pneg %p246
      $region74: #{tpu_custom_call.1} parent=51 // pred_check_branch
        %601 = sbr.rel (%p599) target = $region76
      $region75: #{tpu_custom_call.1} parent=51 // pred_region
        %p602 = scmp.lt.s32.totalorder %s33, 3
        %s603 = scalar_select %p602, %s33, 3
        %s604 = scalar_lea.vmem %s7, %s603
      $region76: #{tpu_custom_call.1} parent=51 // pred_fallthru
        _
      // Predicated region
      $region77: #{tpu_custom_call.1} parent=51 // pred_check
        %p605 = pneg %p272
      $region78: #{tpu_custom_call.1} parent=51 // pred_check_branch
        %607 = sbr.rel (%p605) target = $region80
      $region79: #{tpu_custom_call.1} parent=51 // pred_region
        %p608 = scmp.lt.s32.totalorder %s33, 3
        %s609 = scalar_select %p608, %s33, 3
        %s610 = smul.addr %s609, 4
        %s611 = smul.addr %s610, 4
        %s612 = scalar_lea.vmem %s8, %s611
      $region80: #{tpu_custom_call.1} parent=51 // pred_fallthru
        _
      // Predicated region
      $region81: #{tpu_custom_call.1} parent=51 // pred_check
        %p613 = pneg %p298
      $region82: #{tpu_custom_call.1} parent=51 // pred_check_branch
        %615 = sbr.rel (%p613) target = $region84
      $region83: #{tpu_custom_call.1} parent=51 // pred_region
        %p616 = scmp.lt.s32.totalorder %s33, 3
        %s617 = scalar_select %p616, %s33, 3
        %s618 = scalar_lea.vmem %s9, %s617
      $region84: #{tpu_custom_call.1} parent=51 // pred_fallthru
        _
      // Predicated region
      $region85: #{tpu_custom_call.1} parent=51 // pred_check
        %p619 = pneg %p324
      $region86: #{tpu_custom_call.1} parent=51 // pred_check_branch
        %621 = sbr.rel (%p619) target = $region88
      $region87: #{tpu_custom_call.1} parent=51 // pred_region
        %p622 = scmp.lt.s32.totalorder %s33, 3
        %s623 = scalar_select %p622, %s33, 3
        %s624 = smul.addr %s623, 4
        %s625 = scalar_lea.vmem %s10, %s624
      $region88: #{tpu_custom_call.1} parent=51 // pred_fallthru
        _
    $region52: #{tpu_custom_call.1} parent=5 // pred_fallthru
      _
    %p626 = scmp.le.s32.totalorder 1, %s24
    %p627 = scmp.lt.s32.totalorder %s24, 9
    %p628 = pnand %p626, %p627
    %p629 = pneg %p628
    // Predicated region
    $region89: #{tpu_custom_call.1} parent=5 // pred_check
      _
    $region90: #{tpu_custom_call.1} parent=5 // pred_check_branch
      %631 = sbr.rel (%p628) target = $region92
    $region91: #{tpu_custom_call.1} parent=5 // pred_region
      %s632 = ssub.s32 %s24, 1
      %s633 = smul.u32 8, %s36
      %p634 = scmp.lt.s32.totalorder %s35, 1
      %s635 = scalar_select %p634, %s35, 1
      %p636 = scmp.lt.s32.totalorder %s633, 7
      %s637 = scalar_select %p636, %s633, 7
      %s638 = smul.addr %s635, 8
      %s639 = sadd.s32 %s637, %s638
      %s640 = smul.addr %s639, 8
      %s641 = scalar_lea.vmem %s0, %s640
      %p642 = pneg %p78
      %p643 = pneg %p75
      %s644 = smul.u32 8, %s38
      %p645 = scmp.lt.s32.totalorder %s35, 1
      %s646 = scalar_select %p645, %s35, 1
      %p647 = scmp.lt.s32.totalorder %s644, 7
      %s648 = scalar_select %p647, %s644, 7
      %s649 = smul.addr %s646, 8
      %s650 = sadd.s32 %s648, %s649
      %s651 = smul.addr %s650, 8
      %s652 = scalar_lea.vmem %s1, %s651
      %p653 = pneg %p106
      %p654 = pneg %p103
      %p655 = pneg %p127
      %p656 = pneg %p124
      %p657 = pneg %p148
      %p658 = pneg %p145
      %p659 = scmp.lt.s32.totalorder %s37, 3
      %s660 = scalar_select %p659, %s37, 3
      %s661 = smul.addr %s660, 4
      %s662 = smul.addr %s661, 4
      %s663 = scalar_lea.vmem %s4, %s662
      %p664 = pneg %p174
      %p665 = pneg %p171
      %p666 = scmp.lt.s32.totalorder %s37, 3
      %s667 = scalar_select %p666, %s37, 3
      %s668 = scalar_lea.vmem %s5, %s667
      %p669 = pneg %p200
      %p670 = pneg %p197
      %p671 = scmp.lt.s32.totalorder %s37, 3
      %s672 = scalar_select %p671, %s37, 3
      %s673 = smul.addr %s672, 4
      %s674 = smul.addr %s673, 4
      %s675 = scalar_lea.vmem %s6, %s674
      %p676 = pneg %p226
      %p677 = pneg %p223
      %p678 = scmp.lt.s32.totalorder %s37, 3
      %s679 = scalar_select %p678, %s37, 3
      %s680 = scalar_lea.vmem %s7, %s679
      %p681 = pneg %p252
      %p682 = pneg %p249
      %p683 = scmp.lt.s32.totalorder %s37, 3
      %s684 = scalar_select %p683, %s37, 3
      %s685 = smul.addr %s684, 4
      %s686 = smul.addr %s685, 4
      %s687 = scalar_lea.vmem %s8, %s686
      %p688 = pneg %p278
      %p689 = pneg %p275
      %p690 = scmp.lt.s32.totalorder %s37, 3
      %s691 = scalar_select %p690, %s37, 3
      %s692 = scalar_lea.vmem %s9, %s691
      %p693 = pneg %p304
      %p694 = pneg %p301
      %p695 = scmp.lt.s32.totalorder %s37, 3
      %s696 = scalar_select %p695, %s37, 3
      %s697 = smul.addr %s696, 4
      %s698 = scalar_lea.vmem %s10, %s697
      %p699 = pneg %p330
      %p700 = pneg %p327
      %p701 = pneg %p351
      %p702 = pneg %p348
      %p703 = pneg %p372
      %p704 = pneg %p369
      %p705 = pneg %p393
      %p706 = pneg %p390
      %p707 = pneg %p414
      %p708 = pneg %p411
      %p709 = pneg %p435
      %p710 = pneg %p432
      %p711 = pneg %p456
      %p712 = pneg %p453
      %p713 = pneg %p477
      %p714 = pneg %p474
      %p715 = pneg %p505
      %p716 = pneg %p502
      %s717 = smul.u32 8, %s36
      %p718 = scmp.lt.s32.totalorder %s35, 1
      %s719 = scalar_select %p718, %s35, 1
      %p720 = scmp.lt.s32.totalorder %s717, 7
      %s721 = scalar_select %p720, %s717, 7
      %s722 = smul.addr %s719, 8
      %s723 = sadd.s32 %s721, %s722
      %s724 = smul.addr %s723, 8
      %s725 = scalar_lea.vmem %s18, %s724
      %s726 = smul.u32 8, %s36
      %p727 = scmp.lt.s32.totalorder %s35, 1
      %s728 = scalar_select %p727, %s35, 1
      %p729 = scmp.lt.s32.totalorder %s726, 7
      %s730 = scalar_select %p729, %s726, 7
      %s731 = smul.addr %s728, 8
      %s732 = sadd.s32 %s730, %s731
      %s733 = smul.addr %s732, 8
      %s734 = scalar_lea.vmem %s0, %s733
      %s735 = smul.u32 8, %s36
      %s736 = smul.u32 8, %s38
      %p737 = scmp.lt.s32.totalorder %s35, 1
      %s738 = scalar_select %p737, %s35, 1
      %p739 = scmp.lt.s32.totalorder %s736, 7
      %s740 = scalar_select %p739, %s736, 7
      %s741 = smul.addr %s738, 8
      %s742 = sadd.s32 %s740, %s741
      %s743 = smul.addr %s742, 8
      %s744 = scalar_lea.vmem %s1, %s743
      %s745 = smul.u32 8, %s38
      %p746 = scmp.lt.s32.totalorder %s37, 3
      %s747 = scalar_select %p746, %s37, 3
      %s748 = smul.addr %s747, 4
      %s749 = smul.addr %s748, 4
      %s750 = scalar_lea.vmem %s4, %s749
      %p751 = scmp.lt.s32.totalorder %s37, 3
      %s752 = scalar_select %p751, %s37, 3
      %s753 = scalar_lea.vmem %s5, %s752
      %p754 = scmp.lt.s32.totalorder %s37, 3
      %s755 = scalar_select %p754, %s37, 3
      %s756 = smul.addr %s755, 4
      %s757 = smul.addr %s756, 4
      %s758 = scalar_lea.vmem %s6, %s757
      %p759 = scmp.lt.s32.totalorder %s37, 3
      %s760 = scalar_select %p759, %s37, 3
      %s761 = scalar_lea.vmem %s7, %s760
      %p762 = scmp.lt.s32.totalorder %s37, 3
      %s763 = scalar_select %p762, %s37, 3
      %s764 = smul.addr %s763, 4
      %s765 = smul.addr %s764, 4
      %s766 = scalar_lea.vmem %s8, %s765
      %p767 = scmp.lt.s32.totalorder %s37, 3
      %s768 = scalar_select %p767, %s37, 3
      %s769 = scalar_lea.vmem %s9, %s768
      %p770 = scmp.lt.s32.totalorder %s37, 3
      %s771 = scalar_select %p770, %s37, 3
      %s772 = smul.addr %s771, 4
      %s773 = scalar_lea.vmem %s10, %s772
      %s774 = smul.u32 8, %s36
      %p775 = scmp.lt.s32.totalorder %s35, 1
      %s776 = scalar_select %p775, %s35, 1
      %p777 = scmp.lt.s32.totalorder %s774, 7
      %s778 = scalar_select %p777, %s774, 7
      %s779 = smul.addr %s776, 8
      %s780 = sadd.s32 %s778, %s779
      %s781 = smul.addr %s780, 8
      %s782 = scalar_lea.vmem %s18, %s781
      %s783 = smul.u32 8, %s36
      %p785 = scmp.eq.s32.totalorder %s37, 0
      %p786 = scmp.eq.s32.totalorder %s38, 0
      %p787 = pnand %p785, %p786
      %p788 = pneg %p787
      // Predicated region
      $region93: #{tpu_custom_call.1} parent=91 // pred_check
        _
      $region94: #{tpu_custom_call.1} parent=91 // pred_check_branch
        %790 = sbr.rel (%p787) target = $region96
      $region95: #{tpu_custom_call.1} parent=91 // pred_region
        %vm791 = vcmask 261120
        %792 = vst.msk [vmem:[#allocation6] sm:$0xff] %vm791, 0.0
        %793 = vst.msk [vmem:[#allocation6 + $0x8] sm:$0xff] %vm791, 0.0
        %794 = vst.msk [vmem:[#allocation6 + $0x10] sm:$0xff] %vm791, 0.0
        %795 = vst.msk [vmem:[#allocation6 + $0x18] sm:$0xff] %vm791, 0.0
        %796 = vst.msk [vmem:[#allocation6 + $0x20] sm:$0xff] %vm791, 0.0
        %797 = vst.msk [vmem:[#allocation6 + $0x28] sm:$0xff] %vm791, 0.0
        %798 = vst.msk [vmem:[#allocation6 + $0x30] sm:$0xff] %vm791, 0.0
        %799 = vst.msk [vmem:[#allocation6 + $0x38] sm:$0xff] %vm791, 0.0
      $region96: #{tpu_custom_call.1} parent=91 // pred_fallthru
        _
      // Predicated region
      $region97: #{tpu_custom_call.1} parent=91 // pred_check
        %p800 = pneg %p786
      $region98: #{tpu_custom_call.1} parent=91 // pred_check_branch
        %802 = sbr.rel (%p800) target = $region100
      $region99: #{tpu_custom_call.1} parent=91 // pred_region
        %v803 = vld [vmem:[%s734] sm:$0xff]
        %v804 = vld [vmem:[%s734 + $0x8] sm:$0xff]
        %v805 = vld [vmem:[%s734 + $0x10] sm:$0xff]
        %v806 = vld [vmem:[%s734 + $0x18] sm:$0xff]
        %v807 = vld [vmem:[%s734 + $0x20] sm:$0xff]
        %v808 = vld [vmem:[%s734 + $0x28] sm:$0xff]
        %v809 = vld [vmem:[%s734 + $0x30] sm:$0xff]
        %v810 = vld [vmem:[%s734 + $0x38] sm:$0xff]
        %v811 = vld [vmem:[%s2] sm:$0x1]
        %v812 = vld [vmem:[%s3] sm:$0x1]
        %vm813 = vcmask 261120
        %v814 = vsel %vm813, %v803, 0.0
        %815 = vadd.xlane.f32.xlu0 %v814
        %v816 = vpop.xlane.xlu0 %815
        %v817 = vsel %vm813, %v804, 0.0
        %818 = vadd.xlane.f32.xlu0 %v817
        %v819 = vpop.xlane.xlu0 %818
        %v820 = vsel %vm813, %v805, 0.0
        %821 = vadd.xlane.f32.xlu0 %v820
        %v822 = vpop.xlane.xlu0 %821
        %v823 = vsel %vm813, %v806, 0.0
        %824 = vadd.xlane.f32.xlu0 %v823
        %v825 = vpop.xlane.xlu0 %824
        %v826 = vsel %vm813, %v807, 0.0
        %827 = vadd.xlane.f32.xlu0 %v826
        %v828 = vpop.xlane.xlu0 %827
        %v829 = vsel %vm813, %v808, 0.0
        %830 = vadd.xlane.f32.xlu0 %v829
        %v831 = vpop.xlane.xlu0 %830
        %v832 = vsel %vm813, %v809, 0.0
        %833 = vadd.xlane.f32.xlu0 %v832
        %v834 = vpop.xlane.xlu0 %833
        %v835 = vsel %vm813, %v810, 0.0
        %836 = vadd.xlane.f32.xlu0 %v835
        %v837 = vpop.xlane.xlu0 %836
        %v838 = vrcp.pop 32.0
        %v839 = vmul.f32 %v816, %v838
        %v840 = vmul.f32 %v819, %v838
        %v841 = vmul.f32 %v822, %v838
        %v842 = vmul.f32 %v825, %v838
        %v843 = vmul.f32 %v828, %v838
        %v844 = vmul.f32 %v831, %v838
        %v845 = vmul.f32 %v834, %v838
        %v846 = vmul.f32 %v837, %v838
        %v847 = vsub.f32 %v803, %v839
        %v848 = vsub.f32 %v804, %v840
        %v849 = vsub.f32 %v805, %v841
        %v850 = vsub.f32 %v806, %v842
        %v851 = vsub.f32 %v807, %v843
        %v852 = vsub.f32 %v808, %v844
        %v853 = vsub.f32 %v809, %v845
        %v854 = vsub.f32 %v810, %v846
        %v855 = vmul.f32 %v847, %v847
        %v856 = vmul.f32 %v848, %v848
        %v857 = vmul.f32 %v849, %v849
        %v858 = vmul.f32 %v850, %v850
        %v859 = vmul.f32 %v851, %v851
        %v860 = vmul.f32 %v852, %v852
        %v861 = vmul.f32 %v853, %v853
        %v862 = vmul.f32 %v854, %v854
        %v863 = vsel %vm813, %v855, 0.0
        %864 = vadd.xlane.f32.xlu0 %v863
        %v865 = vpop.xlane.xlu0 %864
        %v866 = vsel %vm813, %v856, 0.0
        %867 = vadd.xlane.f32.xlu0 %v866
        %v868 = vpop.xlane.xlu0 %867
        %v869 = vsel %vm813, %v857, 0.0
        %870 = vadd.xlane.f32.xlu0 %v869
        %v871 = vpop.xlane.xlu0 %870
        %v872 = vsel %vm813, %v858, 0.0
        %873 = vadd.xlane.f32.xlu0 %v872
        %v874 = vpop.xlane.xlu0 %873
        %v875 = vsel %vm813, %v859, 0.0
        %876 = vadd.xlane.f32.xlu0 %v875
        %v877 = vpop.xlane.xlu0 %876
        %v878 = vsel %vm813, %v860, 0.0
        %879 = vadd.xlane.f32.xlu0 %v878
        %v880 = vpop.xlane.xlu0 %879
        %v881 = vsel %vm813, %v861, 0.0
        %882 = vadd.xlane.f32.xlu0 %v881
        %v883 = vpop.xlane.xlu0 %882
        %v884 = vsel %vm813, %v862, 0.0
        %885 = vadd.xlane.f32.xlu0 %v884
        %v886 = vpop.xlane.xlu0 %885
        %v887 = vmul.f32 %v865, %v838
        %v888 = vmul.f32 %v868, %v838
        %v889 = vmul.f32 %v871, %v838
        %v890 = vmul.f32 %v874, %v838
        %v891 = vmul.f32 %v877, %v838
        %v892 = vmul.f32 %v880, %v838
        %v893 = vmul.f32 %v883, %v838
        %v894 = vmul.f32 %v886, %v838
        %v895 = vadd.f32 %v887, 1e-05
        %v896 = vadd.f32 %v888, 1e-05
        %v897 = vadd.f32 %v889, 1e-05
        %v898 = vadd.f32 %v890, 1e-05
        %v899 = vadd.f32 %v891, 1e-05
        %v900 = vadd.f32 %v892, 1e-05
        %v901 = vadd.f32 %v893, 1e-05
        %v902 = vadd.f32 %v894, 1e-05
        %v903 = vrsqrt.pop %v895
        %v904 = vrsqrt.pop %v896
        %v905 = vrsqrt.pop %v897
        %v906 = vrsqrt.pop %v898
        %v907 = vrsqrt.pop %v899
        %v908 = vrsqrt.pop %v900
        %v909 = vrsqrt.pop %v901
        %v910 = vrsqrt.pop %v902
        %v911 = vmul.f32 %v847, %v903
        %v912 = vmul.f32 %v848, %v904
        %v913 = vmul.f32 %v849, %v905
        %v914 = vmul.f32 %v850, %v906
        %v915 = vmul.f32 %v851, %v907
        %v916 = vmul.f32 %v852, %v908
        %v917 = vmul.f32 %v853, %v909
        %v918 = vmul.f32 %v854, %v910
        %v920 = vlaneseq
        %v921 = vshrl.u32 %v920, 7
        %v922 = vsub.s32 0, %v921
        %v923 = vrot.slane %v811, %v922
        %v925 = vmul.f32 %v911, %v923
        %v926 = vmul.f32 %v912, %v923
        %v927 = vmul.f32 %v913, %v923
        %v928 = vmul.f32 %v914, %v923
        %v929 = vmul.f32 %v915, %v923
        %v930 = vmul.f32 %v916, %v923
        %v931 = vmul.f32 %v917, %v923
        %v932 = vmul.f32 %v918, %v923
        %v934 = vlaneseq
        %v935 = vshrl.u32 %v934, 7
        %v936 = vsub.s32 0, %v935
        %v937 = vrot.slane %v812, %v936
        %v939 = vadd.f32 %v925, %v937
        %v940 = vadd.f32 %v926, %v937
        %v941 = vadd.f32 %v927, %v937
        %v942 = vadd.f32 %v928, %v937
        %v943 = vadd.f32 %v929, %v937
        %v944 = vadd.f32 %v930, %v937
        %v945 = vadd.f32 %v931, %v937
        %v946 = vadd.f32 %v932, %v937
        %v947 = vpack.c.bf16 %v940, %v939
        %v948 = vpack.c.bf16 %v942, %v941
        %v949 = vpack.c.bf16 %v944, %v943
        %v950 = vpack.c.bf16 %v946, %v945
        %v951 = vld [vmem:[%s750] sm:$0xf]
        %v952 = vld [vmem:[%s750 + $0x4] sm:$0xf]
        %v953 = vld [vmem:[%s750 + $0x8] sm:$0xf]
        %v954 = vld [vmem:[%s750 + $0xc] sm:$0xf]
        %v955 = vld [vmem:[%s753] sm:$0x1]
        %v957 = vlaneseq
        %v958 = vshrl.u32 %v957, 7
        %v959 = vsub.s32 0, %v958
        %v960 = vrot.slane %v955, %v959
        %v966 = vunpack.c.l.b16 %v951
        %v967 = vunpack.c.l.b16 %v952
        %v968 = vunpack.c.l.b16 %v953
        %v969 = vunpack.c.l.b16 %v954
        %v970 = vpack.c.b16 %v967, %v966
        %v971 = vpack.c.b16 %v969, %v968
        %v975 = vsel %vm813, %v947, 0
        %v978 = vsel %vm813, %v948, 0
        %v981 = vsel %vm813, %v949, 0
        %v984 = vsel %vm813, %v950, 0
        %986 = vmatprep.subr.bf16.mxu0 0
        %987 = vmatpush1.bf16.msra.mxu0 0
        %988 = vmatprep.subr.bf16.mxu0 0
        %989 = vmatpush1.bf16.msra.mxu0 0
        %990 = vmatprep.subr.bf16.mxu0 0
        %991 = vmatpush1.bf16.msra.mxu0 0
        %992 = vmatprep.subr.bf16.mxu0 0
        %993 = vmatpush1.bf16.msra.mxu0 0
        %994 = vmatprep.subr.bf16.mxu0 0
        %995 = vmatpush1.bf16.msra.mxu0 0
        %996 = vmatprep.subr.bf16.mxu0 0
        %997 = vmatpush1.bf16.msra.mxu0 0
        %998 = vmatprep.subr.bf16.mxu0 0
        %999 = vmatpush1.bf16.msra.mxu0 %v971
        %1000 = vmatprep.subr.bf16.mxu0 0
        %1001 = vmatpush1.bf16.msra.mxu0 %v970
        %1002 = vmatprep.subr.bf16.mxu0 0
        %1003 = vmatpush2.bf16.msra.mxu0 0
        %1004 = vmatprep.subr.bf16.mxu0 0
        %1005 = vmatpush2.bf16.msra.mxu0 0
        %1006 = vmatprep.subr.bf16.mxu0 0
        %1007 = vmatpush2.bf16.msra.mxu0 0
        %1008 = vmatprep.subr.bf16.mxu0 0
        %1009 = vmatpush2.bf16.msra.mxu0 0
        %1010 = vmatprep.subr.bf16.mxu0 0
        %1011 = vmatpush2.bf16.msra.mxu0 0
        %1012 = vmatprep.subr.bf16.mxu0 0
        %1013 = vmatpush2.bf16.msra.mxu0 0
        %1014 = vmatprep.subr.bf16.mxu0 0
        %1015 = vmatpush2.bf16.msra.mxu0 0
        %1016 = vmatprep.subr.bf16.mxu0 0
        %1017 = vmatpush2.bf16.msra.mxu0 0
        %1018 = vmatprep.mubr.bf16.mxu0 0
        %1019 = vmatmul.mubr.bf16.gmra.mxu0 %v975
        %v1020 = vpop.f32.mrf.mxu0
        %v1021 = vadd.f32 %v960, %v1020
        %v1022 = vpop.f32.mrf.mxu0
        %v1023 = vpop.f32.mrf.mxu0
        %v1024 = vadd.f32 %v960, %v1023
        %v1025 = vpop.f32.mrf.mxu0
        %1026 = vmatprep.mubr.bf16.mxu0 0
        %1027 = vmatmul.mubr.bf16.gmra.mxu0 %v978
        %v1028 = vpop.f32.mrf.mxu0
        %v1029 = vadd.f32 %v960, %v1028
        %v1030 = vpop.f32.mrf.mxu0
        %v1031 = vpop.f32.mrf.mxu0
        %v1032 = vadd.f32 %v960, %v1031
        %v1033 = vpop.f32.mrf.mxu0
        %1034 = vmatprep.mubr.bf16.mxu0 0
        %1035 = vmatmul.mubr.bf16.gmra.mxu0 %v981
        %v1036 = vpop.f32.mrf.mxu0
        %v1037 = vadd.f32 %v960, %v1036
        %v1038 = vpop.f32.mrf.mxu0
        %v1039 = vpop.f32.mrf.mxu0
        %v1040 = vadd.f32 %v960, %v1039
        %v1041 = vpop.f32.mrf.mxu0
        %1042 = vmatprep.mubr.bf16.mxu0 0
        %1043 = vmatmul.mubr.bf16.gmra.mxu0 %v984
        %v1044 = vpop.f32.mrf.mxu0
        %v1045 = vadd.f32 %v960, %v1044
        %v1046 = vpop.f32.mrf.mxu0
        %v1047 = vpop.f32.mrf.mxu0
        %v1048 = vadd.f32 %v960, %v1047
        %v1049 = vpop.f32.mrf.mxu0
        %1050 = vdwg.mxu0
        %v1051 = vpack.c.bf16 %v1024, %v1021
        %v1052 = vpack.c.bf16 %v1032, %v1029
        %v1053 = vpack.c.bf16 %v1040, %v1037
        %v1054 = vpack.c.bf16 %v1048, %v1045
        %v1059 = vunpack.c.l.b16 %v1051
        %v1060 = vunpack.c.h.b16 %v1051
        %v1061 = vunpack.c.l.b16 %v1052
        %v1062 = vunpack.c.h.b16 %v1052
        %v1063 = vunpack.c.l.b16 %v1053
        %v1064 = vunpack.c.h.b16 %v1053
        %v1065 = vunpack.c.l.b16 %v1054
        %v1066 = vunpack.c.h.b16 %v1054
        %v1067 = vpack.c.b16 %v1059, %v1059
        %v1068 = vpack.c.b16 %v1060, %v1060
        %v1069 = vpack.c.b16 %v1061, %v1061
        %v1070 = vpack.c.b16 %v1062, %v1062
        %v1071 = vpack.c.b16 %v1063, %v1063
        %v1072 = vpack.c.b16 %v1064, %v1064
        %v1073 = vpack.c.b16 %v1065, %v1065
        %v1074 = vpack.c.b16 %v1066, %v1066
        %vm1083 = vcmask 60416
        %1084 = vst.msk [vmem:[#allocation2] sm:$0xf] %vm1083, %v1067
        %1085 = vst.msk [vmem:[#allocation2 + $0x4] sm:$0xf] %vm1083, %v1068
        %1086 = vst.msk [vmem:[#allocation2 + $0x8] sm:$0xf] %vm1083, %v1069
        %1087 = vst.msk [vmem:[#allocation2 + $0xc] sm:$0xf] %vm1083, %v1070
        %1088 = vst.msk [vmem:[#allocation2 + $0x10] sm:$0xf] %vm1083, %v1071
        %1089 = vst.msk [vmem:[#allocation2 + $0x14] sm:$0xf] %vm1083, %v1072
        %1090 = vst.msk [vmem:[#allocation2 + $0x18] sm:$0xf] %vm1083, %v1073
        %1091 = vst.msk [vmem:[#allocation2 + $0x1c] sm:$0xf] %vm1083, %v1074
        %vm1092 = vcmask 7168
        %1093 = vst.msk [vmem:[#allocation3] sm:$0xff] %vm1092, -inf
        %1094 = vst.msk [vmem:[#allocation3 + $0x8] sm:$0xff] %vm1092, -inf
        %1095 = vst.msk [vmem:[#allocation3 + $0x10] sm:$0xff] %vm1092, -inf
        %1096 = vst.msk [vmem:[#allocation3 + $0x18] sm:$0xff] %vm1092, -inf
        %1097 = vst.msk [vmem:[#allocation3 + $0x20] sm:$0xff] %vm1092, -inf
        %1098 = vst.msk [vmem:[#allocation3 + $0x28] sm:$0xff] %vm1092, -inf
        %1099 = vst.msk [vmem:[#allocation3 + $0x30] sm:$0xff] %vm1092, -inf
        %1100 = vst.msk [vmem:[#allocation3 + $0x38] sm:$0xff] %vm1092, -inf
        %1101 = vst.msk [vmem:[#allocation4] sm:$0xff] %vm1092, 0.0
        %1102 = vst.msk [vmem:[#allocation4 + $0x8] sm:$0xff] %vm1092, 0.0
        %1103 = vst.msk [vmem:[#allocation4 + $0x10] sm:$0xff] %vm1092, 0.0
        %1104 = vst.msk [vmem:[#allocation4 + $0x18] sm:$0xff] %vm1092, 0.0
        %1105 = vst.msk [vmem:[#allocation4 + $0x20] sm:$0xff] %vm1092, 0.0
        %1106 = vst.msk [vmem:[#allocation4 + $0x28] sm:$0xff] %vm1092, 0.0
        %1107 = vst.msk [vmem:[#allocation4 + $0x30] sm:$0xff] %vm1092, 0.0
        %1108 = vst.msk [vmem:[#allocation4 + $0x38] sm:$0xff] %vm1092, 0.0
        %vm1109 = vcmask 64512
        %1110 = vst.msk [vmem:[#allocation5] sm:$0xff] %vm1109, 0.0
        %1111 = vst.msk [vmem:[#allocation5 + $0x8] sm:$0xff] %vm1109, 0.0
        %1112 = vst.msk [vmem:[#allocation5 + $0x10] sm:$0xff] %vm1109, 0.0
        %1113 = vst.msk [vmem:[#allocation5 + $0x18] sm:$0xff] %vm1109, 0.0
        %1114 = vst.msk [vmem:[#allocation5 + $0x20] sm:$0xff] %vm1109, 0.0
        %1115 = vst.msk [vmem:[#allocation5 + $0x28] sm:$0xff] %vm1109, 0.0
        %1116 = vst.msk [vmem:[#allocation5 + $0x30] sm:$0xff] %vm1109, 0.0
        %1117 = vst.msk [vmem:[#allocation5 + $0x38] sm:$0xff] %vm1109, 0.0
      $region100: #{tpu_custom_call.1} parent=91 // pred_fallthru
        _
      %v1118 = vld [vmem:[%s744] sm:$0xff]
      %v1119 = vld [vmem:[%s744 + $0x8] sm:$0xff]
      %v1120 = vld [vmem:[%s744 + $0x10] sm:$0xff]
      %v1121 = vld [vmem:[%s744 + $0x18] sm:$0xff]
      %v1122 = vld [vmem:[%s744 + $0x20] sm:$0xff]
      %v1123 = vld [vmem:[%s744 + $0x28] sm:$0xff]
      %v1124 = vld [vmem:[%s744 + $0x30] sm:$0xff]
      %v1125 = vld [vmem:[%s744 + $0x38] sm:$0xff]
      %v1126 = vld [vmem:[%s2] sm:$0x1]
      %v1127 = vld [vmem:[%s3] sm:$0x1]
      %vm1128 = vcmask 261120
      %v1129 = vsel %vm1128, %v1118, 0.0
      %1130 = vadd.xlane.f32.xlu0 %v1129
      %v1131 = vpop.xlane.xlu0 %1130
      %v1132 = vsel %vm1128, %v1119, 0.0
      %1133 = vadd.xlane.f32.xlu0 %v1132
      %v1134 = vpop.xlane.xlu0 %1133
      %v1135 = vsel %vm1128, %v1120, 0.0
      %1136 = vadd.xlane.f32.xlu0 %v1135
      %v1137 = vpop.xlane.xlu0 %1136
      %v1138 = vsel %vm1128, %v1121, 0.0
      %1139 = vadd.xlane.f32.xlu0 %v1138
      %v1140 = vpop.xlane.xlu0 %1139
      %v1141 = vsel %vm1128, %v1122, 0.0
      %1142 = vadd.xlane.f32.xlu0 %v1141
      %v1143 = vpop.xlane.xlu0 %1142
      %v1144 = vsel %vm1128, %v1123, 0.0
      %1145 = vadd.xlane.f32.xlu0 %v1144
      %v1146 = vpop.xlane.xlu0 %1145
      %v1147 = vsel %vm1128, %v1124, 0.0
      %1148 = vadd.xlane.f32.xlu0 %v1147
      %v1149 = vpop.xlane.xlu0 %1148
      %v1150 = vsel %vm1128, %v1125, 0.0
      %1151 = vadd.xlane.f32.xlu0 %v1150
      %v1152 = vpop.xlane.xlu0 %1151
      %v1153 = vrcp.pop 32.0
      %v1154 = vmul.f32 %v1131, %v1153
      %v1155 = vmul.f32 %v1134, %v1153
      %v1156 = vmul.f32 %v1137, %v1153
      %v1157 = vmul.f32 %v1140, %v1153
      %v1158 = vmul.f32 %v1143, %v1153
      %v1159 = vmul.f32 %v1146, %v1153
      %v1160 = vmul.f32 %v1149, %v1153
      %v1161 = vmul.f32 %v1152, %v1153
      %v1162 = vsub.f32 %v1118, %v1154
      %v1163 = vsub.f32 %v1119, %v1155
      %v1164 = vsub.f32 %v1120, %v1156
      %v1165 = vsub.f32 %v1121, %v1157
      %v1166 = vsub.f32 %v1122, %v1158
      %v1167 = vsub.f32 %v1123, %v1159
      %v1168 = vsub.f32 %v1124, %v1160
      %v1169 = vsub.f32 %v1125, %v1161
      %v1170 = vmul.f32 %v1162, %v1162
      %v1171 = vmul.f32 %v1163, %v1163
      %v1172 = vmul.f32 %v1164, %v1164
      %v1173 = vmul.f32 %v1165, %v1165
      %v1174 = vmul.f32 %v1166, %v1166
      %v1175 = vmul.f32 %v1167, %v1167
      %v1176 = vmul.f32 %v1168, %v1168
      %v1177 = vmul.f32 %v1169, %v1169
      %v1178 = vsel %vm1128, %v1170, 0.0
      %1179 = vadd.xlane.f32.xlu0 %v1178
      %v1180 = vpop.xlane.xlu0 %1179
      %v1181 = vsel %vm1128, %v1171, 0.0
      %1182 = vadd.xlane.f32.xlu0 %v1181
      %v1183 = vpop.xlane.xlu0 %1182
      %v1184 = vsel %vm1128, %v1172, 0.0
      %1185 = vadd.xlane.f32.xlu0 %v1184
      %v1186 = vpop.xlane.xlu0 %1185
      %v1187 = vsel %vm1128, %v1173, 0.0
      %1188 = vadd.xlane.f32.xlu0 %v1187
      %v1189 = vpop.xlane.xlu0 %1188
      %v1190 = vsel %vm1128, %v1174, 0.0
      %1191 = vadd.xlane.f32.xlu0 %v1190
      %v1192 = vpop.xlane.xlu0 %1191
      %v1193 = vsel %vm1128, %v1175, 0.0
      %1194 = vadd.xlane.f32.xlu0 %v1193
      %v1195 = vpop.xlane.xlu0 %1194
      %v1196 = vsel %vm1128, %v1176, 0.0
      %1197 = vadd.xlane.f32.xlu0 %v1196
      %v1198 = vpop.xlane.xlu0 %1197
      %v1199 = vsel %vm1128, %v1177, 0.0
      %1200 = vadd.xlane.f32.xlu0 %v1199
      %v1201 = vpop.xlane.xlu0 %1200
      %v1202 = vmul.f32 %v1180, %v1153
      %v1203 = vmul.f32 %v1183, %v1153
      %v1204 = vmul.f32 %v1186, %v1153
      %v1205 = vmul.f32 %v1189, %v1153
      %v1206 = vmul.f32 %v1192, %v1153
      %v1207 = vmul.f32 %v1195, %v1153
      %v1208 = vmul.f32 %v1198, %v1153
      %v1209 = vmul.f32 %v1201, %v1153
      %v1210 = vadd.f32 %v1202, 1e-05
      %v1211 = vadd.f32 %v1203, 1e-05
      %v1212 = vadd.f32 %v1204, 1e-05
      %v1213 = vadd.f32 %v1205, 1e-05
      %v1214 = vadd.f32 %v1206, 1e-05
      %v1215 = vadd.f32 %v1207, 1e-05
      %v1216 = vadd.f32 %v1208, 1e-05
      %v1217 = vadd.f32 %v1209, 1e-05
      %v1218 = vrsqrt.pop %v1210
      %v1219 = vrsqrt.pop %v1211
      %v1220 = vrsqrt.pop %v1212
      %v1221 = vrsqrt.pop %v1213
      %v1222 = vrsqrt.pop %v1214
      %v1223 = vrsqrt.pop %v1215
      %v1224 = vrsqrt.pop %v1216
      %v1225 = vrsqrt.pop %v1217
      %v1226 = vmul.f32 %v1162, %v1218
      %v1227 = vmul.f32 %v1163, %v1219
      %v1228 = vmul.f32 %v1164, %v1220
      %v1229 = vmul.f32 %v1165, %v1221
      %v1230 = vmul.f32 %v1166, %v1222
      %v1231 = vmul.f32 %v1167, %v1223
      %v1232 = vmul.f32 %v1168, %v1224
      %v1233 = vmul.f32 %v1169, %v1225
      %v1235 = vlaneseq
      %v1236 = vshrl.u32 %v1235, 7
      %v1237 = vsub.s32 0, %v1236
      %v1238 = vrot.slane %v1126, %v1237
      %v1240 = vmul.f32 %v1226, %v1238
      %v1241 = vmul.f32 %v1227, %v1238
      %v1242 = vmul.f32 %v1228, %v1238
      %v1243 = vmul.f32 %v1229, %v1238
      %v1244 = vmul.f32 %v1230, %v1238
      %v1245 = vmul.f32 %v1231, %v1238
      %v1246 = vmul.f32 %v1232, %v1238
      %v1247 = vmul.f32 %v1233, %v1238
      %v1249 = vlaneseq
      %v1250 = vshrl.u32 %v1249, 7
      %v1251 = vsub.s32 0, %v1250
      %v1252 = vrot.slane %v1127, %v1251
      %v1254 = vadd.f32 %v1240, %v1252
      %v1255 = vadd.f32 %v1241, %v1252
      %v1256 = vadd.f32 %v1242, %v1252
      %v1257 = vadd.f32 %v1243, %v1252
      %v1258 = vadd.f32 %v1244, %v1252
      %v1259 = vadd.f32 %v1245, %v1252
      %v1260 = vadd.f32 %v1246, %v1252
      %v1261 = vadd.f32 %v1247, %v1252
      %v1262 = vpack.c.bf16 %v1255, %v1254
      %v1263 = vpack.c.bf16 %v1257, %v1256
      %v1264 = vpack.c.bf16 %v1259, %v1258
      %v1265 = vpack.c.bf16 %v1261, %v1260
      %v1266 = vld [vmem:[%s758] sm:$0xf]
      %v1267 = vld [vmem:[%s758 + $0x4] sm:$0xf]
      %v1268 = vld [vmem:[%s758 + $0x8] sm:$0xf]
      %v1269 = vld [vmem:[%s758 + $0xc] sm:$0xf]
      %v1270 = vld [vmem:[%s761] sm:$0x1]
      %v1272 = vlaneseq
      %v1273 = vshrl.u32 %v1272, 7
      %v1274 = vsub.s32 0, %v1273
      %v1275 = vrot.slane %v1270, %v1274
      %v1281 = vunpack.c.l.b16 %v1266
      %v1282 = vunpack.c.l.b16 %v1267
      %v1283 = vunpack.c.l.b16 %v1268
      %v1284 = vunpack.c.l.b16 %v1269
      %v1285 = vpack.c.b16 %v1282, %v1281
      %v1286 = vpack.c.b16 %v1284, %v1283
      %v1290 = vsel %vm1128, %v1262, 0
      %v1293 = vsel %vm1128, %v1263, 0
      %v1296 = vsel %vm1128, %v1264, 0
      %v1299 = vsel %vm1128, %v1265, 0
      %1301 = vmatprep.subr.bf16.mxu0 0
      %1302 = vmatpush1.bf16.msra.mxu0 0
      %1303 = vmatprep.subr.bf16.mxu0 0
      %1304 = vmatpush1.bf16.msra.mxu0 0
      %1305 = vmatprep.subr.bf16.mxu0 0
      %1306 = vmatpush1.bf16.msra.mxu0 0
      %1307 = vmatprep.subr.bf16.mxu0 0
      %1308 = vmatpush1.bf16.msra.mxu0 0
      %1309 = vmatprep.subr.bf16.mxu0 0
      %1310 = vmatpush1.bf16.msra.mxu0 0
      %1311 = vmatprep.subr.bf16.mxu0 0
      %1312 = vmatpush1.bf16.msra.mxu0 0
      %1313 = vmatprep.subr.bf16.mxu0 0
      %1314 = vmatpush1.bf16.msra.mxu0 %v1286
      %1315 = vmatprep.subr.bf16.mxu0 0
      %1316 = vmatpush1.bf16.msra.mxu0 %v1285
      %1317 = vmatprep.subr.bf16.mxu0 0
      %1318 = vmatpush2.bf16.msra.mxu0 0
      %1319 = vmatprep.subr.bf16.mxu0 0
      %1320 = vmatpush2.bf16.msra.mxu0 0
      %1321 = vmatprep.subr.bf16.mxu0 0
      %1322 = vmatpush2.bf16.msra.mxu0 0
      %1323 = vmatprep.subr.bf16.mxu0 0
      %1324 = vmatpush2.bf16.msra.mxu0 0
      %1325 = vmatprep.subr.bf16.mxu0 0
      %1326 = vmatpush2.bf16.msra.mxu0 0
      %1327 = vmatprep.subr.bf16.mxu0 0
      %1328 = vmatpush2.bf16.msra.mxu0 0
      %1329 = vmatprep.subr.bf16.mxu0 0
      %1330 = vmatpush2.bf16.msra.mxu0 0
      %1331 = vmatprep.subr.bf16.mxu0 0
      %1332 = vmatpush2.bf16.msra.mxu0 0
      %1333 = vmatprep.mubr.bf16.mxu0 0
      %1334 = vmatmul.mubr.bf16.gmra.mxu0 %v1290
      %v1335 = vpop.f32.mrf.mxu0
      %v1336 = vadd.f32 %v1275, %v1335
      %v1337 = vpop.f32.mrf.mxu0
      %v1338 = vpop.f32.mrf.mxu0
      %v1339 = vadd.f32 %v1275, %v1338
      %v1340 = vpop.f32.mrf.mxu0
      %1341 = vmatprep.mubr.bf16.mxu0 0
      %1342 = vmatmul.mubr.bf16.gmra.mxu0 %v1293
      %v1343 = vpop.f32.mrf.mxu0
      %v1344 = vadd.f32 %v1275, %v1343
      %v1345 = vpop.f32.mrf.mxu0
      %v1346 = vpop.f32.mrf.mxu0
      %v1347 = vadd.f32 %v1275, %v1346
      %v1348 = vpop.f32.mrf.mxu0
      %1349 = vmatprep.mubr.bf16.mxu0 0
      %1350 = vmatmul.mubr.bf16.gmra.mxu0 %v1296
      %v1351 = vpop.f32.mrf.mxu0
      %v1352 = vadd.f32 %v1275, %v1351
      %v1353 = vpop.f32.mrf.mxu0
      %v1354 = vpop.f32.mrf.mxu0
      %v1355 = vadd.f32 %v1275, %v1354
      %v1356 = vpop.f32.mrf.mxu0
      %1357 = vmatprep.mubr.bf16.mxu0 0
      %1358 = vmatmul.mubr.bf16.gmra.mxu0 %v1299
      %v1359 = vpop.f32.mrf.mxu0
      %v1360 = vadd.f32 %v1275, %v1359
      %v1361 = vpop.f32.mrf.mxu0
      %v1362 = vpop.f32.mrf.mxu0
      %v1363 = vadd.f32 %v1275, %v1362
      %v1364 = vpop.f32.mrf.mxu0
      %1365 = vdwg.mxu0
      %v1366 = vpack.c.bf16 %v1339, %v1336
      %v1367 = vpack.c.bf16 %v1347, %v1344
      %v1368 = vpack.c.bf16 %v1355, %v1352
      %v1369 = vpack.c.bf16 %v1363, %v1360
      %v1370 = vld [vmem:[%s766] sm:$0xf]
      %v1371 = vld [vmem:[%s766 + $0x4] sm:$0xf]
      %v1372 = vld [vmem:[%s766 + $0x8] sm:$0xf]
      %v1373 = vld [vmem:[%s766 + $0xc] sm:$0xf]
      %v1374 = vld [vmem:[%s769] sm:$0x1]
      %v1376 = vlaneseq
      %v1377 = vshrl.u32 %v1376, 7
      %v1378 = vsub.s32 0, %v1377
      %v1379 = vrot.slane %v1374, %v1378
      %v1385 = vunpack.c.l.b16 %v1370
      %v1386 = vunpack.c.l.b16 %v1371
      %v1387 = vunpack.c.l.b16 %v1372
      %v1388 = vunpack.c.l.b16 %v1373
      %v1389 = vpack.c.b16 %v1386, %v1385
      %v1390 = vpack.c.b16 %v1388, %v1387
      %1393 = vmatprep.subr.bf16.mxu0 0
      %1394 = vmatpush1.bf16.msra.mxu0 0
      %1395 = vmatprep.subr.bf16.mxu0 0
      %1396 = vmatpush1.bf16.msra.mxu0 0
      %1397 = vmatprep.subr.bf16.mxu0 0
      %1398 = vmatpush1.bf16.msra.mxu0 0
      %1399 = vmatprep.subr.bf16.mxu0 0
      %1400 = vmatpush1.bf16.msra.mxu0 0
      %1401 = vmatprep.subr.bf16.mxu0 0
      %1402 = vmatpush1.bf16.msra.mxu0 0
      %1403 = vmatprep.subr.bf16.mxu0 0
      %1404 = vmatpush1.bf16.msra.mxu0 0
      %1405 = vmatprep.subr.bf16.mxu0 0
      %1406 = vmatpush1.bf16.msra.mxu0 %v1390
      %1407 = vmatprep.subr.bf16.mxu0 0
      %1408 = vmatpush1.bf16.msra.mxu0 %v1389
      %1409 = vmatprep.subr.bf16.mxu0 0
      %1410 = vmatpush2.bf16.msra.mxu0 0
      %1411 = vmatprep.subr.bf16.mxu0 0
      %1412 = vmatpush2.bf16.msra.mxu0 0
      %1413 = vmatprep.subr.bf16.mxu0 0
      %1414 = vmatpush2.bf16.msra.mxu0 0
      %1415 = vmatprep.subr.bf16.mxu0 0
      %1416 = vmatpush2.bf16.msra.mxu0 0
      %1417 = vmatprep.subr.bf16.mxu0 0
      %1418 = vmatpush2.bf16.msra.mxu0 0
      %1419 = vmatprep.subr.bf16.mxu0 0
      %1420 = vmatpush2.bf16.msra.mxu0 0
      %1421 = vmatprep.subr.bf16.mxu0 0
      %1422 = vmatpush2.bf16.msra.mxu0 0
      %1423 = vmatprep.subr.bf16.mxu0 0
      %1424 = vmatpush2.bf16.msra.mxu0 0
      %1425 = vmatprep.mubr.bf16.mxu0 0
      %1426 = vmatmul.mubr.bf16.gmra.mxu0 %v1290
      %v1427 = vpop.f32.mrf.mxu0
      %v1428 = vadd.f32 %v1379, %v1427
      %v1429 = vpop.f32.mrf.mxu0
      %v1430 = vpop.f32.mrf.mxu0
      %v1431 = vadd.f32 %v1379, %v1430
      %v1432 = vpop.f32.mrf.mxu0
      %1433 = vmatprep.mubr.bf16.mxu0 0
      %1434 = vmatmul.mubr.bf16.gmra.mxu0 %v1293
      %v1435 = vpop.f32.mrf.mxu0
      %v1436 = vadd.f32 %v1379, %v1435
      %v1437 = vpop.f32.mrf.mxu0
      %v1438 = vpop.f32.mrf.mxu0
      %v1439 = vadd.f32 %v1379, %v1438
      %v1440 = vpop.f32.mrf.mxu0
      %1441 = vmatprep.mubr.bf16.mxu0 0
      %1442 = vmatmul.mubr.bf16.gmra.mxu0 %v1296
      %v1443 = vpop.f32.mrf.mxu0
      %v1444 = vadd.f32 %v1379, %v1443
      %v1445 = vpop.f32.mrf.mxu0
      %v1446 = vpop.f32.mrf.mxu0
      %v1447 = vadd.f32 %v1379, %v1446
      %v1448 = vpop.f32.mrf.mxu0
      %1449 = vmatprep.mubr.bf16.mxu0 0
      %1450 = vmatmul.mubr.bf16.gmra.mxu0 %v1299
      %v1451 = vpop.f32.mrf.mxu0
      %v1452 = vadd.f32 %v1379, %v1451
      %v1453 = vpop.f32.mrf.mxu0
      %v1454 = vpop.f32.mrf.mxu0
      %v1455 = vadd.f32 %v1379, %v1454
      %v1456 = vpop.f32.mrf.mxu0
      %1457 = vdwg.mxu0
      %v1458 = vpack.c.bf16 %v1431, %v1428
      %v1459 = vpack.c.bf16 %v1439, %v1436
      %v1460 = vpack.c.bf16 %v1447, %v1444
      %v1461 = vpack.c.bf16 %v1455, %v1452
      %v1462 = vld [vmem:[#allocation2] sm:$0xf]
      %v1463 = vld [vmem:[#allocation2 + $0x4] sm:$0xf]
      %v1464 = vld [vmem:[#allocation2 + $0x8] sm:$0xf]
      %v1465 = vld [vmem:[#allocation2 + $0xc] sm:$0xf]
      %v1466 = vld [vmem:[#allocation2 + $0x10] sm:$0xf]
      %v1467 = vld [vmem:[#allocation2 + $0x14] sm:$0xf]
      %v1468 = vld [vmem:[#allocation2 + $0x18] sm:$0xf]
      %v1469 = vld [vmem:[#allocation2 + $0x1c] sm:$0xf]
      %v1478 = vunpack.c.l.b16 %v1462
      %v1479 = vunpack.c.l.b16 %v1463
      %v1480 = vunpack.c.l.b16 %v1464
      %v1481 = vunpack.c.l.b16 %v1465
      %v1482 = vunpack.c.l.b16 %v1466
      %v1483 = vunpack.c.l.b16 %v1467
      %v1484 = vunpack.c.l.b16 %v1468
      %v1485 = vunpack.c.l.b16 %v1469
      %v1486 = vpack.c.b16 %v1479, %v1478
      %v1487 = vpack.c.b16 %v1481, %v1480
      %v1488 = vpack.c.b16 %v1483, %v1482
      %v1489 = vpack.c.b16 %v1485, %v1484
      %vm1490 = vcmask 64512
      %v1492 = vsel %vm1490, %v1486, 0
      %v1495 = vsel %vm1490, %v1487, 0
      %v1498 = vsel %vm1490, %v1488, 0
      %v1501 = vsel %vm1490, %v1489, 0
      %v1504 = vsel %vm1490, %v1366, 0
      %v1507 = vsel %vm1490, %v1367, 0
      %v1510 = vsel %vm1490, %v1368, 0
      %v1513 = vsel %vm1490, %v1369, 0
      %1515 = vmatprep.subr.bf16.mxu0 0
      %1516 = vmatpush1.bf16.xpose.msra.mxu0 0
      %1517 = vmatprep.subr.bf16.mxu0 0
      %1518 = vmatpush1.bf16.xpose.msra.mxu0 0
      %1519 = vmatprep.subr.bf16.mxu0 0
      %1520 = vmatpush1.bf16.xpose.msra.mxu0 0
      %1521 = vmatprep.subr.bf16.mxu0 0
      %1522 = vmatpush1.bf16.xpose.msra.mxu0 0
      %1523 = vmatprep.subr.bf16.mxu0 0
      %1524 = vmatpush1.bf16.xpose.msra.mxu0 %v1513
      %1525 = vmatprep.subr.bf16.mxu0 0
      %1526 = vmatpush1.bf16.xpose.msra.mxu0 %v1510
      %1527 = vmatprep.subr.bf16.mxu0 0
      %1528 = vmatpush1.bf16.xpose.msra.mxu0 %v1507
      %1529 = vmatprep.subr.bf16.mxu0 0
      %1530 = vmatpush1.bf16.xpose.msra.mxu0 %v1504
      %1531 = vmatprep.subr.bf16.mxu0 0
      %1532 = vmatpush2.bf16.xpose.msra.mxu0 0
      %1533 = vmatprep.subr.bf16.mxu0 0
      %1534 = vmatpush2.bf16.xpose.msra.mxu0 0
      %1535 = vmatprep.subr.bf16.mxu0 0
      %1536 = vmatpush2.bf16.xpose.msra.mxu0 0
      %1537 = vmatprep.subr.bf16.mxu0 0
      %1538 = vmatpush2.bf16.xpose.msra.mxu0 0
      %1539 = vmatprep.subr.bf16.mxu0 0
      %1540 = vmatpush2.bf16.xpose.msra.mxu0 0
      %1541 = vmatprep.subr.bf16.mxu0 0
      %1542 = vmatpush2.bf16.xpose.msra.mxu0 0
      %1543 = vmatprep.subr.bf16.mxu0 0
      %1544 = vmatpush2.bf16.xpose.msra.mxu0 0
      %1545 = vmatprep.subr.bf16.mxu0 0
      %1546 = vmatpush2.bf16.xpose.msra.mxu0 0
      %1547 = vmatprep.mubr.bf16.mxu0 0
      %1548 = vmatmul.mubr.bf16.gmra.mxu0 %v1492
      %v1549 = vpop.f32.mrf.mxu0
      %v1550 = vadd.f32 0.0, %v1549
      %v1551 = vpop.f32.mrf.mxu0
      %v1552 = vpop.f32.mrf.mxu0
      %v1553 = vadd.f32 0.0, %v1552
      %v1554 = vpop.f32.mrf.mxu0
      %1555 = vmatprep.mubr.bf16.mxu0 0
      %1556 = vmatmul.mubr.bf16.gmra.mxu0 %v1495
      %v1557 = vpop.f32.mrf.mxu0
      %v1558 = vadd.f32 0.0, %v1557
      %v1559 = vpop.f32.mrf.mxu0
      %v1560 = vpop.f32.mrf.mxu0
      %v1561 = vadd.f32 0.0, %v1560
      %v1562 = vpop.f32.mrf.mxu0
      %1563 = vmatprep.mubr.bf16.mxu0 0
      %1564 = vmatmul.mubr.bf16.gmra.mxu0 %v1498
      %v1565 = vpop.f32.mrf.mxu0
      %v1566 = vadd.f32 0.0, %v1565
      %v1567 = vpop.f32.mrf.mxu0
      %v1568 = vpop.f32.mrf.mxu0
      %v1569 = vadd.f32 0.0, %v1568
      %v1570 = vpop.f32.mrf.mxu0
      %1571 = vmatprep.mubr.bf16.mxu0 0
      %1572 = vmatmul.mubr.bf16.gmra.mxu0 %v1501
      %v1573 = vpop.f32.mrf.mxu0
      %v1574 = vadd.f32 0.0, %v1573
      %v1575 = vpop.f32.mrf.mxu0
      %v1576 = vpop.f32.mrf.mxu0
      %v1577 = vadd.f32 0.0, %v1576
      %v1578 = vpop.f32.mrf.mxu0
      %1579 = vdwg.mxu0
      %v1580 = vld [vmem:[#allocation3] sm:$0xff]
      %v1581 = vld [vmem:[#allocation3 + $0x8] sm:$0xff]
      %v1582 = vld [vmem:[#allocation3 + $0x10] sm:$0xff]
      %v1583 = vld [vmem:[#allocation3 + $0x18] sm:$0xff]
      %v1584 = vld [vmem:[#allocation3 + $0x20] sm:$0xff]
      %v1585 = vld [vmem:[#allocation3 + $0x28] sm:$0xff]
      %v1586 = vld [vmem:[#allocation3 + $0x30] sm:$0xff]
      %v1587 = vld [vmem:[#allocation3 + $0x38] sm:$0xff]
      %vm1588 = vcmask 523264
      %v1589 = vsel %vm1588, %v1550, -inf
      %1590 = vmax.xlane.f32.xlu0 %v1589
      %v1591 = vpop.xlane.xlu0 %1590
      %v1592 = vsel %vm1588, %v1553, -inf
      %1593 = vmax.xlane.f32.xlu0 %v1592
      %v1594 = vpop.xlane.xlu0 %1593
      %v1595 = vsel %vm1588, %v1558, -inf
      %1596 = vmax.xlane.f32.xlu0 %v1595
      %v1597 = vpop.xlane.xlu0 %1596
      %v1598 = vsel %vm1588, %v1561, -inf
      %1599 = vmax.xlane.f32.xlu0 %v1598
      %v1600 = vpop.xlane.xlu0 %1599
      %v1601 = vsel %vm1588, %v1566, -inf
      %1602 = vmax.xlane.f32.xlu0 %v1601
      %v1603 = vpop.xlane.xlu0 %1602
      %v1604 = vsel %vm1588, %v1569, -inf
      %1605 = vmax.xlane.f32.xlu0 %v1604
      %v1606 = vpop.xlane.xlu0 %1605
      %v1607 = vsel %vm1588, %v1574, -inf
      %1608 = vmax.xlane.f32.xlu0 %v1607
      %v1609 = vpop.xlane.xlu0 %1608
      %v1610 = vsel %vm1588, %v1577, -inf
      %1611 = vmax.xlane.f32.xlu0 %v1610
      %v1612 = vpop.xlane.xlu0 %1611
      %v1613 = vmax.f32 %v1580, %v1591
      %v1614 = vmax.f32 %v1581, %v1594
      %v1615 = vmax.f32 %v1582, %v1597
      %v1616 = vmax.f32 %v1583, %v1600
      %v1617 = vmax.f32 %v1584, %v1603
      %v1618 = vmax.f32 %v1585, %v1606
      %v1619 = vmax.f32 %v1586, %v1609
      %v1620 = vmax.f32 %v1587, %v1612
      %v1621 = vsub.f32 %v1580, %v1613
      %v1622 = vsub.f32 %v1581, %v1614
      %v1623 = vsub.f32 %v1582, %v1615
      %v1624 = vsub.f32 %v1583, %v1616
      %v1625 = vsub.f32 %v1584, %v1617
      %v1626 = vsub.f32 %v1585, %v1618
      %v1627 = vsub.f32 %v1586, %v1619
      %v1628 = vsub.f32 %v1587, %v1620
      %v1629 = vmul.f32 %v1621, 1.442695
      %v1630 = vpow.pop %v1629
      %v1631 = vmul.f32 %v1622, 1.442695
      %v1632 = vpow.pop %v1631
      %v1633 = vmul.f32 %v1623, 1.442695
      %v1634 = vpow.pop %v1633
      %v1635 = vmul.f32 %v1624, 1.442695
      %v1636 = vpow.pop %v1635
      %v1637 = vmul.f32 %v1625, 1.442695
      %v1638 = vpow.pop %v1637
      %v1639 = vmul.f32 %v1626, 1.442695
      %v1640 = vpow.pop %v1639
      %v1641 = vmul.f32 %v1627, 1.442695
      %v1642 = vpow.pop %v1641
      %v1643 = vmul.f32 %v1628, 1.442695
      %v1644 = vpow.pop %v1643
      %1646 = vset.pattern.permute.xlu0 0
      %1647 = vperm.xlu0 %1646, %v1613
      %v1648 = vpop.permute.xlu0 %1647
      %1651 = vset.pattern.permute.xlu0 0
      %1652 = vperm.xlu0 %1651, %v1614
      %v1653 = vpop.permute.xlu0 %1652
      %1656 = vset.pattern.permute.xlu0 0
      %1657 = vperm.xlu0 %1656, %v1615
      %v1658 = vpop.permute.xlu0 %1657
      %1661 = vset.pattern.permute.xlu0 0
      %1662 = vperm.xlu0 %1661, %v1616
      %v1663 = vpop.permute.xlu0 %1662
      %1666 = vset.pattern.permute.xlu0 0
      %1667 = vperm.xlu0 %1666, %v1617
      %v1668 = vpop.permute.xlu0 %1667
      %1671 = vset.pattern.permute.xlu0 0
      %1672 = vperm.xlu0 %1671, %v1618
      %v1673 = vpop.permute.xlu0 %1672
      %1676 = vset.pattern.permute.xlu0 0
      %1677 = vperm.xlu0 %1676, %v1619
      %v1678 = vpop.permute.xlu0 %1677
      %1681 = vset.pattern.permute.xlu0 0
      %1682 = vperm.xlu0 %1681, %v1620
      %v1683 = vpop.permute.xlu0 %1682
      %v1685 = vsub.f32 %v1550, %v1648
      %v1686 = vsub.f32 %v1553, %v1653
      %v1687 = vsub.f32 %v1558, %v1658
      %v1688 = vsub.f32 %v1561, %v1663
      %v1689 = vsub.f32 %v1566, %v1668
      %v1690 = vsub.f32 %v1569, %v1673
      %v1691 = vsub.f32 %v1574, %v1678
      %v1692 = vsub.f32 %v1577, %v1683
      %v1693 = vmul.f32 %v1685, 1.442695
      %v1694 = vpow.pop %v1693
      %v1695 = vmul.f32 %v1686, 1.442695
      %v1696 = vpow.pop %v1695
      %v1697 = vmul.f32 %v1687, 1.442695
      %v1698 = vpow.pop %v1697
      %v1699 = vmul.f32 %v1688, 1.442695
      %v1700 = vpow.pop %v1699
      %v1701 = vmul.f32 %v1689, 1.442695
      %v1702 = vpow.pop %v1701
      %v1703 = vmul.f32 %v1690, 1.442695
      %v1704 = vpow.pop %v1703
      %v1705 = vmul.f32 %v1691, 1.442695
      %v1706 = vpow.pop %v1705
      %v1707 = vmul.f32 %v1692, 1.442695
      %v1708 = vpow.pop %v1707
      %v1709 = vld [vmem:[#allocation4] sm:$0xff]
      %v1710 = vld [vmem:[#allocation4 + $0x8] sm:$0xff]
      %v1711 = vld [vmem:[#allocation4 + $0x10] sm:$0xff]
      %v1712 = vld [vmem:[#allocation4 + $0x18] sm:$0xff]
      %v1713 = vld [vmem:[#allocation4 + $0x20] sm:$0xff]
      %v1714 = vld [vmem:[#allocation4 + $0x28] sm:$0xff]
      %v1715 = vld [vmem:[#allocation4 + $0x30] sm:$0xff]
      %v1716 = vld [vmem:[#allocation4 + $0x38] sm:$0xff]
      %v1717 = vmul.f32 %v1630, %v1709
      %v1718 = vmul.f32 %v1632, %v1710
      %v1719 = vmul.f32 %v1634, %v1711
      %v1720 = vmul.f32 %v1636, %v1712
      %v1721 = vmul.f32 %v1638, %v1713
      %v1722 = vmul.f32 %v1640, %v1714
      %v1723 = vmul.f32 %v1642, %v1715
      %v1724 = vmul.f32 %v1644, %v1716
      %v1725 = vsel %vm1588, %v1694, 0.0
      %1726 = vadd.xlane.f32.xlu0 %v1725
      %v1727 = vpop.xlane.xlu0 %1726
      %v1728 = vsel %vm1588, %v1696, 0.0
      %1729 = vadd.xlane.f32.xlu0 %v1728
      %v1730 = vpop.xlane.xlu0 %1729
      %v1731 = vsel %vm1588, %v1698, 0.0
      %1732 = vadd.xlane.f32.xlu0 %v1731
      %v1733 = vpop.xlane.xlu0 %1732
      %v1734 = vsel %vm1588, %v1700, 0.0
      %1735 = vadd.xlane.f32.xlu0 %v1734
      %v1736 = vpop.xlane.xlu0 %1735
      %v1737 = vsel %vm1588, %v1702, 0.0
      %1738 = vadd.xlane.f32.xlu0 %v1737
      %v1739 = vpop.xlane.xlu0 %1738
      %v1740 = vsel %vm1588, %v1704, 0.0
      %1741 = vadd.xlane.f32.xlu0 %v1740
      %v1742 = vpop.xlane.xlu0 %1741
      %v1743 = vsel %vm1588, %v1706, 0.0
      %1744 = vadd.xlane.f32.xlu0 %v1743
      %v1745 = vpop.xlane.xlu0 %1744
      %v1746 = vsel %vm1588, %v1708, 0.0
      %1747 = vadd.xlane.f32.xlu0 %v1746
      %v1748 = vpop.xlane.xlu0 %1747
      %v1749 = vadd.f32 %v1717, %v1727
      %v1750 = vadd.f32 %v1718, %v1730
      %v1751 = vadd.f32 %v1719, %v1733
      %v1752 = vadd.f32 %v1720, %v1736
      %v1753 = vadd.f32 %v1721, %v1739
      %v1754 = vadd.f32 %v1722, %v1742
      %v1755 = vadd.f32 %v1723, %v1745
      %v1756 = vadd.f32 %v1724, %v1748
      %vm1757 = vcmask 7168
      %1758 = vst.msk [vmem:[#allocation4] sm:$0xff] %vm1757, %v1749
      %1759 = vst.msk [vmem:[#allocation4 + $0x8] sm:$0xff] %vm1757, %v1750
      %1760 = vst.msk [vmem:[#allocation4 + $0x10] sm:$0xff] %vm1757, %v1751
      %1761 = vst.msk [vmem:[#allocation4 + $0x18] sm:$0xff] %vm1757, %v1752
      %1762 = vst.msk [vmem:[#allocation4 + $0x20] sm:$0xff] %vm1757, %v1753
      %1763 = vst.msk [vmem:[#allocation4 + $0x28] sm:$0xff] %vm1757, %v1754
      %1764 = vst.msk [vmem:[#allocation4 + $0x30] sm:$0xff] %vm1757, %v1755
      %1765 = vst.msk [vmem:[#allocation4 + $0x38] sm:$0xff] %vm1757, %v1756
      %v1766 = vld [vmem:[#allocation5] sm:$0xff]
      %v1767 = vld [vmem:[#allocation5 + $0x8] sm:$0xff]
      %v1768 = vld [vmem:[#allocation5 + $0x10] sm:$0xff]
      %v1769 = vld [vmem:[#allocation5 + $0x18] sm:$0xff]
      %v1770 = vld [vmem:[#allocation5 + $0x20] sm:$0xff]
      %v1771 = vld [vmem:[#allocation5 + $0x28] sm:$0xff]
      %v1772 = vld [vmem:[#allocation5 + $0x30] sm:$0xff]
      %v1773 = vld [vmem:[#allocation5 + $0x38] sm:$0xff]
      %1775 = vset.pattern.permute.xlu0 0
      %1776 = vperm.xlu0 %1775, %v1630
      %v1777 = vpop.permute.xlu0 %1776
      %1780 = vset.pattern.permute.xlu0 0
      %1781 = vperm.xlu0 %1780, %v1632
      %v1782 = vpop.permute.xlu0 %1781
      %1785 = vset.pattern.permute.xlu0 0
      %1786 = vperm.xlu0 %1785, %v1634
      %v1787 = vpop.permute.xlu0 %1786
      %1790 = vset.pattern.permute.xlu0 0
      %1791 = vperm.xlu0 %1790, %v1636
      %v1792 = vpop.permute.xlu0 %1791
      %1795 = vset.pattern.permute.xlu0 0
      %1796 = vperm.xlu0 %1795, %v1638
      %v1797 = vpop.permute.xlu0 %1796
      %1800 = vset.pattern.permute.xlu0 0
      %1801 = vperm.xlu0 %1800, %v1640
      %v1802 = vpop.permute.xlu0 %1801
      %1805 = vset.pattern.permute.xlu0 0
      %1806 = vperm.xlu0 %1805, %v1642
      %v1807 = vpop.permute.xlu0 %1806
      %1810 = vset.pattern.permute.xlu0 0
      %1811 = vperm.xlu0 %1810, %v1644
      %v1812 = vpop.permute.xlu0 %1811
      %v1814 = vmul.f32 %v1777, %v1766
      %v1815 = vmul.f32 %v1782, %v1767
      %v1816 = vmul.f32 %v1787, %v1768
      %v1817 = vmul.f32 %v1792, %v1769
      %v1818 = vmul.f32 %v1797, %v1770
      %v1819 = vmul.f32 %v1802, %v1771
      %v1820 = vmul.f32 %v1807, %v1772
      %v1821 = vmul.f32 %v1812, %v1773
      %v1822 = vpack.c.bf16 %v1696, %v1694
      %v1823 = vpack.c.bf16 %v1700, %v1698
      %v1824 = vpack.c.bf16 %v1704, %v1702
      %v1825 = vpack.c.bf16 %v1708, %v1706
      %v1827 = vsel %vm1588, %v1822, 0
      %v1830 = vsel %vm1588, %v1823, 0
      %v1833 = vsel %vm1588, %v1824, 0
      %v1836 = vsel %vm1588, %v1825, 0
      %1838 = vmatprep.subr.bf16.mxu0 0
      %1839 = vmatpush1.bf16.msra.mxu0 0
      %1840 = vmatprep.subr.bf16.mxu0 0
      %1841 = vmatpush1.bf16.msra.mxu0 0
      %1842 = vmatprep.subr.bf16.mxu0 0
      %1843 = vmatpush1.bf16.msra.mxu0 0
      %1844 = vmatprep.subr.bf16.mxu0 0
      %1845 = vmatpush1.bf16.msra.mxu0 0
      %1846 = vmatprep.subr.bf16.mxu0 0
      %1847 = vmatpush1.bf16.msra.mxu0 %v1461
      %1848 = vmatprep.subr.bf16.mxu0 0
      %1849 = vmatpush1.bf16.msra.mxu0 %v1460
      %1850 = vmatprep.subr.bf16.mxu0 0
      %1851 = vmatpush1.bf16.msra.mxu0 %v1459
      %1852 = vmatprep.subr.bf16.mxu0 0
      %1853 = vmatpush1.bf16.msra.mxu0 %v1458
      %1854 = vmatprep.subr.bf16.mxu0 0
      %1855 = vmatpush2.bf16.msra.mxu0 0
      %1856 = vmatprep.subr.bf16.mxu0 0
      %1857 = vmatpush2.bf16.msra.mxu0 0
      %1858 = vmatprep.subr.bf16.mxu0 0
      %1859 = vmatpush2.bf16.msra.mxu0 0
      %1860 = vmatprep.subr.bf16.mxu0 0
      %1861 = vmatpush2.bf16.msra.mxu0 0
      %1862 = vmatprep.subr.bf16.mxu0 0
      %1863 = vmatpush2.bf16.msra.mxu0 0
      %1864 = vmatprep.subr.bf16.mxu0 0
      %1865 = vmatpush2.bf16.msra.mxu0 0
      %1866 = vmatprep.subr.bf16.mxu0 0
      %1867 = vmatpush2.bf16.msra.mxu0 0
      %1868 = vmatprep.subr.bf16.mxu0 0
      %1869 = vmatpush2.bf16.msra.mxu0 0
      %1870 = vmatprep.mubr.bf16.mxu0 0
      %1871 = vmatmul.mubr.bf16.gmra.mxu0 %v1827
      %v1872 = vpop.f32.mrf.mxu0
      %v1873 = vadd.f32 0.0, %v1872
      %v1874 = vpop.f32.mrf.mxu0
      %v1875 = vpop.f32.mrf.mxu0
      %v1876 = vadd.f32 0.0, %v1875
      %v1877 = vpop.f32.mrf.mxu0
      %1878 = vmatprep.mubr.bf16.mxu0 0
      %1879 = vmatmul.mubr.bf16.gmra.mxu0 %v1830
      %v1880 = vpop.f32.mrf.mxu0
      %v1881 = vadd.f32 0.0, %v1880
      %v1882 = vpop.f32.mrf.mxu0
      %v1883 = vpop.f32.mrf.mxu0
      %v1884 = vadd.f32 0.0, %v1883
      %v1885 = vpop.f32.mrf.mxu0
      %1886 = vmatprep.mubr.bf16.mxu0 0
      %1887 = vmatmul.mubr.bf16.gmra.mxu0 %v1833
      %v1888 = vpop.f32.mrf.mxu0
      %v1889 = vadd.f32 0.0, %v1888
      %v1890 = vpop.f32.mrf.mxu0
      %v1891 = vpop.f32.mrf.mxu0
      %v1892 = vadd.f32 0.0, %v1891
      %v1893 = vpop.f32.mrf.mxu0
      %1894 = vmatprep.mubr.bf16.mxu0 0
      %1895 = vmatmul.mubr.bf16.gmra.mxu0 %v1836
      %v1896 = vpop.f32.mrf.mxu0
      %v1897 = vadd.f32 0.0, %v1896
      %v1898 = vpop.f32.mrf.mxu0
      %v1899 = vpop.f32.mrf.mxu0
      %v1900 = vadd.f32 0.0, %v1899
      %v1901 = vpop.f32.mrf.mxu0
      %1902 = vdwg.mxu0
      %v1903 = vadd.f32 %v1814, %v1873
      %v1904 = vadd.f32 %v1815, %v1876
      %v1905 = vadd.f32 %v1816, %v1881
      %v1906 = vadd.f32 %v1817, %v1884
      %v1907 = vadd.f32 %v1818, %v1889
      %v1908 = vadd.f32 %v1819, %v1892
      %v1909 = vadd.f32 %v1820, %v1897
      %v1910 = vadd.f32 %v1821, %v1900
      %1911 = vst.msk [vmem:[#allocation5] sm:$0xff] %vm1490, %v1903
      %1912 = vst.msk [vmem:[#allocation5 + $0x8] sm:$0xff] %vm1490, %v1904
      %1913 = vst.msk [vmem:[#allocation5 + $0x10] sm:$0xff] %vm1490, %v1905
      %1914 = vst.msk [vmem:[#allocation5 + $0x18] sm:$0xff] %vm1490, %v1906
      %1915 = vst.msk [vmem:[#allocation5 + $0x20] sm:$0xff] %vm1490, %v1907
      %1916 = vst.msk [vmem:[#allocation5 + $0x28] sm:$0xff] %vm1490, %v1908
      %1917 = vst.msk [vmem:[#allocation5 + $0x30] sm:$0xff] %vm1490, %v1909
      %1918 = vst.msk [vmem:[#allocation5 + $0x38] sm:$0xff] %vm1490, %v1910
      %1919 = vst.msk [vmem:[#allocation3] sm:$0xff] %vm1757, %v1613
      %1920 = vst.msk [vmem:[#allocation3 + $0x8] sm:$0xff] %vm1757, %v1614
      %1921 = vst.msk [vmem:[#allocation3 + $0x10] sm:$0xff] %vm1757, %v1615
      %1922 = vst.msk [vmem:[#allocation3 + $0x18] sm:$0xff] %vm1757, %v1616
      %1923 = vst.msk [vmem:[#allocation3 + $0x20] sm:$0xff] %vm1757, %v1617
      %1924 = vst.msk [vmem:[#allocation3 + $0x28] sm:$0xff] %vm1757, %v1618
      %1925 = vst.msk [vmem:[#allocation3 + $0x30] sm:$0xff] %vm1757, %v1619
      %1926 = vst.msk [vmem:[#allocation3 + $0x38] sm:$0xff] %vm1757, %v1620
      // Predicated region
      $region101: #{tpu_custom_call.1} parent=91 // pred_check
        %p1927 = pneg %p786
      $region102: #{tpu_custom_call.1} parent=91 // pred_check_branch
        %1929 = sbr.rel (%p1927) target = $region104
      $region103: #{tpu_custom_call.1} parent=91 // pred_region
        %v1930 = vld [vmem:[#allocation5] sm:$0xff]
        %v1931 = vld [vmem:[#allocation5 + $0x8] sm:$0xff]
        %v1932 = vld [vmem:[#allocation5 + $0x10] sm:$0xff]
        %v1933 = vld [vmem:[#allocation5 + $0x18] sm:$0xff]
        %v1934 = vld [vmem:[#allocation5 + $0x20] sm:$0xff]
        %v1935 = vld [vmem:[#allocation5 + $0x28] sm:$0xff]
        %v1936 = vld [vmem:[#allocation5 + $0x30] sm:$0xff]
        %v1937 = vld [vmem:[#allocation5 + $0x38] sm:$0xff]
        %v1938 = vld [vmem:[#allocation4] sm:$0xff]
        %v1939 = vld [vmem:[#allocation4 + $0x8] sm:$0xff]
        %v1940 = vld [vmem:[#allocation4 + $0x10] sm:$0xff]
        %v1941 = vld [vmem:[#allocation4 + $0x18] sm:$0xff]
        %v1942 = vld [vmem:[#allocation4 + $0x20] sm:$0xff]
        %v1943 = vld [vmem:[#allocation4 + $0x28] sm:$0xff]
        %v1944 = vld [vmem:[#allocation4 + $0x30] sm:$0xff]
        %v1945 = vld [vmem:[#allocation4 + $0x38] sm:$0xff]
        %v1946 = vrcp.pop %v1938
        %v1947 = vrcp.pop %v1939
        %v1948 = vrcp.pop %v1940
        %v1949 = vrcp.pop %v1941
        %v1950 = vrcp.pop %v1942
        %v1951 = vrcp.pop %v1943
        %v1952 = vrcp.pop %v1944
        %v1953 = vrcp.pop %v1945
        %1955 = vset.pattern.permute.xlu0 0
        %1956 = vperm.xlu0 %1955, %v1946
        %v1957 = vpop.permute.xlu0 %1956
        %1960 = vset.pattern.permute.xlu0 0
        %1961 = vperm.xlu0 %1960, %v1947
        %v1962 = vpop.permute.xlu0 %1961
        %1965 = vset.pattern.permute.xlu0 0
        %1966 = vperm.xlu0 %1965, %v1948
        %v1967 = vpop.permute.xlu0 %1966
        %1970 = vset.pattern.permute.xlu0 0
        %1971 = vperm.xlu0 %1970, %v1949
        %v1972 = vpop.permute.xlu0 %1971
        %1975 = vset.pattern.permute.xlu0 0
        %1976 = vperm.xlu0 %1975, %v1950
        %v1977 = vpop.permute.xlu0 %1976
        %1980 = vset.pattern.permute.xlu0 0
        %1981 = vperm.xlu0 %1980, %v1951
        %v1982 = vpop.permute.xlu0 %1981
        %1985 = vset.pattern.permute.xlu0 0
        %1986 = vperm.xlu0 %1985, %v1952
        %v1987 = vpop.permute.xlu0 %1986
        %1990 = vset.pattern.permute.xlu0 0
        %1991 = vperm.xlu0 %1990, %v1953
        %v1992 = vpop.permute.xlu0 %1991
        %v1994 = vmul.f32 %v1930, %v1957
        %v1995 = vmul.f32 %v1931, %v1962
        %v1996 = vmul.f32 %v1932, %v1967
        %v1997 = vmul.f32 %v1933, %v1972
        %v1998 = vmul.f32 %v1934, %v1977
        %v1999 = vmul.f32 %v1935, %v1982
        %v2000 = vmul.f32 %v1936, %v1987
        %v2001 = vmul.f32 %v1937, %v1992
        %v2002 = vld [vmem:[#allocation6] sm:$0xff]
        %v2003 = vld [vmem:[#allocation6 + $0x8] sm:$0xff]
        %v2004 = vld [vmem:[#allocation6 + $0x10] sm:$0xff]
        %v2005 = vld [vmem:[#allocation6 + $0x18] sm:$0xff]
        %v2006 = vld [vmem:[#allocation6 + $0x20] sm:$0xff]
        %v2007 = vld [vmem:[#allocation6 + $0x28] sm:$0xff]
        %v2008 = vld [vmem:[#allocation6 + $0x30] sm:$0xff]
        %v2009 = vld [vmem:[#allocation6 + $0x38] sm:$0xff]
        %v2010 = vpack.c.bf16 %v1995, %v1994
        %v2011 = vpack.c.bf16 %v1997, %v1996
        %v2012 = vpack.c.bf16 %v1999, %v1998
        %v2013 = vpack.c.bf16 %v2001, %v2000
        %v2014 = vld [vmem:[%s773] sm:$0xf]
        %v2016 = vsel %vm1490, %v2010, 0
        %v2019 = vsel %vm1490, %v2011, 0
        %v2022 = vsel %vm1490, %v2012, 0
        %v2025 = vsel %vm1490, %v2013, 0
        %vm2027 = vcmask 1043456
        %v2029 = vsel %vm2027, %v2014, 0
        %2031 = vmatprep.subr.bf16.mxu0 0
        %2032 = vmatpush1.bf16.msra.mxu0 0
        %2033 = vmatprep.subr.bf16.mxu0 0
        %2034 = vmatpush1.bf16.msra.mxu0 0
        %2035 = vmatprep.subr.bf16.mxu0 0
        %2036 = vmatpush1.bf16.msra.mxu0 0
        %2037 = vmatprep.subr.bf16.mxu0 0
        %2038 = vmatpush1.bf16.msra.mxu0 0
        %2039 = vmatprep.subr.bf16.mxu0 0
        %2040 = vmatpush1.bf16.msra.mxu0 0
        %2041 = vmatprep.subr.bf16.mxu0 0
        %2042 = vmatpush1.bf16.msra.mxu0 0
        %2043 = vmatprep.subr.bf16.mxu0 0
        %2044 = vmatpush1.bf16.msra.mxu0 0
        %2045 = vmatprep.subr.bf16.mxu0 0
        %2046 = vmatpush1.bf16.msra.mxu0 %v2029
        %2047 = vmatprep.subr.bf16.mxu0 0
        %2048 = vmatpush2.bf16.msra.mxu0 0
        %2049 = vmatprep.subr.bf16.mxu0 0
        %2050 = vmatpush2.bf16.msra.mxu0 0
        %2051 = vmatprep.subr.bf16.mxu0 0
        %2052 = vmatpush2.bf16.msra.mxu0 0
        %2053 = vmatprep.subr.bf16.mxu0 0
        %2054 = vmatpush2.bf16.msra.mxu0 0
        %2055 = vmatprep.subr.bf16.mxu0 0
        %2056 = vmatpush2.bf16.msra.mxu0 0
        %2057 = vmatprep.subr.bf16.mxu0 0
        %2058 = vmatpush2.bf16.msra.mxu0 0
        %2059 = vmatprep.subr.bf16.mxu0 0
        %2060 = vmatpush2.bf16.msra.mxu0 0
        %2061 = vmatprep.subr.bf16.mxu0 0
        %2062 = vmatpush2.bf16.msra.mxu0 0
        %2063 = vmatprep.mubr.bf16.mxu0 0
        %2064 = vmatmul.mubr.bf16.gmra.mxu0 %v2016
        %v2065 = vpop.f32.mrf.mxu0
        %v2066 = vadd.f32 0.0, %v2065
        %v2067 = vpop.f32.mrf.mxu0
        %v2068 = vpop.f32.mrf.mxu0
        %v2069 = vadd.f32 0.0, %v2068
        %v2070 = vpop.f32.mrf.mxu0
        %2071 = vmatprep.mubr.bf16.mxu0 0
        %2072 = vmatmul.mubr.bf16.gmra.mxu0 %v2019
        %v2073 = vpop.f32.mrf.mxu0
        %v2074 = vadd.f32 0.0, %v2073
        %v2075 = vpop.f32.mrf.mxu0
        %v2076 = vpop.f32.mrf.mxu0
        %v2077 = vadd.f32 0.0, %v2076
        %v2078 = vpop.f32.mrf.mxu0
        %2079 = vmatprep.mubr.bf16.mxu0 0
        %2080 = vmatmul.mubr.bf16.gmra.mxu0 %v2022
        %v2081 = vpop.f32.mrf.mxu0
        %v2082 = vadd.f32 0.0, %v2081
        %v2083 = vpop.f32.mrf.mxu0
        %v2084 = vpop.f32.mrf.mxu0
        %v2085 = vadd.f32 0.0, %v2084
        %v2086 = vpop.f32.mrf.mxu0
        %2087 = vmatprep.mubr.bf16.mxu0 0
        %2088 = vmatmul.mubr.bf16.gmra.mxu0 %v2025
        %v2089 = vpop.f32.mrf.mxu0
        %v2090 = vadd.f32 0.0, %v2089
        %v2091 = vpop.f32.mrf.mxu0
        %v2092 = vpop.f32.mrf.mxu0
        %v2093 = vadd.f32 0.0, %v2092
        %v2094 = vpop.f32.mrf.mxu0
        %2095 = vdwg.mxu0
        %v2096 = vadd.f32 %v2002, %v2066
        %v2097 = vadd.f32 %v2003, %v2069
        %v2098 = vadd.f32 %v2004, %v2074
        %v2099 = vadd.f32 %v2005, %v2077
        %v2100 = vadd.f32 %v2006, %v2082
        %v2101 = vadd.f32 %v2007, %v2085
        %v2102 = vadd.f32 %v2008, %v2090
        %v2103 = vadd.f32 %v2009, %v2093
        %2104 = vst.msk [vmem:[#allocation6] sm:$0xff] %vm1128, %v2096
        %2105 = vst.msk [vmem:[#allocation6 + $0x8] sm:$0xff] %vm1128, %v2097
        %2106 = vst.msk [vmem:[#allocation6 + $0x10] sm:$0xff] %vm1128, %v2098
        %2107 = vst.msk [vmem:[#allocation6 + $0x18] sm:$0xff] %vm1128, %v2099
        %2108 = vst.msk [vmem:[#allocation6 + $0x20] sm:$0xff] %vm1128, %v2100
        %2109 = vst.msk [vmem:[#allocation6 + $0x28] sm:$0xff] %vm1128, %v2101
        %2110 = vst.msk [vmem:[#allocation6 + $0x30] sm:$0xff] %vm1128, %v2102
        %2111 = vst.msk [vmem:[#allocation6 + $0x38] sm:$0xff] %vm1128, %v2103
      $region104: #{tpu_custom_call.1} parent=91 // pred_fallthru
        _
      %p2112 = scmp.eq.s32.totalorder %s37, 3
      %p2113 = pnand %p2112, %p786
      %p2114 = pneg %p2113
      // Predicated region
      $region105: #{tpu_custom_call.1} parent=91 // pred_check
        _
      $region106: #{tpu_custom_call.1} parent=91 // pred_check_branch
        %2116 = sbr.rel (%p2113) target = $region108
      $region107: #{tpu_custom_call.1} parent=91 // pred_region
        %v2117 = vld [vmem:[#allocation6] sm:$0xff]
        %v2118 = vld [vmem:[#allocation6 + $0x8] sm:$0xff]
        %v2119 = vld [vmem:[#allocation6 + $0x10] sm:$0xff]
        %v2120 = vld [vmem:[#allocation6 + $0x18] sm:$0xff]
        %v2121 = vld [vmem:[#allocation6 + $0x20] sm:$0xff]
        %v2122 = vld [vmem:[#allocation6 + $0x28] sm:$0xff]
        %v2123 = vld [vmem:[#allocation6 + $0x30] sm:$0xff]
        %v2124 = vld [vmem:[#allocation6 + $0x38] sm:$0xff]
        %v2125 = vld [vmem:[%s11] sm:$0x1]
        %v2127 = vlaneseq
        %v2128 = vshrl.u32 %v2127, 7
        %v2129 = vsub.s32 0, %v2128
        %v2130 = vrot.slane %v2125, %v2129
        %v2132 = vadd.f32 %v2117, %v2130
        %v2133 = vadd.f32 %v2118, %v2130
        %v2134 = vadd.f32 %v2119, %v2130
        %v2135 = vadd.f32 %v2120, %v2130
        %v2136 = vadd.f32 %v2121, %v2130
        %v2137 = vadd.f32 %v2122, %v2130
        %v2138 = vadd.f32 %v2123, %v2130
        %v2139 = vadd.f32 %v2124, %v2130
        %v2140 = vld [vmem:[%s734] sm:$0xff]
        %v2141 = vld [vmem:[%s734 + $0x8] sm:$0xff]
        %v2142 = vld [vmem:[%s734 + $0x10] sm:$0xff]
        %v2143 = vld [vmem:[%s734 + $0x18] sm:$0xff]
        %v2144 = vld [vmem:[%s734 + $0x20] sm:$0xff]
        %v2145 = vld [vmem:[%s734 + $0x28] sm:$0xff]
        %v2146 = vld [vmem:[%s734 + $0x30] sm:$0xff]
        %v2147 = vld [vmem:[%s734 + $0x38] sm:$0xff]
        %v2148 = vadd.f32 %v2132, %v2140
        %v2149 = vadd.f32 %v2133, %v2141
        %v2150 = vadd.f32 %v2134, %v2142
        %v2151 = vadd.f32 %v2135, %v2143
        %v2152 = vadd.f32 %v2136, %v2144
        %v2153 = vadd.f32 %v2137, %v2145
        %v2154 = vadd.f32 %v2138, %v2146
        %v2155 = vadd.f32 %v2139, %v2147
        %v2156 = vld [vmem:[%s12] sm:$0x1]
        %v2157 = vld [vmem:[%s13] sm:$0x1]
        %v2158 = vsel %vm1128, %v2148, 0.0
        %2159 = vadd.xlane.f32.xlu0 %v2158
        %v2160 = vpop.xlane.xlu0 %2159
        %v2161 = vsel %vm1128, %v2149, 0.0
        %2162 = vadd.xlane.f32.xlu0 %v2161
        %v2163 = vpop.xlane.xlu0 %2162
        %v2164 = vsel %vm1128, %v2150, 0.0
        %2165 = vadd.xlane.f32.xlu0 %v2164
        %v2166 = vpop.xlane.xlu0 %2165
        %v2167 = vsel %vm1128, %v2151, 0.0
        %2168 = vadd.xlane.f32.xlu0 %v2167
        %v2169 = vpop.xlane.xlu0 %2168
        %v2170 = vsel %vm1128, %v2152, 0.0
        %2171 = vadd.xlane.f32.xlu0 %v2170
        %v2172 = vpop.xlane.xlu0 %2171
        %v2173 = vsel %vm1128, %v2153, 0.0
        %2174 = vadd.xlane.f32.xlu0 %v2173
        %v2175 = vpop.xlane.xlu0 %2174
        %v2176 = vsel %vm1128, %v2154, 0.0
        %2177 = vadd.xlane.f32.xlu0 %v2176
        %v2178 = vpop.xlane.xlu0 %2177
        %v2179 = vsel %vm1128, %v2155, 0.0
        %2180 = vadd.xlane.f32.xlu0 %v2179
        %v2181 = vpop.xlane.xlu0 %2180
        %v2182 = vmul.f32 %v2160, %v1153
        %v2183 = vmul.f32 %v2163, %v1153
        %v2184 = vmul.f32 %v2166, %v1153
        %v2185 = vmul.f32 %v2169, %v1153
        %v2186 = vmul.f32 %v2172, %v1153
        %v2187 = vmul.f32 %v2175, %v1153
        %v2188 = vmul.f32 %v2178, %v1153
        %v2189 = vmul.f32 %v2181, %v1153
        %v2190 = vsub.f32 %v2148, %v2182
        %v2191 = vsub.f32 %v2149, %v2183
        %v2192 = vsub.f32 %v2150, %v2184
        %v2193 = vsub.f32 %v2151, %v2185
        %v2194 = vsub.f32 %v2152, %v2186
        %v2195 = vsub.f32 %v2153, %v2187
        %v2196 = vsub.f32 %v2154, %v2188
        %v2197 = vsub.f32 %v2155, %v2189
        %v2198 = vmul.f32 %v2190, %v2190
        %v2199 = vmul.f32 %v2191, %v2191
        %v2200 = vmul.f32 %v2192, %v2192
        %v2201 = vmul.f32 %v2193, %v2193
        %v2202 = vmul.f32 %v2194, %v2194
        %v2203 = vmul.f32 %v2195, %v2195
        %v2204 = vmul.f32 %v2196, %v2196
        %v2205 = vmul.f32 %v2197, %v2197
        %v2206 = vsel %vm1128, %v2198, 0.0
        %2207 = vadd.xlane.f32.xlu0 %v2206
        %v2208 = vpop.xlane.xlu0 %2207
        %v2209 = vsel %vm1128, %v2199, 0.0
        %2210 = vadd.xlane.f32.xlu0 %v2209
        %v2211 = vpop.xlane.xlu0 %2210
        %v2212 = vsel %vm1128, %v2200, 0.0
        %2213 = vadd.xlane.f32.xlu0 %v2212
        %v2214 = vpop.xlane.xlu0 %2213
        %v2215 = vsel %vm1128, %v2201, 0.0
        %2216 = vadd.xlane.f32.xlu0 %v2215
        %v2217 = vpop.xlane.xlu0 %2216
        %v2218 = vsel %vm1128, %v2202, 0.0
        %2219 = vadd.xlane.f32.xlu0 %v2218
        %v2220 = vpop.xlane.xlu0 %2219
        %v2221 = vsel %vm1128, %v2203, 0.0
        %2222 = vadd.xlane.f32.xlu0 %v2221
        %v2223 = vpop.xlane.xlu0 %2222
        %v2224 = vsel %vm1128, %v2204, 0.0
        %2225 = vadd.xlane.f32.xlu0 %v2224
        %v2226 = vpop.xlane.xlu0 %2225
        %v2227 = vsel %vm1128, %v2205, 0.0
        %2228 = vadd.xlane.f32.xlu0 %v2227
        %v2229 = vpop.xlane.xlu0 %2228
        %v2230 = vmul.f32 %v2208, %v1153
        %v2231 = vmul.f32 %v2211, %v1153
        %v2232 = vmul.f32 %v2214, %v1153
        %v2233 = vmul.f32 %v2217, %v1153
        %v2234 = vmul.f32 %v2220, %v1153
        %v2235 = vmul.f32 %v2223, %v1153
        %v2236 = vmul.f32 %v2226, %v1153
        %v2237 = vmul.f32 %v2229, %v1153
        %v2238 = vadd.f32 %v2230, 1e-05
        %v2239 = vadd.f32 %v2231, 1e-05
        %v2240 = vadd.f32 %v2232, 1e-05
        %v2241 = vadd.f32 %v2233, 1e-05
        %v2242 = vadd.f32 %v2234, 1e-05
        %v2243 = vadd.f32 %v2235, 1e-05
        %v2244 = vadd.f32 %v2236, 1e-05
        %v2245 = vadd.f32 %v2237, 1e-05
        %v2246 = vrsqrt.pop %v2238
        %v2247 = vrsqrt.pop %v2239
        %v2248 = vrsqrt.pop %v2240
        %v2249 = vrsqrt.pop %v2241
        %v2250 = vrsqrt.pop %v2242
        %v2251 = vrsqrt.pop %v2243
        %v2252 = vrsqrt.pop %v2244
        %v2253 = vrsqrt.pop %v2245
        %v2254 = vmul.f32 %v2190, %v2246
        %v2255 = vmul.f32 %v2191, %v2247
        %v2256 = vmul.f32 %v2192, %v2248
        %v2257 = vmul.f32 %v2193, %v2249
        %v2258 = vmul.f32 %v2194, %v2250
        %v2259 = vmul.f32 %v2195, %v2251
        %v2260 = vmul.f32 %v2196, %v2252
        %v2261 = vmul.f32 %v2197, %v2253
        %v2263 = vlaneseq
        %v2264 = vshrl.u32 %v2263, 7
        %v2265 = vsub.s32 0, %v2264
        %v2266 = vrot.slane %v2156, %v2265
        %v2268 = vmul.f32 %v2254, %v2266
        %v2269 = vmul.f32 %v2255, %v2266
        %v2270 = vmul.f32 %v2256, %v2266
        %v2271 = vmul.f32 %v2257, %v2266
        %v2272 = vmul.f32 %v2258, %v2266
        %v2273 = vmul.f32 %v2259, %v2266
        %v2274 = vmul.f32 %v2260, %v2266
        %v2275 = vmul.f32 %v2261, %v2266
        %v2277 = vlaneseq
        %v2278 = vshrl.u32 %v2277, 7
        %v2279 = vsub.s32 0, %v2278
        %v2280 = vrot.slane %v2157, %v2279
        %v2282 = vadd.f32 %v2268, %v2280
        %v2283 = vadd.f32 %v2269, %v2280
        %v2284 = vadd.f32 %v2270, %v2280
        %v2285 = vadd.f32 %v2271, %v2280
        %v2286 = vadd.f32 %v2272, %v2280
        %v2287 = vadd.f32 %v2273, %v2280
        %v2288 = vadd.f32 %v2274, %v2280
        %v2289 = vadd.f32 %v2275, %v2280
        %v2290 = vpack.c.bf16 %v2283, %v2282
        %v2291 = vpack.c.bf16 %v2285, %v2284
        %v2292 = vpack.c.bf16 %v2287, %v2286
        %v2293 = vpack.c.bf16 %v2289, %v2288
        %v2294 = vld [vmem:[%s14] sm:$0xf]
        %v2295 = vld [vmem:[%s14 + $0x4] sm:$0xf]
        %v2296 = vld [vmem:[%s14 + $0x8] sm:$0xf]
        %v2297 = vld [vmem:[%s14 + $0xc] sm:$0xf]
        %v2298 = vld [vmem:[%s15] sm:$0x1]
        %v2300 = vlaneseq
        %v2301 = vshrl.u32 %v2300, 7
        %v2302 = vsub.s32 0, %v2301
        %v2303 = vrot.slane %v2298, %v2302
        %v2309 = vunpack.c.l.b16 %v2294
        %v2310 = vunpack.c.l.b16 %v2295
        %v2311 = vunpack.c.l.b16 %v2296
        %v2312 = vunpack.c.l.b16 %v2297
        %v2313 = vpack.c.b16 %v2310, %v2309
        %v2314 = vpack.c.b16 %v2312, %v2311
        %v2318 = vsel %vm1128, %v2290, 0
        %v2321 = vsel %vm1128, %v2291, 0
        %v2324 = vsel %vm1128, %v2292, 0
        %v2327 = vsel %vm1128, %v2293, 0
        %2329 = vmatprep.subr.bf16.mxu0 0
        %2330 = vmatpush1.bf16.msra.mxu0 0
        %2331 = vmatprep.subr.bf16.mxu0 0
        %2332 = vmatpush1.bf16.msra.mxu0 0
        %2333 = vmatprep.subr.bf16.mxu0 0
        %2334 = vmatpush1.bf16.msra.mxu0 0
        %2335 = vmatprep.subr.bf16.mxu0 0
        %2336 = vmatpush1.bf16.msra.mxu0 0
        %2337 = vmatprep.subr.bf16.mxu0 0
        %2338 = vmatpush1.bf16.msra.mxu0 0
        %2339 = vmatprep.subr.bf16.mxu0 0
        %2340 = vmatpush1.bf16.msra.mxu0 0
        %2341 = vmatprep.subr.bf16.mxu0 0
        %2342 = vmatpush1.bf16.msra.mxu0 %v2314
        %2343 = vmatprep.subr.bf16.mxu0 0
        %2344 = vmatpush1.bf16.msra.mxu0 %v2313
        %2345 = vmatprep.subr.bf16.mxu0 0
        %2346 = vmatpush2.bf16.msra.mxu0 0
        %2347 = vmatprep.subr.bf16.mxu0 0
        %2348 = vmatpush2.bf16.msra.mxu0 0
        %2349 = vmatprep.subr.bf16.mxu0 0
        %2350 = vmatpush2.bf16.msra.mxu0 0
        %2351 = vmatprep.subr.bf16.mxu0 0
        %2352 = vmatpush2.bf16.msra.mxu0 0
        %2353 = vmatprep.subr.bf16.mxu0 0
        %2354 = vmatpush2.bf16.msra.mxu0 0
        %2355 = vmatprep.subr.bf16.mxu0 0
        %2356 = vmatpush2.bf16.msra.mxu0 0
        %2357 = vmatprep.subr.bf16.mxu0 0
        %2358 = vmatpush2.bf16.msra.mxu0 0
        %2359 = vmatprep.subr.bf16.mxu0 0
        %2360 = vmatpush2.bf16.msra.mxu0 0
        %2361 = vmatprep.mubr.bf16.mxu0 0
        %2362 = vmatmul.mubr.bf16.gmra.mxu0 %v2318
        %v2363 = vpop.f32.mrf.mxu0
        %v2364 = vadd.f32 %v2303, %v2363
        %v2365 = vpop.f32.mrf.mxu0
        %v2366 = vpop.f32.mrf.mxu0
        %v2367 = vadd.f32 %v2303, %v2366
        %v2368 = vpop.f32.mrf.mxu0
        %2369 = vmatprep.mubr.bf16.mxu0 0
        %2370 = vmatmul.mubr.bf16.gmra.mxu0 %v2321
        %v2371 = vpop.f32.mrf.mxu0
        %v2372 = vadd.f32 %v2303, %v2371
        %v2373 = vpop.f32.mrf.mxu0
        %v2374 = vpop.f32.mrf.mxu0
        %v2375 = vadd.f32 %v2303, %v2374
        %v2376 = vpop.f32.mrf.mxu0
        %2377 = vmatprep.mubr.bf16.mxu0 0
        %2378 = vmatmul.mubr.bf16.gmra.mxu0 %v2324
        %v2379 = vpop.f32.mrf.mxu0
        %v2380 = vadd.f32 %v2303, %v2379
        %v2381 = vpop.f32.mrf.mxu0
        %v2382 = vpop.f32.mrf.mxu0
        %v2383 = vadd.f32 %v2303, %v2382
        %v2384 = vpop.f32.mrf.mxu0
        %2385 = vmatprep.mubr.bf16.mxu0 0
        %2386 = vmatmul.mubr.bf16.gmra.mxu0 %v2327
        %v2387 = vpop.f32.mrf.mxu0
        %v2388 = vadd.f32 %v2303, %v2387
        %v2389 = vpop.f32.mrf.mxu0
        %v2390 = vpop.f32.mrf.mxu0
        %v2391 = vadd.f32 %v2303, %v2390
        %v2392 = vpop.f32.mrf.mxu0
        %2393 = vdwg.mxu0
        %v2394 = vxor.u32 %v2364, 2147483648
        %v2395 = vxor.u32 %v2367, 2147483648
        %v2396 = vxor.u32 %v2372, 2147483648
        %v2397 = vxor.u32 %v2375, 2147483648
        %v2398 = vxor.u32 %v2380, 2147483648
        %v2399 = vxor.u32 %v2383, 2147483648
        %v2400 = vxor.u32 %v2388, 2147483648
        %v2401 = vxor.u32 %v2391, 2147483648
        %v2402 = vmul.f32 %v2394, 1.442695
        %v2403 = vpow.pop %v2402
        %v2404 = vmul.f32 %v2395, 1.442695
        %v2405 = vpow.pop %v2404
        %v2406 = vmul.f32 %v2396, 1.442695
        %v2407 = vpow.pop %v2406
        %v2408 = vmul.f32 %v2397, 1.442695
        %v2409 = vpow.pop %v2408
        %v2410 = vmul.f32 %v2398, 1.442695
        %v2411 = vpow.pop %v2410
        %v2412 = vmul.f32 %v2399, 1.442695
        %v2413 = vpow.pop %v2412
        %v2414 = vmul.f32 %v2400, 1.442695
        %v2415 = vpow.pop %v2414
        %v2416 = vmul.f32 %v2401, 1.442695
        %v2417 = vpow.pop %v2416
        %v2418 = vadd.f32 %v2403, 1.0
        %v2419 = vadd.f32 %v2405, 1.0
        %v2420 = vadd.f32 %v2407, 1.0
        %v2421 = vadd.f32 %v2409, 1.0
        %v2422 = vadd.f32 %v2411, 1.0
        %v2423 = vadd.f32 %v2413, 1.0
        %v2424 = vadd.f32 %v2415, 1.0
        %v2425 = vadd.f32 %v2417, 1.0
        %v2426 = vrcp.pop %v2418
        %v2427 = vmul.f32 1.0, %v2426
        %v2428 = vrcp.pop %v2419
        %v2429 = vmul.f32 1.0, %v2428
        %v2430 = vrcp.pop %v2420
        %v2431 = vmul.f32 1.0, %v2430
        %v2432 = vrcp.pop %v2421
        %v2433 = vmul.f32 1.0, %v2432
        %v2434 = vrcp.pop %v2422
        %v2435 = vmul.f32 1.0, %v2434
        %v2436 = vrcp.pop %v2423
        %v2437 = vmul.f32 1.0, %v2436
        %v2438 = vrcp.pop %v2424
        %v2439 = vmul.f32 1.0, %v2438
        %v2440 = vrcp.pop %v2425
        %v2441 = vmul.f32 1.0, %v2440
        %v2442 = vmul.f32 %v2364, %v2427
        %v2443 = vmul.f32 %v2367, %v2429
        %v2444 = vmul.f32 %v2372, %v2431
        %v2445 = vmul.f32 %v2375, %v2433
        %v2446 = vmul.f32 %v2380, %v2435
        %v2447 = vmul.f32 %v2383, %v2437
        %v2448 = vmul.f32 %v2388, %v2439
        %v2449 = vmul.f32 %v2391, %v2441
        %v2450 = vpack.c.bf16 %v2443, %v2442
        %v2451 = vpack.c.bf16 %v2445, %v2444
        %v2452 = vpack.c.bf16 %v2447, %v2446
        %v2453 = vpack.c.bf16 %v2449, %v2448
        %v2454 = vld [vmem:[%s16] sm:$0xf]
        %v2455 = vld [vmem:[%s16 + $0x4] sm:$0xf]
        %v2456 = vld [vmem:[%s16 + $0x8] sm:$0xf]
        %v2457 = vld [vmem:[%s16 + $0xc] sm:$0xf]
        %v2458 = vld [vmem:[%s17] sm:$0x1]
        %v2460 = vlaneseq
        %v2461 = vshrl.u32 %v2460, 7
        %v2462 = vsub.s32 0, %v2461
        %v2463 = vrot.slane %v2458, %v2462
        %v2469 = vunpack.c.l.b16 %v2454
        %v2470 = vunpack.c.l.b16 %v2455
        %v2471 = vunpack.c.l.b16 %v2456
        %v2472 = vunpack.c.l.b16 %v2457
        %v2473 = vpack.c.b16 %v2470, %v2469
        %v2474 = vpack.c.b16 %v2472, %v2471
        %v2478 = vsel %vm1128, %v2450, 0
        %v2481 = vsel %vm1128, %v2451, 0
        %v2484 = vsel %vm1128, %v2452, 0
        %v2487 = vsel %vm1128, %v2453, 0
        %2489 = vmatprep.subr.bf16.mxu0 0
        %2490 = vmatpush1.bf16.msra.mxu0 0
        %2491 = vmatprep.subr.bf16.mxu0 0
        %2492 = vmatpush1.bf16.msra.mxu0 0
        %2493 = vmatprep.subr.bf16.mxu0 0
        %2494 = vmatpush1.bf16.msra.mxu0 0
        %2495 = vmatprep.subr.bf16.mxu0 0
        %2496 = vmatpush1.bf16.msra.mxu0 0
        %2497 = vmatprep.subr.bf16.mxu0 0
        %2498 = vmatpush1.bf16.msra.mxu0 0
        %2499 = vmatprep.subr.bf16.mxu0 0
        %2500 = vmatpush1.bf16.msra.mxu0 0
        %2501 = vmatprep.subr.bf16.mxu0 0
        %2502 = vmatpush1.bf16.msra.mxu0 %v2474
        %2503 = vmatprep.subr.bf16.mxu0 0
        %2504 = vmatpush1.bf16.msra.mxu0 %v2473
        %2505 = vmatprep.subr.bf16.mxu0 0
        %2506 = vmatpush2.bf16.msra.mxu0 0
        %2507 = vmatprep.subr.bf16.mxu0 0
        %2508 = vmatpush2.bf16.msra.mxu0 0
        %2509 = vmatprep.subr.bf16.mxu0 0
        %2510 = vmatpush2.bf16.msra.mxu0 0
        %2511 = vmatprep.subr.bf16.mxu0 0
        %2512 = vmatpush2.bf16.msra.mxu0 0
        %2513 = vmatprep.subr.bf16.mxu0 0
        %2514 = vmatpush2.bf16.msra.mxu0 0
        %2515 = vmatprep.subr.bf16.mxu0 0
        %2516 = vmatpush2.bf16.msra.mxu0 0
        %2517 = vmatprep.subr.bf16.mxu0 0
        %2518 = vmatpush2.bf16.msra.mxu0 0
        %2519 = vmatprep.subr.bf16.mxu0 0
        %2520 = vmatpush2.bf16.msra.mxu0 0
        %2521 = vmatprep.mubr.bf16.mxu0 0
        %2522 = vmatmul.mubr.bf16.gmra.mxu0 %v2478
        %v2523 = vpop.f32.mrf.mxu0
        %v2524 = vadd.f32 %v2463, %v2523
        %v2525 = vpop.f32.mrf.mxu0
        %v2526 = vpop.f32.mrf.mxu0
        %v2527 = vadd.f32 %v2463, %v2526
        %v2528 = vpop.f32.mrf.mxu0
        %2529 = vmatprep.mubr.bf16.mxu0 0
        %2530 = vmatmul.mubr.bf16.gmra.mxu0 %v2481
        %v2531 = vpop.f32.mrf.mxu0
        %v2532 = vadd.f32 %v2463, %v2531
        %v2533 = vpop.f32.mrf.mxu0
        %v2534 = vpop.f32.mrf.mxu0
        %v2535 = vadd.f32 %v2463, %v2534
        %v2536 = vpop.f32.mrf.mxu0
        %2537 = vmatprep.mubr.bf16.mxu0 0
        %2538 = vmatmul.mubr.bf16.gmra.mxu0 %v2484
        %v2539 = vpop.f32.mrf.mxu0
        %v2540 = vadd.f32 %v2463, %v2539
        %v2541 = vpop.f32.mrf.mxu0
        %v2542 = vpop.f32.mrf.mxu0
        %v2543 = vadd.f32 %v2463, %v2542
        %v2544 = vpop.f32.mrf.mxu0
        %2545 = vmatprep.mubr.bf16.mxu0 0
        %2546 = vmatmul.mubr.bf16.gmra.mxu0 %v2487
        %v2547 = vpop.f32.mrf.mxu0
        %v2548 = vadd.f32 %v2463, %v2547
        %v2549 = vpop.f32.mrf.mxu0
        %v2550 = vpop.f32.mrf.mxu0
        %v2551 = vadd.f32 %v2463, %v2550
        %v2552 = vpop.f32.mrf.mxu0
        %2553 = vdwg.mxu0
        %v2554 = vadd.f32 %v2524, %v2148
        %v2555 = vadd.f32 %v2527, %v2149
        %v2556 = vadd.f32 %v2532, %v2150
        %v2557 = vadd.f32 %v2535, %v2151
        %v2558 = vadd.f32 %v2540, %v2152
        %v2559 = vadd.f32 %v2543, %v2153
        %v2560 = vadd.f32 %v2548, %v2154
        %v2561 = vadd.f32 %v2551, %v2155
        %2562 = vst.msk [vmem:[%s782] sm:$0xff] %vm1128, %v2554
        %2563 = vst.msk [vmem:[%s782 + $0x8] sm:$0xff] %vm1128, %v2555
        %2564 = vst.msk [vmem:[%s782 + $0x10] sm:$0xff] %vm1128, %v2556
        %2565 = vst.msk [vmem:[%s782 + $0x18] sm:$0xff] %vm1128, %v2557
        %2566 = vst.msk [vmem:[%s782 + $0x20] sm:$0xff] %vm1128, %v2558
        %2567 = vst.msk [vmem:[%s782 + $0x28] sm:$0xff] %vm1128, %v2559
        %2568 = vst.msk [vmem:[%s782 + $0x30] sm:$0xff] %vm1128, %v2560
        %2569 = vst.msk [vmem:[%s782 + $0x38] sm:$0xff] %vm1128, %v2561
      $region108: #{tpu_custom_call.1} parent=91 // pred_fallthru
        _
      %s2570 = smul.u32 8, %s36
      %p2571 = scmp.lt.s32.totalorder %s35, 1
      %s2572 = scalar_select %p2571, %s35, 1
      %p2573 = scmp.lt.s32.totalorder %s2570, 7
      %s2574 = scalar_select %p2573, %s2570, 7
      %s2575 = smul.addr %s2572, 8
      %s2576 = sadd.s32 %s2574, %s2575
      %s2577 = smul.addr %s2576, 8
      %s2578 = scalar_lea.vmem %s18, %s2577
      // Predicated region
      $region109: #{tpu_custom_call.1} parent=91 // pred_check
        %p2579 = pneg %p502
      $region110: #{tpu_custom_call.1} parent=91 // pred_check_branch
        %2581 = sbr.rel (%p2579) target = $region112
      $region111: #{tpu_custom_call.1} parent=91 // pred_region
        %s2582 = smul.u32 8, %s36
      $region112: #{tpu_custom_call.1} parent=91 // pred_fallthru
        _
    $region92: #{tpu_custom_call.1} parent=5 // pred_fallthru
      _
    %p2583 = scmp.le.s32.totalorder 2, %s24
    // Predicated region
    $region113: #{tpu_custom_call.1} parent=5 // pred_check
      %p2584 = pneg %p2583
    $region114: #{tpu_custom_call.1} parent=5 // pred_check_branch
      %2586 = sbr.rel (%p2584) target = $region116
    $region115: #{tpu_custom_call.1} parent=5 // pred_region
      %s2587 = ssub.s32 %s24, 2
      // Predicated region
      $region117: #{tpu_custom_call.1} parent=115 // pred_check
        %p2588 = pneg %p508
      $region118: #{tpu_custom_call.1} parent=115 // pred_check_branch
        %2590 = sbr.rel (%p2588) target = $region120
      $region119: #{tpu_custom_call.1} parent=115 // pred_region
        %s2591 = smul.u32 8, %s40
        %p2592 = scmp.lt.s32.totalorder %s39, 1
        %s2593 = scalar_select %p2592, %s39, 1
        %p2594 = scmp.lt.s32.totalorder %s2591, 7
        %s2595 = scalar_select %p2594, %s2591, 7
        %s2596 = smul.addr %s2593, 8
        %s2597 = sadd.s32 %s2595, %s2596
        %s2598 = smul.addr %s2597, 8
        %s2599 = scalar_lea.vmem %s18, %s2598
      $region120: #{tpu_custom_call.1} parent=115 // pred_fallthru
        _
    $region116: #{tpu_custom_call.1} parent=5 // pred_fallthru
      _
  $region6: #{tpu_custom_call.1} parent=0 // loop_footer
    %s28 = sadd.s32 1, %s24
  $region7: #{tpu_custom_call.1} parent=0 // loop_footer_branch
    %23 = sbr.rel target = $region3
  $region8: #{tpu_custom_call.1} parent=0 // loop_exit
    _

</llo_original>
